<compile_context>
chip_gen: v5e
topology: v5e:2x2
jax: 0.10.0
libtpu: 0.0.40
codegen_flags: <defaults>
</compile_context>

<pallas_src>
import jax
import jax.numpy as jnp
from jax.experimental import pallas as pl
from jax.experimental.pallas import tpu as pltpu


def pinn_kernel(x_ref, w1_ref, b1_ref, w2_ref, b2_ref,
                w3_ref, b3_ref, w4t_ref, b4_ref, o_ref):
    x = x_ref[...]                                              # (1, TB) f32

    # Layer 1: in_features == 1 -> outer product as a VPU broadcast MAC.
    h = jnp.tanh(w1_ref[...] * x + b1_ref[...])                 # (64, TB) f32

    # Layers 2 & 3: feature-major matmuls on the MXU; streaming (N) dimension
    # is the batch tile (>= 128). Operands take the weights' dtype (f32 or
    # bf16, chosen by the wrapper); accumulation stays f32.
    w2 = w2_ref[...]
    h = jnp.tanh(
        jnp.dot(w2, h.astype(w2.dtype), preferred_element_type=jnp.float32)
        + b2_ref[...])                                          # (32, TB) f32
    w3 = w3_ref[...]
    h = jnp.tanh(
        jnp.dot(w3, h.astype(w3.dtype), preferred_element_type=jnp.float32)
        + b3_ref[...])                                          # (16, TB) f32

    # Layer 4: out_features == 1 -> weighted sublane reduction (VPU + XLU).
    out = jnp.sum(h * w4t_ref[...], axis=0, keepdims=True) + b4_ref[...]
    o_ref[...] = out.astype(o_ref.dtype)                        # (1, TB) lane-dense


def _choose_tile_b(n, max_tile_b):
    """Largest lane-aligned tile <= max_tile_b that still allows >= 2 grid steps."""
    assert max_tile_b % 128 == 0 and max_tile_b >= 128, \
        "batch tile must be a multiple of 128 lanes"
    half = pl.cdiv(n, 2)
    tile = min(max_tile_b, pl.cdiv(half, 128) * 128)
    return max(tile, 128)


def pinn_forward(x, params, *, max_tile_b=4096, matmul_dtype=jnp.float32):
    """x: (N, 1) float32.  params: dict of weights/biases.  Returns (N, 1) f32."""
    N = x.shape[0]

    tile_b = _choose_tile_b(N, max_tile_b)
    n_tiles = pl.cdiv(N, tile_b)
    if n_tiles > 1 and n_tiles % 2 == 1:
        n_tiles += 1            # even-length grid -> balanced across v7x's 2 TCs
    n_pad = n_tiles * tile_b

    w1, b1 = params["w1"], params["b1"]                     # (64, 1), (64, 1) f32
    w2, b2 = params["w2"].astype(matmul_dtype), params["b2"]  # (32, 64), (32, 1)
    w3, b3 = params["w3"].astype(matmul_dtype), params["b3"]  # (16, 32), (16, 1)
    w4t, b4 = params["w4t"], params["b4"]                    # (16, 1), (1, 1) f32

    # Feature-major: batch on the 128-lane axis. Pad batch to n_tiles * tile_b;
    # padded columns produce garbage activations that are sliced off below.
    x_row = x.reshape(1, N)
    if n_pad != N:
        x_row = jnp.pad(x_row, ((0, 0), (0, n_pad - N)))

    def full(a):
        # Whole-array block for the (tiny) parameters; index is always (0, 0).
        return pl.BlockSpec(a.shape, lambda i: (0, 0))

    param_bytes = sum(int(p.size) * p.dtype.itemsize
                      for p in (w1, b1, w2, b2, w3, b3, w4t, b4))
    cost = pl.CostEstimate(
        flops=2 * n_pad * (64 + 64 * 32 + 32 * 16 + 16),
        transcendentals=(64 + 32 + 16) * n_pad,
        bytes_accessed=2 * 4 * n_pad + param_bytes,
    )

    out_row = pl.pallas_call(
        pinn_kernel,
        out_shape=jax.ShapeDtypeStruct((1, n_pad), jnp.float32),
        grid_spec=pltpu.PrefetchScalarGridSpec(
            num_scalar_prefetch=0,
            grid=(n_tiles,),
            in_specs=[
                pl.BlockSpec((1, tile_b), lambda i: (0, i)),    # x (lane-dense)
                full(w1), full(b1),
                full(w2), full(b2),
                full(w3), full(b3),
                full(w4t), full(b4),
            ],
            out_specs=pl.BlockSpec((1, tile_b), lambda i: (0, i)),
        ),
        compiler_params=pltpu.CompilerParams(
            # "parallel" lets megacore shard batch tiles; if profiling on v7x
            # shows both TCs are not used, switch this axis to pltpu.CORE_PARALLEL.
            dimension_semantics=("parallel",),
            vmem_limit_bytes=32 * 1024 * 1024,
        ),
        cost_estimate=cost,
    )(x_row, w1, b1, w2, b2, w3, b3, w4t, b4)

    return out_row[:, :N].reshape(N, 1)


def init_params(key):
    """Deterministic init mimicking nn.Linear's U(-1/sqrt(fan_in), +...).

    Weights kept in PyTorch (out_features, in_features) orientation; biases
    stored as (out_features, 1) columns.  The last layer's weight is stored
    transposed (w4t: (16, 1)) so the kernel can do a weighted reduction.
    """
    dims = [(1, 64), (64, 32), (32, 16), (16, 1)]
    params = {}
    keys = jax.random.split(key, 2 * len(dims))
    for idx, (fan_in, fan_out) in enumerate(dims):
        bound = 1.0 / (fan_in ** 0.5)
        w = jax.random.uniform(keys[2 * idx], (fan_out, fan_in),
                               minval=-bound, maxval=bound, dtype=jnp.float32)
        b = jax.random.uniform(keys[2 * idx + 1], (fan_out, 1),
                               minval=-bound, maxval=bound, dtype=jnp.float32)
        if idx == 3:
            params["w4t"] = w.T           # (16, 1)
            params["b4"] = b              # (1, 1)
        else:
            params[f"w{idx + 1}"] = w
            params[f"b{idx + 1}"] = b
    return params


def pinn_forward_ref(x, params):
    """Pure-JAX f32 reference in the standard (batch, features) layout."""
    h = jnp.tanh(x @ params["w1"].T + params["b1"].T)
    h = jnp.tanh(h @ params["w2"].T + params["b2"].T)
    h = jnp.tanh(h @ params["w3"].T + params["b3"].T)
    return h @ params["w4t"] + params["b4"]


if __name__ == "__main__":
    key = jax.random.PRNGKey(0)
    pkey, xkey = jax.random.split(key)
    params = init_params(pkey)

    N = 8192  # -> tile_b = 4096, grid of 2 batch tiles (even, megacore-friendly)
    x = jax.random.uniform(xkey, (N, 1), minval=-1.0, maxval=1.0,
                           dtype=jnp.float32)

    ref = pinn_forward_ref(x, params)

    # Default f32 matmul path: must match the f32 reference tightly.
    out = jax.block_until_ready(pinn_forward(x, params))
    assert out.shape == (N, 1)
    assert jnp.allclose(out, ref, atol=1e-5, rtol=1e-5), "f32 mismatch vs reference"

    # Optional bf16 MXU path (native on all generations); looser tolerance.
    out_bf16 = jax.block_until_ready(
        pinn_forward(x, params, matmul_dtype=jnp.bfloat16))
    assert jnp.allclose(out_bf16, ref, atol=3e-2, rtol=0.0), "bf16 path diverged"

    print("KERNEL_OK")
</pallas_src>

<mosaic_0001>
module attributes {stable_mosaic.version = 11 : i64} {
  func.func @pinn_kernel(%arg0: i32, %arg1: memref<1x4096xf32, #tpu.memory_space<vmem>>, %arg2: memref<64x1xf32, #tpu.memory_space<vmem>>, %arg3: memref<64x1xf32, #tpu.memory_space<vmem>>, %arg4: memref<32x64xf32, #tpu.memory_space<vmem>>, %arg5: memref<32x1xf32, #tpu.memory_space<vmem>>, %arg6: memref<16x32xf32, #tpu.memory_space<vmem>>, %arg7: memref<16x1xf32, #tpu.memory_space<vmem>>, %arg8: memref<16x1xf32, #tpu.memory_space<vmem>>, %arg9: memref<1x1xf32, #tpu.memory_space<vmem>>, %arg10: memref<1x4096xf32, #tpu.memory_space<vmem>>) attributes {dimension_semantics = [#tpu.dimension_semantics<parallel>], iteration_bounds = array<i64: 2>, scalar_prefetch = 0 : i64, scratch_operands = 0 : i64, tpu.core_type = #tpu.core_type<tc>, window_params = [{transform_indices = @transform_0, window_bounds = array<i64: 1, 4096>}, {pipeline_mode = #tpu.pipeline_mode<synchronous>, transform_indices = @transform_1, window_bounds = array<i64: 64, 1>}, {pipeline_mode = #tpu.pipeline_mode<synchronous>, transform_indices = @transform_2, window_bounds = array<i64: 64, 1>}, {pipeline_mode = #tpu.pipeline_mode<synchronous>, transform_indices = @transform_3, window_bounds = array<i64: 32, 64>}, {pipeline_mode = #tpu.pipeline_mode<synchronous>, transform_indices = @transform_4, window_bounds = array<i64: 32, 1>}, {pipeline_mode = #tpu.pipeline_mode<synchronous>, transform_indices = @transform_5, window_bounds = array<i64: 16, 32>}, {pipeline_mode = #tpu.pipeline_mode<synchronous>, transform_indices = @transform_6, window_bounds = array<i64: 16, 1>}, {pipeline_mode = #tpu.pipeline_mode<synchronous>, transform_indices = @transform_7, window_bounds = array<i64: 16, 1>}, {pipeline_mode = #tpu.pipeline_mode<synchronous>, transform_indices = @transform_8, window_bounds = array<i64: 1, 1>}, {transform_indices = @transform_9, window_bounds = array<i64: 1, 4096>}]} {
    %c0 = arith.constant 0 : index
    %c0_0 = arith.constant 0 : index
    %0 = vector.load %arg1[%c0, %c0_0] : memref<1x4096xf32, #tpu.memory_space<vmem>>, vector<1x4096xf32>
    %c0_1 = arith.constant 0 : index
    %c0_2 = arith.constant 0 : index
    %1 = vector.load %arg2[%c0_1, %c0_2] : memref<64x1xf32, #tpu.memory_space<vmem>>, vector<64x1xf32>
    %2 = vector.broadcast %1 : vector<64x1xf32> to vector<64x4096xf32>
    %3 = vector.broadcast %0 : vector<1x4096xf32> to vector<64x4096xf32>
    %4 = arith.mulf %2, %3 : vector<64x4096xf32>
    %c0_3 = arith.constant 0 : index
    %c0_4 = arith.constant 0 : index
    %5 = vector.load %arg3[%c0_3, %c0_4] : memref<64x1xf32, #tpu.memory_space<vmem>>, vector<64x1xf32>
    %6 = vector.broadcast %5 : vector<64x1xf32> to vector<64x4096xf32>
    %7 = arith.addf %4, %6 : vector<64x4096xf32>
    %8 = math.tanh %7 : vector<64x4096xf32>
    %c0_5 = arith.constant 0 : index
    %c0_6 = arith.constant 0 : index
    %9 = vector.load %arg4[%c0_5, %c0_6] : memref<32x64xf32, #tpu.memory_space<vmem>>, vector<32x64xf32>
    %cst = arith.constant dense<0.000000e+00> : vector<32x4096xf32>
    %10 = tpu.matmul %9, %8, %cst {dimension_numbers = #tpu.dot_dimension_numbers<[1], [0], [0], [1], [0, 0, 1, 1], [], []>} : vector<32x64xf32>, vector<64x4096xf32>, vector<32x4096xf32> -> vector<32x4096xf32>
    %c0_7 = arith.constant 0 : index
    %c0_8 = arith.constant 0 : index
    %11 = vector.load %arg5[%c0_7, %c0_8] : memref<32x1xf32, #tpu.memory_space<vmem>>, vector<32x1xf32>
    %12 = vector.broadcast %11 : vector<32x1xf32> to vector<32x4096xf32>
    %13 = arith.addf %10, %12 : vector<32x4096xf32>
    %14 = math.tanh %13 : vector<32x4096xf32>
    %c0_9 = arith.constant 0 : index
    %c0_10 = arith.constant 0 : index
    %15 = vector.load %arg6[%c0_9, %c0_10] : memref<16x32xf32, #tpu.memory_space<vmem>>, vector<16x32xf32>
    %cst_11 = arith.constant dense<0.000000e+00> : vector<16x4096xf32>
    %16 = tpu.matmul %15, %14, %cst_11 {dimension_numbers = #tpu.dot_dimension_numbers<[1], [0], [0], [1], [0, 0, 1, 1], [], []>} : vector<16x32xf32>, vector<32x4096xf32>, vector<16x4096xf32> -> vector<16x4096xf32>
    %c0_12 = arith.constant 0 : index
    %c0_13 = arith.constant 0 : index
    %17 = vector.load %arg7[%c0_12, %c0_13] : memref<16x1xf32, #tpu.memory_space<vmem>>, vector<16x1xf32>
    %18 = vector.broadcast %17 : vector<16x1xf32> to vector<16x4096xf32>
    %19 = arith.addf %16, %18 : vector<16x4096xf32>
    %20 = math.tanh %19 : vector<16x4096xf32>
    %c0_14 = arith.constant 0 : index
    %c0_15 = arith.constant 0 : index
    %21 = vector.load %arg8[%c0_14, %c0_15] : memref<16x1xf32, #tpu.memory_space<vmem>>, vector<16x1xf32>
    %22 = vector.broadcast %21 : vector<16x1xf32> to vector<16x4096xf32>
    %23 = arith.mulf %20, %22 : vector<16x4096xf32>
    %cst_16 = arith.constant dense<0.000000e+00> : vector<4096xf32>
    %24 = vector.multi_reduction <add>, %23, %cst_16 [0] : vector<16x4096xf32> to vector<4096xf32>
    %25 = vector.shape_cast %24 : vector<4096xf32> to vector<1x4096xf32>
    %c0_17 = arith.constant 0 : index
    %c0_18 = arith.constant 0 : index
    %26 = vector.load %arg9[%c0_17, %c0_18] : memref<1x1xf32, #tpu.memory_space<vmem>>, vector<1x1xf32>
    %27 = vector.broadcast %26 : vector<1x1xf32> to vector<1x4096xf32>
    %28 = arith.addf %25, %27 : vector<1x4096xf32>
    %c0_19 = arith.constant 0 : index
    %c0_20 = arith.constant 0 : index
    %29 = vector.load %arg10[%c0_19, %c0_20] : memref<1x4096xf32, #tpu.memory_space<vmem>>, vector<1x4096xf32>
    tpu.vector_store %arg10[%c0_19, %c0_20], %28 {strides = array<i32>} : memref<1x4096xf32, #tpu.memory_space<vmem>>, vector<1x4096xf32>,
    return
  }
  func.func @transform_0(%arg0: i32) -> (i32, i32) {
    %c0_i32 = arith.constant 0 : i32
    %c0_i32_0 = arith.constant 0 : i32
    return %c0_i32, %arg0 : i32, i32
  }
  func.func @transform_1(%arg0: i32) -> (i32, i32) {
    %c0_i32 = arith.constant 0 : i32
    %c0_i32_0 = arith.constant 0 : i32
    %c0_i32_1 = arith.constant 0 : i32
    return %c0_i32, %c0_i32_0 : i32, i32
  }
  func.func @transform_2(%arg0: i32) -> (i32, i32) {
    %c0_i32 = arith.constant 0 : i32
    %c0_i32_0 = arith.constant 0 : i32
    %c0_i32_1 = arith.constant 0 : i32
    return %c0_i32, %c0_i32_0 : i32, i32
  }
  func.func @transform_3(%arg0: i32) -> (i32, i32) {
    %c0_i32 = arith.constant 0 : i32
    %c0_i32_0 = arith.constant 0 : i32
    %c0_i32_1 = arith.constant 0 : i32
    return %c0_i32, %c0_i32_0 : i32, i32
  }
  func.func @transform_4(%arg0: i32) -> (i32, i32) {
    %c0_i32 = arith.constant 0 : i32
    %c0_i32_0 = arith.constant 0 : i32
    %c0_i32_1 = arith.constant 0 : i32
    return %c0_i32, %c0_i32_0 : i32, i32
  }
  func.func @transform_5(%arg0: i32) -> (i32, i32) {
    %c0_i32 = arith.constant 0 : i32
    %c0_i32_0 = arith.constant 0 : i32
    %c0_i32_1 = arith.constant 0 : i32
    return %c0_i32, %c0_i32_0 : i32, i32
  }
  func.func @transform_6(%arg0: i32) -> (i32, i32) {
    %c0_i32 = arith.constant 0 : i32
    %c0_i32_0 = arith.constant 0 : i32
    %c0_i32_1 = arith.constant 0 : i32
    return %c0_i32, %c0_i32_0 : i32, i32
  }
  func.func @transform_7(%arg0: i32) -> (i32, i32) {
    %c0_i32 = arith.constant 0 : i32
    %c0_i32_0 = arith.constant 0 : i32
    %c0_i32_1 = arith.constant 0 : i32
    return %c0_i32, %c0_i32_0 : i32, i32
  }
  func.func @transform_8(%arg0: i32) -> (i32, i32) {
    %c0_i32 = arith.constant 0 : i32
    %c0_i32_0 = arith.constant 0 : i32
    %c0_i32_1 = arith.constant 0 : i32
    return %c0_i32, %c0_i32_0 : i32, i32
  }
  func.func @transform_9(%arg0: i32) -> (i32, i32) {
    %c0_i32 = arith.constant 0 : i32
    %c0_i32_0 = arith.constant 0 : i32
    return %c0_i32, %arg0 : i32, i32
  }
}

</mosaic_0001>

<llo_original>
// kernel: tpu_custom_call.1
$region0: #{tpu_custom_call.1}
  #allocation0 [shape = 'u32[]', space=smem, size = 0x4, offset = 0x4, fixed_abs, tag = 'smem constant byte address 0x4 - core index']
  #allocation1 [shape = 'u32[72,128]{1,0:T(1,128)}', space=vmem, size = 0x9000, scoped, tag = 'internal scratch']
  #allocation2 [shape = 'f32[1,1]{1,0:T(1,128)S(1)}', space=vmem, size = 0x200, scoped, tag = 'scoped memory for tpu_custom_call.1']
  %s0 = inlined_call_operand.vmem [shape: f32[1,8192], index: 0, kind: input, shape index: {}]
  %s1 = inlined_call_operand.vmem [shape: f32[64,1], index: 1, kind: input, shape index: {}]
  %s2 = inlined_call_operand.vmem [shape: f32[64,1], index: 2, kind: input, shape index: {}]
  %s3 = inlined_call_operand.vmem [shape: f32[32,64], index: 3, kind: input, shape index: {}]
  %s4 = inlined_call_operand.vmem [shape: f32[32,1], index: 4, kind: input, shape index: {}]
  %s5 = inlined_call_operand.vmem [shape: f32[16,32], index: 5, kind: input, shape index: {}]
  %s6 = inlined_call_operand.vmem [shape: f32[16,1], index: 6, kind: input, shape index: {}]
  %s7 = inlined_call_operand.vmem [shape: f32[16,1], index: 7, kind: input, shape index: {}]
  %s8 = inlined_call_operand.<no memory space> [shape: f32[1,1], index: 8, kind: input, shape index: {}]
  %s9 = inlined_call_operand.hbm [shape: f32[1,8192], index: 9, kind: output, shape index: {}]
  %s10 = sld [smem:[#allocation0]]
  $region69: #{tpu_custom_call.1} parent=0
    _
  %s12 = ssub.s32 1, %s10
  %s13 = scalar_select 0, %s12, %s10
  %v14 = vstv %s8
  %15 = vst [vmem:[#allocation2] sm:$0x1] %v14
  $region1: #{tpu_custom_call.1} parent=0
    #allocation3 [shape = 'u8[32768]{0}', space=vmem, size = 0x8000, scoped, tag = 'output window, operand 0']
    #allocation4 [shape = 's32[2]{0}', space=sflag, size = 0x8, scoped, tag = 'scoped memory for tpu_custom_call.1']
    %16 = vsyncpa [#allocation4], 0
    %s17 = scalar_lea.sflag [#allocation4], 1
    %18 = vsyncpa %s17, 0
    loop: start=0, step=1, limit=4
    $region2: #{tpu_custom_call.1} parent=1 // loop_pre_header
      _
    $region3: #{tpu_custom_call.1} parent=1 // loop_header
      %s20 = sphi 0, %s24
      %p21 = scmp.ge.s32.totalorder %s20, 4
      %s30 = sphi 0, %s32
      %s33 = sphi 0, %s30
      %s34 = sphi 0, %s33
      %s50 = sphi 0, %s34
      %s54 = sphi 0, %s54
      %s56 = sphi 0, %s54
      %s57 = sphi 0, %s56
      %s71 = sphi 0, %s57
      %s75 = sphi 0, %s75
      %s77 = sphi 0, %s75
      %s78 = sphi 0, %s77
      %s92 = sphi 0, %s78
      %s96 = sphi 0, %s96
      %s98 = sphi 0, %s96
      %s99 = sphi 0, %s98
      %s113 = sphi 0, %s99
      %s117 = sphi 0, %s117
      %s119 = sphi 0, %s117
      %s120 = sphi 0, %s119
      %s134 = sphi 0, %s120
      %s138 = sphi 0, %s138
      %s140 = sphi 0, %s138
      %s141 = sphi 0, %s140
      %s155 = sphi 0, %s141
      %s159 = sphi 0, %s159
      %s161 = sphi 0, %s159
      %s162 = sphi 0, %s161
      %s176 = sphi 0, %s162
      %s180 = sphi 0, %s180
      %s182 = sphi 0, %s180
      %s183 = sphi 0, %s182
      %s197 = sphi 0, %s183
      %s201 = sphi 0, %s201
      %s203 = sphi 0, %s201
      %s204 = sphi 0, %s203
      %s218 = sphi 0, %s204
      %s224 = sphi 0, %s226
      %s227 = sphi 0, %s224
      %s228 = sphi 0, %s227
      %s244 = sphi 0, %s228
    $region4: #{tpu_custom_call.1} parent=1 // loop_header_branch
      %23 = sbr.rel (%p21) target = $region8
    $region5: #{tpu_custom_call.1} parent=1 // loop_body
      %s25 = ssub.s32 %s20, 1
      %s26 = ssub.s32 %s20, 2
      %s27 = sadd.s32 %s20, 1
      %s28 = ssub.s32 %s20, %s27
      %p29 = scmp.eq.s32.totalorder %s28, 0
      %s31 = sadd.s32 %s30, 1
      %s32 = scalar_select %p29, %s30, %s31
      %p35 = pneg %p29
      %p36 = scmp.eq.s32.totalorder %s20, 1
      %p37 = por %p35, %p36
      %p38 = scmp.ne.s32.totalorder %s30, %s33
      %p39 = scmp.eq.s32.totalorder %s20, 0
      %p40 = por %p38, %p39
      %p41 = scmp.ne.s32.totalorder %s30, %s33
      %p42 = scmp.eq.s32.totalorder %s25, 1
      %p43 = por %p41, %p42
      %p44 = scmp.ne.s32.totalorder %s33, %s34
      %p45 = scmp.eq.s32.totalorder %s25, 0
      %p46 = por %p44, %p45
      %p47 = scmp.ne.s32.totalorder %s33, %s34
      %p48 = scmp.eq.s32.totalorder %s26, 1
      %p49 = por %p47, %p48
      %p51 = scmp.ne.s32.totalorder %s34, %s50
      %p52 = scmp.eq.s32.totalorder %s26, 0
      %p53 = por %p51, %p52
      %s55 = sadd.s32 %s54, 1
      %p58 = scmp.eq.s32.totalorder %s20, 1
      %p59 = scmp.ne.s32.totalorder %s54, %s56
      %p60 = scmp.eq.s32.totalorder %s20, 0
      %p61 = por %p59, %p60
      %p62 = scmp.ne.s32.totalorder %s54, %s56
      %p63 = scmp.eq.s32.totalorder %s25, 1
      %p64 = por %p62, %p63
      %p65 = scmp.ne.s32.totalorder %s56, %s57
      %p66 = scmp.eq.s32.totalorder %s25, 0
      %p67 = por %p65, %p66
      %p68 = scmp.ne.s32.totalorder %s56, %s57
      %p69 = scmp.eq.s32.totalorder %s26, 1
      %p70 = por %p68, %p69
      %p72 = scmp.ne.s32.totalorder %s57, %s71
      %p73 = scmp.eq.s32.totalorder %s26, 0
      %p74 = por %p72, %p73
      %s76 = sadd.s32 %s75, 1
      %p79 = scmp.eq.s32.totalorder %s20, 1
      %p80 = scmp.ne.s32.totalorder %s75, %s77
      %p81 = scmp.eq.s32.totalorder %s20, 0
      %p82 = por %p80, %p81
      %p83 = scmp.ne.s32.totalorder %s75, %s77
      %p84 = scmp.eq.s32.totalorder %s25, 1
      %p85 = por %p83, %p84
      %p86 = scmp.ne.s32.totalorder %s77, %s78
      %p87 = scmp.eq.s32.totalorder %s25, 0
      %p88 = por %p86, %p87
      %p89 = scmp.ne.s32.totalorder %s77, %s78
      %p90 = scmp.eq.s32.totalorder %s26, 1
      %p91 = por %p89, %p90
      %p93 = scmp.ne.s32.totalorder %s78, %s92
      %p94 = scmp.eq.s32.totalorder %s26, 0
      %p95 = por %p93, %p94
      %s97 = sadd.s32 %s96, 1
      %p100 = scmp.eq.s32.totalorder %s20, 1
      %p101 = scmp.ne.s32.totalorder %s96, %s98
      %p102 = scmp.eq.s32.totalorder %s20, 0
      %p103 = por %p101, %p102
      %p104 = scmp.ne.s32.totalorder %s96, %s98
      %p105 = scmp.eq.s32.totalorder %s25, 1
      %p106 = por %p104, %p105
      %p107 = scmp.ne.s32.totalorder %s98, %s99
      %p108 = scmp.eq.s32.totalorder %s25, 0
      %p109 = por %p107, %p108
      %p110 = scmp.ne.s32.totalorder %s98, %s99
      %p111 = scmp.eq.s32.totalorder %s26, 1
      %p112 = por %p110, %p111
      %p114 = scmp.ne.s32.totalorder %s99, %s113
      %p115 = scmp.eq.s32.totalorder %s26, 0
      %p116 = por %p114, %p115
      %s118 = sadd.s32 %s117, 1
      %p121 = scmp.eq.s32.totalorder %s20, 1
      %p122 = scmp.ne.s32.totalorder %s117, %s119
      %p123 = scmp.eq.s32.totalorder %s20, 0
      %p124 = por %p122, %p123
      %p125 = scmp.ne.s32.totalorder %s117, %s119
      %p126 = scmp.eq.s32.totalorder %s25, 1
      %p127 = por %p125, %p126
      %p128 = scmp.ne.s32.totalorder %s119, %s120
      %p129 = scmp.eq.s32.totalorder %s25, 0
      %p130 = por %p128, %p129
      %p131 = scmp.ne.s32.totalorder %s119, %s120
      %p132 = scmp.eq.s32.totalorder %s26, 1
      %p133 = por %p131, %p132
      %p135 = scmp.ne.s32.totalorder %s120, %s134
      %p136 = scmp.eq.s32.totalorder %s26, 0
      %p137 = por %p135, %p136
      %s139 = sadd.s32 %s138, 1
      %p142 = scmp.eq.s32.totalorder %s20, 1
      %p143 = scmp.ne.s32.totalorder %s138, %s140
      %p144 = scmp.eq.s32.totalorder %s20, 0
      %p145 = por %p143, %p144
      %p146 = scmp.ne.s32.totalorder %s138, %s140
      %p147 = scmp.eq.s32.totalorder %s25, 1
      %p148 = por %p146, %p147
      %p149 = scmp.ne.s32.totalorder %s140, %s141
      %p150 = scmp.eq.s32.totalorder %s25, 0
      %p151 = por %p149, %p150
      %p152 = scmp.ne.s32.totalorder %s140, %s141
      %p153 = scmp.eq.s32.totalorder %s26, 1
      %p154 = por %p152, %p153
      %p156 = scmp.ne.s32.totalorder %s141, %s155
      %p157 = scmp.eq.s32.totalorder %s26, 0
      %p158 = por %p156, %p157
      %s160 = sadd.s32 %s159, 1
      %p163 = scmp.eq.s32.totalorder %s20, 1
      %p164 = scmp.ne.s32.totalorder %s159, %s161
      %p165 = scmp.eq.s32.totalorder %s20, 0
      %p166 = por %p164, %p165
      %p167 = scmp.ne.s32.totalorder %s159, %s161
      %p168 = scmp.eq.s32.totalorder %s25, 1
      %p169 = por %p167, %p168
      %p170 = scmp.ne.s32.totalorder %s161, %s162
      %p171 = scmp.eq.s32.totalorder %s25, 0
      %p172 = por %p170, %p171
      %p173 = scmp.ne.s32.totalorder %s161, %s162
      %p174 = scmp.eq.s32.totalorder %s26, 1
      %p175 = por %p173, %p174
      %p177 = scmp.ne.s32.totalorder %s162, %s176
      %p178 = scmp.eq.s32.totalorder %s26, 0
      %p179 = por %p177, %p178
      %s181 = sadd.s32 %s180, 1
      %p184 = scmp.eq.s32.totalorder %s20, 1
      %p185 = scmp.ne.s32.totalorder %s180, %s182
      %p186 = scmp.eq.s32.totalorder %s20, 0
      %p187 = por %p185, %p186
      %p188 = scmp.ne.s32.totalorder %s180, %s182
      %p189 = scmp.eq.s32.totalorder %s25, 1
      %p190 = por %p188, %p189
      %p191 = scmp.ne.s32.totalorder %s182, %s183
      %p192 = scmp.eq.s32.totalorder %s25, 0
      %p193 = por %p191, %p192
      %p194 = scmp.ne.s32.totalorder %s182, %s183
      %p195 = scmp.eq.s32.totalorder %s26, 1
      %p196 = por %p194, %p195
      %p198 = scmp.ne.s32.totalorder %s183, %s197
      %p199 = scmp.eq.s32.totalorder %s26, 0
      %p200 = por %p198, %p199
      %s202 = sadd.s32 %s201, 1
      %p205 = scmp.eq.s32.totalorder %s20, 1
      %p206 = scmp.ne.s32.totalorder %s201, %s203
      %p207 = scmp.eq.s32.totalorder %s20, 0
      %p208 = por %p206, %p207
      %p209 = scmp.ne.s32.totalorder %s201, %s203
      %p210 = scmp.eq.s32.totalorder %s25, 1
      %p211 = por %p209, %p210
      %p212 = scmp.ne.s32.totalorder %s203, %s204
      %p213 = scmp.eq.s32.totalorder %s25, 0
      %p214 = por %p212, %p213
      %p215 = scmp.ne.s32.totalorder %s203, %s204
      %p216 = scmp.eq.s32.totalorder %s26, 1
      %p217 = por %p215, %p216
      %p219 = scmp.ne.s32.totalorder %s204, %s218
      %p220 = scmp.eq.s32.totalorder %s26, 0
      %p221 = por %p219, %p220
      %s222 = ssub.s32 %s20, %s27
      %p223 = scmp.eq.s32.totalorder %s222, 0
      %s225 = sadd.s32 %s224, 1
      %s226 = scalar_select %p223, %s224, %s225
      %p229 = pneg %p223
      %p230 = scmp.eq.s32.totalorder %s20, 1
      %p231 = por %p229, %p230
      %p232 = scmp.ne.s32.totalorder %s224, %s227
      %p233 = scmp.eq.s32.totalorder %s20, 0
      %p234 = por %p232, %p233
      %p235 = scmp.ne.s32.totalorder %s224, %s227
      %p236 = scmp.eq.s32.totalorder %s25, 1
      %p237 = por %p235, %p236
      %p238 = scmp.ne.s32.totalorder %s227, %s228
      %p239 = scmp.eq.s32.totalorder %s25, 0
      %p240 = por %p238, %p239
      %p241 = scmp.ne.s32.totalorder %s227, %s228
      %p242 = scmp.eq.s32.totalorder %s26, 1
      %p243 = por %p241, %p242
      %p245 = scmp.ne.s32.totalorder %s228, %s244
      %p246 = scmp.eq.s32.totalorder %s26, 0
      %p247 = por %p245, %p246
      %p248 = scmp.le.s32.totalorder 1, %s20
      %p249 = scmp.lt.s32.totalorder %s20, 3
      %p250 = pnand %p248, %p249
      %p251 = pneg %p250
      // Predicated region
      $region9: #{tpu_custom_call.1} parent=5 // pred_check
        _
      $region10: #{tpu_custom_call.1} parent=5 // pred_check_branch
        %253 = sbr.rel (%p250) target = $region12
      $region11: #{tpu_custom_call.1} parent=5 // pred_region
        %s254 = ssub.s32 %s20, 1
        // Predicated region
        $region13: #{tpu_custom_call.1} parent=11 // pred_check
          %p255 = pneg %p67
        $region14: #{tpu_custom_call.1} parent=11 // pred_check_branch
          %257 = sbr.rel (%p255) target = $region16
        $region15: #{tpu_custom_call.1} parent=11 // pred_region
          _
        $region16: #{tpu_custom_call.1} parent=11 // pred_fallthru
          _
        // Predicated region
        $region17: #{tpu_custom_call.1} parent=11 // pred_check
          %p258 = pneg %p88
        $region18: #{tpu_custom_call.1} parent=11 // pred_check_branch
          %260 = sbr.rel (%p258) target = $region20
        $region19: #{tpu_custom_call.1} parent=11 // pred_region
          _
        $region20: #{tpu_custom_call.1} parent=11 // pred_fallthru
          _
        // Predicated region
        $region21: #{tpu_custom_call.1} parent=11 // pred_check
          %p261 = pneg %p109
        $region22: #{tpu_custom_call.1} parent=11 // pred_check_branch
          %263 = sbr.rel (%p261) target = $region24
        $region23: #{tpu_custom_call.1} parent=11 // pred_region
          _
        $region24: #{tpu_custom_call.1} parent=11 // pred_fallthru
          _
        // Predicated region
        $region25: #{tpu_custom_call.1} parent=11 // pred_check
          %p264 = pneg %p130
        $region26: #{tpu_custom_call.1} parent=11 // pred_check_branch
          %266 = sbr.rel (%p264) target = $region28
        $region27: #{tpu_custom_call.1} parent=11 // pred_region
          _
        $region28: #{tpu_custom_call.1} parent=11 // pred_fallthru
          _
        // Predicated region
        $region29: #{tpu_custom_call.1} parent=11 // pred_check
          %p267 = pneg %p151
        $region30: #{tpu_custom_call.1} parent=11 // pred_check_branch
          %269 = sbr.rel (%p267) target = $region32
        $region31: #{tpu_custom_call.1} parent=11 // pred_region
          _
        $region32: #{tpu_custom_call.1} parent=11 // pred_fallthru
          _
        // Predicated region
        $region33: #{tpu_custom_call.1} parent=11 // pred_check
          %p270 = pneg %p172
        $region34: #{tpu_custom_call.1} parent=11 // pred_check_branch
          %272 = sbr.rel (%p270) target = $region36
        $region35: #{tpu_custom_call.1} parent=11 // pred_region
          _
        $region36: #{tpu_custom_call.1} parent=11 // pred_fallthru
          _
        // Predicated region
        $region37: #{tpu_custom_call.1} parent=11 // pred_check
          %p273 = pneg %p193
        $region38: #{tpu_custom_call.1} parent=11 // pred_check_branch
          %275 = sbr.rel (%p273) target = $region40
        $region39: #{tpu_custom_call.1} parent=11 // pred_region
          _
        $region40: #{tpu_custom_call.1} parent=11 // pred_fallthru
          _
        // Predicated region
        $region41: #{tpu_custom_call.1} parent=11 // pred_check
          %p276 = pneg %p214
        $region42: #{tpu_custom_call.1} parent=11 // pred_check_branch
          %278 = sbr.rel (%p276) target = $region44
        $region43: #{tpu_custom_call.1} parent=11 // pred_region
          _
        $region44: #{tpu_custom_call.1} parent=11 // pred_fallthru
          _
      $region12: #{tpu_custom_call.1} parent=5 // pred_fallthru
        _
      %p279 = scmp.lt.s32.totalorder %s20, 2
      // Predicated region
      $region45: #{tpu_custom_call.1} parent=5 // pred_check
        %p280 = pneg %p279
      $region46: #{tpu_custom_call.1} parent=5 // pred_check_branch
        %282 = sbr.rel (%p280) target = $region48
      $region47: #{tpu_custom_call.1} parent=5 // pred_region
        // Predicated region
        $region49: #{tpu_custom_call.1} parent=47 // pred_check
          %p283 = pneg %p40
        $region50: #{tpu_custom_call.1} parent=47 // pred_check_branch
          %285 = sbr.rel (%p283) target = $region52
        $region51: #{tpu_custom_call.1} parent=47 // pred_region
          %s286 = smul.u32 32, %s20
          %p287 = scmp.lt.s32.totalorder %s286, 63
          %s288 = scalar_select %p287, %s286, 63
          %s289 = scalar_lea.vmem %s0, %s288
          %s290 = smul.u32 32, %s20
        $region52: #{tpu_custom_call.1} parent=47 // pred_fallthru
          _
      $region48: #{tpu_custom_call.1} parent=5 // pred_fallthru
        _
      %p291 = scmp.le.s32.totalorder 1, %s20
      %p292 = scmp.lt.s32.totalorder %s20, 3
      %p293 = pnand %p291, %p292
      %p294 = pneg %p293
      // Predicated region
      $region53: #{tpu_custom_call.1} parent=5 // pred_check
        _
      $region54: #{tpu_custom_call.1} parent=5 // pred_check_branch
        %296 = sbr.rel (%p293) target = $region56
      $region55: #{tpu_custom_call.1} parent=5 // pred_region
        %s297 = ssub.s32 %s20, 1
        %s298 = smul.u32 32, %s25
        %p299 = scmp.lt.s32.totalorder %s298, 63
        %s300 = scalar_select %p299, %s298, 63
        %s301 = scalar_lea.vmem %s0, %s300
        %p302 = pneg %p46
        %p303 = pneg %p43
        %p304 = pneg %p67
        %p305 = pneg %p64
        %p306 = pneg %p88
        %p307 = pneg %p85
        %p308 = pneg %p109
        %p309 = pneg %p106
        %p310 = pneg %p130
        %p311 = pneg %p127
        %p312 = pneg %p151
        %p313 = pneg %p148
        %p314 = pneg %p172
        %p315 = pneg %p169
        %p316 = pneg %p193
        %p317 = pneg %p190
        %p318 = pneg %p214
        %p319 = pneg %p211
        %p320 = pneg %p240
        %p321 = pneg %p237
        %s322 = sand.u32 %s227, 1
        %s323 = scalar_lea.sflag [#allocation4], %s322
        %s324 = sand.u32 %s227, 1
        %s325 = smul.addr %s324, 32
        %s326 = scalar_lea.vmem [#allocation3], %s325
        %s327 = smul.u32 32, %s25
        %p328 = scmp.lt.s32.totalorder %s327, 63
        %s329 = scalar_select %p328, %s327, 63
        %s330 = scalar_lea.vmem %s0, %s329
        %s331 = smul.u32 32, %s25
        %s332 = smul.u32 32, %s25
        %v333 = vld [vmem:[%s330] sm:$0xff]
        %v334 = vld [vmem:[%s330 + $0x8] sm:$0xff]
        %v335 = vld [vmem:[%s330 + $0x10] sm:$0xff]
        %v336 = vld [vmem:[%s330 + $0x18] sm:$0xff]
        %v337 = vld [vmem:[%s1] sm:$0xff]
        %v338 = vld [vmem:[%s1 + $0x8] sm:$0xff]
        %v339 = vld [vmem:[%s1 + $0x10] sm:$0xff]
        %v340 = vld [vmem:[%s1 + $0x18] sm:$0xff]
        %v341 = vld [vmem:[%s1 + $0x20] sm:$0xff]
        %v342 = vld [vmem:[%s1 + $0x28] sm:$0xff]
        %v343 = vld [vmem:[%s1 + $0x30] sm:$0xff]
        %v344 = vld [vmem:[%s1 + $0x38] sm:$0xff]
        %346 = vset.pattern.permute.xlu0 0
        %347 = vperm.xlu0 %346, %v337
        %v348 = vpop.permute.xlu0 %347
        %351 = vset.pattern.permute.xlu0 0
        %352 = vperm.xlu0 %351, %v338
        %v353 = vpop.permute.xlu0 %352
        %356 = vset.pattern.permute.xlu0 0
        %357 = vperm.xlu0 %356, %v339
        %v358 = vpop.permute.xlu0 %357
        %361 = vset.pattern.permute.xlu0 0
        %362 = vperm.xlu0 %361, %v340
        %v363 = vpop.permute.xlu0 %362
        %366 = vset.pattern.permute.xlu0 0
        %367 = vperm.xlu0 %366, %v341
        %v368 = vpop.permute.xlu0 %367
        %371 = vset.pattern.permute.xlu0 0
        %372 = vperm.xlu0 %371, %v342
        %v373 = vpop.permute.xlu0 %372
        %376 = vset.pattern.permute.xlu0 0
        %377 = vperm.xlu0 %376, %v343
        %v378 = vpop.permute.xlu0 %377
        %381 = vset.pattern.permute.xlu0 0
        %382 = vperm.xlu0 %381, %v344
        %v383 = vpop.permute.xlu0 %382
        %v389 = vperm.slane %v333, 0
        %v390 = vperm.slane %v333, 1
        %v391 = vperm.slane %v333, 2
        %v392 = vperm.slane %v333, 3
        %v393 = vperm.slane %v333, 4
        %v394 = vperm.slane %v333, 5
        %v395 = vperm.slane %v333, 6
        %v396 = vperm.slane %v333, 7
        %v397 = vperm.slane %v334, 0
        %v398 = vperm.slane %v334, 1
        %v399 = vperm.slane %v334, 2
        %v400 = vperm.slane %v334, 3
        %v401 = vperm.slane %v334, 4
        %v402 = vperm.slane %v334, 5
        %v403 = vperm.slane %v334, 6
        %v404 = vperm.slane %v334, 7
        %v405 = vperm.slane %v335, 0
        %v406 = vperm.slane %v335, 1
        %v407 = vperm.slane %v335, 2
        %v408 = vperm.slane %v335, 3
        %v409 = vperm.slane %v335, 4
        %v410 = vperm.slane %v335, 5
        %v411 = vperm.slane %v335, 6
        %v412 = vperm.slane %v335, 7
        %v413 = vperm.slane %v336, 0
        %v414 = vperm.slane %v336, 1
        %v415 = vperm.slane %v336, 2
        %v416 = vperm.slane %v336, 3
        %v417 = vperm.slane %v336, 4
        %v418 = vperm.slane %v336, 5
        %v419 = vperm.slane %v336, 6
        %v420 = vperm.slane %v336, 7
        %v453 = vmul.f32 %v348, %v389
        %v454 = vmul.f32 %v348, %v390
        %v455 = vmul.f32 %v348, %v391
        %v456 = vmul.f32 %v348, %v392
        %v457 = vmul.f32 %v348, %v393
        %v458 = vmul.f32 %v348, %v394
        %v459 = vmul.f32 %v348, %v395
        %v460 = vmul.f32 %v348, %v396
        %v461 = vmul.f32 %v348, %v397
        %v462 = vmul.f32 %v348, %v398
        %v463 = vmul.f32 %v348, %v399
        %v464 = vmul.f32 %v348, %v400
        %v465 = vmul.f32 %v348, %v401
        %v466 = vmul.f32 %v348, %v402
        %v467 = vmul.f32 %v348, %v403
        %v468 = vmul.f32 %v348, %v404
        %v469 = vmul.f32 %v348, %v405
        %v470 = vmul.f32 %v348, %v406
        %v471 = vmul.f32 %v348, %v407
        %v472 = vmul.f32 %v348, %v408
        %v473 = vmul.f32 %v348, %v409
        %v474 = vmul.f32 %v348, %v410
        %v475 = vmul.f32 %v348, %v411
        %v476 = vmul.f32 %v348, %v412
        %v477 = vmul.f32 %v348, %v413
        %v478 = vmul.f32 %v348, %v414
        %v479 = vmul.f32 %v348, %v415
        %v480 = vmul.f32 %v348, %v416
        %v481 = vmul.f32 %v348, %v417
        %v482 = vmul.f32 %v348, %v418
        %v483 = vmul.f32 %v348, %v419
        %v484 = vmul.f32 %v348, %v420
        %v485 = vmul.f32 %v353, %v389
        %v486 = vmul.f32 %v353, %v390
        %v487 = vmul.f32 %v353, %v391
        %v488 = vmul.f32 %v353, %v392
        %v489 = vmul.f32 %v353, %v393
        %v490 = vmul.f32 %v353, %v394
        %v491 = vmul.f32 %v353, %v395
        %v492 = vmul.f32 %v353, %v396
        %v493 = vmul.f32 %v353, %v397
        %v494 = vmul.f32 %v353, %v398
        %v495 = vmul.f32 %v353, %v399
        %v496 = vmul.f32 %v353, %v400
        %v497 = vmul.f32 %v353, %v401
        %v498 = vmul.f32 %v353, %v402
        %v499 = vmul.f32 %v353, %v403
        %v500 = vmul.f32 %v353, %v404
        %v501 = vmul.f32 %v353, %v405
        %v502 = vmul.f32 %v353, %v406
        %v503 = vmul.f32 %v353, %v407
        %v504 = vmul.f32 %v353, %v408
        %v505 = vmul.f32 %v353, %v409
        %v506 = vmul.f32 %v353, %v410
        %v507 = vmul.f32 %v353, %v411
        %v508 = vmul.f32 %v353, %v412
        %v509 = vmul.f32 %v353, %v413
        %v510 = vmul.f32 %v353, %v414
        %v511 = vmul.f32 %v353, %v415
        %v512 = vmul.f32 %v353, %v416
        %v513 = vmul.f32 %v353, %v417
        %v514 = vmul.f32 %v353, %v418
        %v515 = vmul.f32 %v353, %v419
        %v516 = vmul.f32 %v353, %v420
        %v517 = vmul.f32 %v358, %v389
        %v518 = vmul.f32 %v358, %v390
        %v519 = vmul.f32 %v358, %v391
        %v520 = vmul.f32 %v358, %v392
        %v521 = vmul.f32 %v358, %v393
        %v522 = vmul.f32 %v358, %v394
        %v523 = vmul.f32 %v358, %v395
        %v524 = vmul.f32 %v358, %v396
        %v525 = vmul.f32 %v358, %v397
        %v526 = vmul.f32 %v358, %v398
        %v527 = vmul.f32 %v358, %v399
        %v528 = vmul.f32 %v358, %v400
        %v529 = vmul.f32 %v358, %v401
        %v530 = vmul.f32 %v358, %v402
        %v531 = vmul.f32 %v358, %v403
        %v532 = vmul.f32 %v358, %v404
        %v533 = vmul.f32 %v358, %v405
        %v534 = vmul.f32 %v358, %v406
        %v535 = vmul.f32 %v358, %v407
        %v536 = vmul.f32 %v358, %v408
        %v537 = vmul.f32 %v358, %v409
        %v538 = vmul.f32 %v358, %v410
        %v539 = vmul.f32 %v358, %v411
        %v540 = vmul.f32 %v358, %v412
        %v541 = vmul.f32 %v358, %v413
        %v542 = vmul.f32 %v358, %v414
        %v543 = vmul.f32 %v358, %v415
        %v544 = vmul.f32 %v358, %v416
        %v545 = vmul.f32 %v358, %v417
        %v546 = vmul.f32 %v358, %v418
        %v547 = vmul.f32 %v358, %v419
        %v548 = vmul.f32 %v358, %v420
        %v549 = vmul.f32 %v363, %v389
        %v550 = vmul.f32 %v363, %v390
        %v551 = vmul.f32 %v363, %v391
        %v552 = vmul.f32 %v363, %v392
        %v553 = vmul.f32 %v363, %v393
        %v554 = vmul.f32 %v363, %v394
        %v555 = vmul.f32 %v363, %v395
        %v556 = vmul.f32 %v363, %v396
        %v557 = vmul.f32 %v363, %v397
        %v558 = vmul.f32 %v363, %v398
        %v559 = vmul.f32 %v363, %v399
        %v560 = vmul.f32 %v363, %v400
        %v561 = vmul.f32 %v363, %v401
        %v562 = vmul.f32 %v363, %v402
        %v563 = vmul.f32 %v363, %v403
        %v564 = vmul.f32 %v363, %v404
        %v565 = vmul.f32 %v363, %v405
        %v566 = vmul.f32 %v363, %v406
        %v567 = vmul.f32 %v363, %v407
        %v568 = vmul.f32 %v363, %v408
        %v569 = vmul.f32 %v363, %v409
        %v570 = vmul.f32 %v363, %v410
        %v571 = vmul.f32 %v363, %v411
        %v572 = vmul.f32 %v363, %v412
        %v573 = vmul.f32 %v363, %v413
        %v574 = vmul.f32 %v363, %v414
        %v575 = vmul.f32 %v363, %v415
        %v576 = vmul.f32 %v363, %v416
        %v577 = vmul.f32 %v363, %v417
        %v578 = vmul.f32 %v363, %v418
        %v579 = vmul.f32 %v363, %v419
        %v580 = vmul.f32 %v363, %v420
        %v581 = vmul.f32 %v368, %v389
        %v582 = vmul.f32 %v368, %v390
        %v583 = vmul.f32 %v368, %v391
        %v584 = vmul.f32 %v368, %v392
        %v585 = vmul.f32 %v368, %v393
        %v586 = vmul.f32 %v368, %v394
        %v587 = vmul.f32 %v368, %v395
        %v588 = vmul.f32 %v368, %v396
        %v589 = vmul.f32 %v368, %v397
        %v590 = vmul.f32 %v368, %v398
        %v591 = vmul.f32 %v368, %v399
        %v592 = vmul.f32 %v368, %v400
        %v593 = vmul.f32 %v368, %v401
        %v594 = vmul.f32 %v368, %v402
        %v595 = vmul.f32 %v368, %v403
        %v596 = vmul.f32 %v368, %v404
        %v597 = vmul.f32 %v368, %v405
        %v598 = vmul.f32 %v368, %v406
        %v599 = vmul.f32 %v368, %v407
        %v600 = vmul.f32 %v368, %v408
        %v601 = vmul.f32 %v368, %v409
        %v602 = vmul.f32 %v368, %v410
        %v603 = vmul.f32 %v368, %v411
        %v604 = vmul.f32 %v368, %v412
        %v605 = vmul.f32 %v368, %v413
        %v606 = vmul.f32 %v368, %v414
        %v607 = vmul.f32 %v368, %v415
        %v608 = vmul.f32 %v368, %v416
        %v609 = vmul.f32 %v368, %v417
        %v610 = vmul.f32 %v368, %v418
        %v611 = vmul.f32 %v368, %v419
        %v612 = vmul.f32 %v368, %v420
        %v613 = vmul.f32 %v373, %v389
        %v614 = vmul.f32 %v373, %v390
        %v615 = vmul.f32 %v373, %v391
        %v616 = vmul.f32 %v373, %v392
        %v617 = vmul.f32 %v373, %v393
        %v618 = vmul.f32 %v373, %v394
        %v619 = vmul.f32 %v373, %v395
        %v620 = vmul.f32 %v373, %v396
        %v621 = vmul.f32 %v373, %v397
        %v622 = vmul.f32 %v373, %v398
        %v623 = vmul.f32 %v373, %v399
        %v624 = vmul.f32 %v373, %v400
        %v625 = vmul.f32 %v373, %v401
        %v626 = vmul.f32 %v373, %v402
        %v627 = vmul.f32 %v373, %v403
        %v628 = vmul.f32 %v373, %v404
        %v629 = vmul.f32 %v373, %v405
        %v630 = vmul.f32 %v373, %v406
        %v631 = vmul.f32 %v373, %v407
        %v632 = vmul.f32 %v373, %v408
        %v633 = vmul.f32 %v373, %v409
        %v634 = vmul.f32 %v373, %v410
        %v635 = vmul.f32 %v373, %v411
        %v636 = vmul.f32 %v373, %v412
        %v637 = vmul.f32 %v373, %v413
        %v638 = vmul.f32 %v373, %v414
        %v639 = vmul.f32 %v373, %v415
        %v640 = vmul.f32 %v373, %v416
        %v641 = vmul.f32 %v373, %v417
        %v642 = vmul.f32 %v373, %v418
        %v643 = vmul.f32 %v373, %v419
        %v644 = vmul.f32 %v373, %v420
        %v645 = vmul.f32 %v378, %v389
        %v646 = vmul.f32 %v378, %v390
        %v647 = vmul.f32 %v378, %v391
        %v648 = vmul.f32 %v378, %v392
        %v649 = vmul.f32 %v378, %v393
        %v650 = vmul.f32 %v378, %v394
        %v651 = vmul.f32 %v378, %v395
        %v652 = vmul.f32 %v378, %v396
        %v653 = vmul.f32 %v378, %v397
        %v654 = vmul.f32 %v378, %v398
        %v655 = vmul.f32 %v378, %v399
        %v656 = vmul.f32 %v378, %v400
        %v657 = vmul.f32 %v378, %v401
        %v658 = vmul.f32 %v378, %v402
        %v659 = vmul.f32 %v378, %v403
        %v660 = vmul.f32 %v378, %v404
        %v661 = vmul.f32 %v378, %v405
        %v662 = vmul.f32 %v378, %v406
        %v663 = vmul.f32 %v378, %v407
        %v664 = vmul.f32 %v378, %v408
        %v665 = vmul.f32 %v378, %v409
        %v666 = vmul.f32 %v378, %v410
        %v667 = vmul.f32 %v378, %v411
        %v668 = vmul.f32 %v378, %v412
        %v669 = vmul.f32 %v378, %v413
        %v670 = vmul.f32 %v378, %v414
        %v671 = vmul.f32 %v378, %v415
        %v672 = vmul.f32 %v378, %v416
        %v673 = vmul.f32 %v378, %v417
        %v674 = vmul.f32 %v378, %v418
        %v675 = vmul.f32 %v378, %v419
        %v676 = vmul.f32 %v378, %v420
        %v677 = vmul.f32 %v383, %v389
        %v678 = vmul.f32 %v383, %v390
        %v679 = vmul.f32 %v383, %v391
        %v680 = vmul.f32 %v383, %v392
        %v681 = vmul.f32 %v383, %v393
        %v682 = vmul.f32 %v383, %v394
        %v683 = vmul.f32 %v383, %v395
        %v684 = vmul.f32 %v383, %v396
        %v685 = vmul.f32 %v383, %v397
        %v686 = vmul.f32 %v383, %v398
        %v687 = vmul.f32 %v383, %v399
        %v688 = vmul.f32 %v383, %v400
        %v689 = vmul.f32 %v383, %v401
        %v690 = vmul.f32 %v383, %v402
        %v691 = vmul.f32 %v383, %v403
        %v692 = vmul.f32 %v383, %v404
        %v693 = vmul.f32 %v383, %v405
        %v694 = vmul.f32 %v383, %v406
        %v695 = vmul.f32 %v383, %v407
        %v696 = vmul.f32 %v383, %v408
        %v697 = vmul.f32 %v383, %v409
        %v698 = vmul.f32 %v383, %v410
        %v699 = vmul.f32 %v383, %v411
        %v700 = vmul.f32 %v383, %v412
        %v701 = vmul.f32 %v383, %v413
        %v702 = vmul.f32 %v383, %v414
        %v703 = vmul.f32 %v383, %v415
        %v704 = vmul.f32 %v383, %v416
        %v705 = vmul.f32 %v383, %v417
        %v706 = vmul.f32 %v383, %v418
        %v707 = vmul.f32 %v383, %v419
        %v708 = vmul.f32 %v383, %v420
        %v709 = vld [vmem:[%s2] sm:$0xff]
        %v710 = vld [vmem:[%s2 + $0x8] sm:$0xff]
        %v711 = vld [vmem:[%s2 + $0x10] sm:$0xff]
        %v712 = vld [vmem:[%s2 + $0x18] sm:$0xff]
        %v713 = vld [vmem:[%s2 + $0x20] sm:$0xff]
        %v714 = vld [vmem:[%s2 + $0x28] sm:$0xff]
        %v715 = vld [vmem:[%s2 + $0x30] sm:$0xff]
        %v716 = vld [vmem:[%s2 + $0x38] sm:$0xff]
        %718 = vset.pattern.permute.xlu0 0
        %719 = vperm.xlu0 %718, %v709
        %v720 = vpop.permute.xlu0 %719
        %723 = vset.pattern.permute.xlu0 0
        %724 = vperm.xlu0 %723, %v710
        %v725 = vpop.permute.xlu0 %724
        %728 = vset.pattern.permute.xlu0 0
        %729 = vperm.xlu0 %728, %v711
        %v730 = vpop.permute.xlu0 %729
        %733 = vset.pattern.permute.xlu0 0
        %734 = vperm.xlu0 %733, %v712
        %v735 = vpop.permute.xlu0 %734
        %738 = vset.pattern.permute.xlu0 0
        %739 = vperm.xlu0 %738, %v713
        %v740 = vpop.permute.xlu0 %739
        %743 = vset.pattern.permute.xlu0 0
        %744 = vperm.xlu0 %743, %v714
        %v745 = vpop.permute.xlu0 %744
        %748 = vset.pattern.permute.xlu0 0
        %749 = vperm.xlu0 %748, %v715
        %v750 = vpop.permute.xlu0 %749
        %753 = vset.pattern.permute.xlu0 0
        %754 = vperm.xlu0 %753, %v716
        %v755 = vpop.permute.xlu0 %754
        %v757 = vadd.f32 %v453, %v720
        %v758 = vadd.f32 %v454, %v720
        %v759 = vadd.f32 %v455, %v720
        %v760 = vadd.f32 %v456, %v720
        %v761 = vadd.f32 %v457, %v720
        %v762 = vadd.f32 %v458, %v720
        %v763 = vadd.f32 %v459, %v720
        %v764 = vadd.f32 %v460, %v720
        %v765 = vadd.f32 %v461, %v720
        %v766 = vadd.f32 %v462, %v720
        %v767 = vadd.f32 %v463, %v720
        %v768 = vadd.f32 %v464, %v720
        %v769 = vadd.f32 %v465, %v720
        %v770 = vadd.f32 %v466, %v720
        %v771 = vadd.f32 %v467, %v720
        %v772 = vadd.f32 %v468, %v720
        %v773 = vadd.f32 %v469, %v720
        %v774 = vadd.f32 %v470, %v720
        %v775 = vadd.f32 %v471, %v720
        %v776 = vadd.f32 %v472, %v720
        %v777 = vadd.f32 %v473, %v720
        %v778 = vadd.f32 %v474, %v720
        %v779 = vadd.f32 %v475, %v720
        %v780 = vadd.f32 %v476, %v720
        %v781 = vadd.f32 %v477, %v720
        %v782 = vadd.f32 %v478, %v720
        %v783 = vadd.f32 %v479, %v720
        %v784 = vadd.f32 %v480, %v720
        %v785 = vadd.f32 %v481, %v720
        %v786 = vadd.f32 %v482, %v720
        %v787 = vadd.f32 %v483, %v720
        %v788 = vadd.f32 %v484, %v720
        %v789 = vadd.f32 %v485, %v725
        %v790 = vadd.f32 %v486, %v725
        %v791 = vadd.f32 %v487, %v725
        %v792 = vadd.f32 %v488, %v725
        %v793 = vadd.f32 %v489, %v725
        %v794 = vadd.f32 %v490, %v725
        %v795 = vadd.f32 %v491, %v725
        %v796 = vadd.f32 %v492, %v725
        %v797 = vadd.f32 %v493, %v725
        %v798 = vadd.f32 %v494, %v725
        %v799 = vadd.f32 %v495, %v725
        %v800 = vadd.f32 %v496, %v725
        %v801 = vadd.f32 %v497, %v725
        %v802 = vadd.f32 %v498, %v725
        %v803 = vadd.f32 %v499, %v725
        %v804 = vadd.f32 %v500, %v725
        %v805 = vadd.f32 %v501, %v725
        %v806 = vadd.f32 %v502, %v725
        %v807 = vadd.f32 %v503, %v725
        %v808 = vadd.f32 %v504, %v725
        %v809 = vadd.f32 %v505, %v725
        %v810 = vadd.f32 %v506, %v725
        %v811 = vadd.f32 %v507, %v725
        %v812 = vadd.f32 %v508, %v725
        %v813 = vadd.f32 %v509, %v725
        %v814 = vadd.f32 %v510, %v725
        %v815 = vadd.f32 %v511, %v725
        %v816 = vadd.f32 %v512, %v725
        %v817 = vadd.f32 %v513, %v725
        %v818 = vadd.f32 %v514, %v725
        %v819 = vadd.f32 %v515, %v725
        %v820 = vadd.f32 %v516, %v725
        %v821 = vadd.f32 %v517, %v730
        %v822 = vadd.f32 %v518, %v730
        %v823 = vadd.f32 %v519, %v730
        %v824 = vadd.f32 %v520, %v730
        %v825 = vadd.f32 %v521, %v730
        %v826 = vadd.f32 %v522, %v730
        %v827 = vadd.f32 %v523, %v730
        %v828 = vadd.f32 %v524, %v730
        %v829 = vadd.f32 %v525, %v730
        %v830 = vadd.f32 %v526, %v730
        %v831 = vadd.f32 %v527, %v730
        %v832 = vadd.f32 %v528, %v730
        %v833 = vadd.f32 %v529, %v730
        %v834 = vadd.f32 %v530, %v730
        %v835 = vadd.f32 %v531, %v730
        %v836 = vadd.f32 %v532, %v730
        %v837 = vadd.f32 %v533, %v730
        %v838 = vadd.f32 %v534, %v730
        %v839 = vadd.f32 %v535, %v730
        %v840 = vadd.f32 %v536, %v730
        %v841 = vadd.f32 %v537, %v730
        %v842 = vadd.f32 %v538, %v730
        %v843 = vadd.f32 %v539, %v730
        %v844 = vadd.f32 %v540, %v730
        %v845 = vadd.f32 %v541, %v730
        %v846 = vadd.f32 %v542, %v730
        %v847 = vadd.f32 %v543, %v730
        %v848 = vadd.f32 %v544, %v730
        %v849 = vadd.f32 %v545, %v730
        %v850 = vadd.f32 %v546, %v730
        %v851 = vadd.f32 %v547, %v730
        %v852 = vadd.f32 %v548, %v730
        %v853 = vadd.f32 %v549, %v735
        %v854 = vadd.f32 %v550, %v735
        %v855 = vadd.f32 %v551, %v735
        %v856 = vadd.f32 %v552, %v735
        %v857 = vadd.f32 %v553, %v735
        %v858 = vadd.f32 %v554, %v735
        %v859 = vadd.f32 %v555, %v735
        %v860 = vadd.f32 %v556, %v735
        %v861 = vadd.f32 %v557, %v735
        %v862 = vadd.f32 %v558, %v735
        %v863 = vadd.f32 %v559, %v735
        %v864 = vadd.f32 %v560, %v735
        %v865 = vadd.f32 %v561, %v735
        %v866 = vadd.f32 %v562, %v735
        %v867 = vadd.f32 %v563, %v735
        %v868 = vadd.f32 %v564, %v735
        %v869 = vadd.f32 %v565, %v735
        %v870 = vadd.f32 %v566, %v735
        %v871 = vadd.f32 %v567, %v735
        %v872 = vadd.f32 %v568, %v735
        %v873 = vadd.f32 %v569, %v735
        %v874 = vadd.f32 %v570, %v735
        %v875 = vadd.f32 %v571, %v735
        %v876 = vadd.f32 %v572, %v735
        %v877 = vadd.f32 %v573, %v735
        %v878 = vadd.f32 %v574, %v735
        %v879 = vadd.f32 %v575, %v735
        %v880 = vadd.f32 %v576, %v735
        %v881 = vadd.f32 %v577, %v735
        %v882 = vadd.f32 %v578, %v735
        %v883 = vadd.f32 %v579, %v735
        %v884 = vadd.f32 %v580, %v735
        %v885 = vadd.f32 %v581, %v740
        %v886 = vadd.f32 %v582, %v740
        %v887 = vadd.f32 %v583, %v740
        %v888 = vadd.f32 %v584, %v740
        %v889 = vadd.f32 %v585, %v740
        %v890 = vadd.f32 %v586, %v740
        %v891 = vadd.f32 %v587, %v740
        %v892 = vadd.f32 %v588, %v740
        %v893 = vadd.f32 %v589, %v740
        %v894 = vadd.f32 %v590, %v740
        %v895 = vadd.f32 %v591, %v740
        %v896 = vadd.f32 %v592, %v740
        %v897 = vadd.f32 %v593, %v740
        %v898 = vadd.f32 %v594, %v740
        %v899 = vadd.f32 %v595, %v740
        %v900 = vadd.f32 %v596, %v740
        %v901 = vadd.f32 %v597, %v740
        %v902 = vadd.f32 %v598, %v740
        %v903 = vadd.f32 %v599, %v740
        %v904 = vadd.f32 %v600, %v740
        %v905 = vadd.f32 %v601, %v740
        %v906 = vadd.f32 %v602, %v740
        %v907 = vadd.f32 %v603, %v740
        %v908 = vadd.f32 %v604, %v740
        %v909 = vadd.f32 %v605, %v740
        %v910 = vadd.f32 %v606, %v740
        %v911 = vadd.f32 %v607, %v740
        %v912 = vadd.f32 %v608, %v740
        %v913 = vadd.f32 %v609, %v740
        %v914 = vadd.f32 %v610, %v740
        %v915 = vadd.f32 %v611, %v740
        %v916 = vadd.f32 %v612, %v740
        %v917 = vadd.f32 %v613, %v745
        %v918 = vadd.f32 %v614, %v745
        %v919 = vadd.f32 %v615, %v745
        %v920 = vadd.f32 %v616, %v745
        %v921 = vadd.f32 %v617, %v745
        %v922 = vadd.f32 %v618, %v745
        %v923 = vadd.f32 %v619, %v745
        %v924 = vadd.f32 %v620, %v745
        %v925 = vadd.f32 %v621, %v745
        %v926 = vadd.f32 %v622, %v745
        %v927 = vadd.f32 %v623, %v745
        %v928 = vadd.f32 %v624, %v745
        %v929 = vadd.f32 %v625, %v745
        %v930 = vadd.f32 %v626, %v745
        %v931 = vadd.f32 %v627, %v745
        %v932 = vadd.f32 %v628, %v745
        %v933 = vadd.f32 %v629, %v745
        %v934 = vadd.f32 %v630, %v745
        %v935 = vadd.f32 %v631, %v745
        %v936 = vadd.f32 %v632, %v745
        %v937 = vadd.f32 %v633, %v745
        %v938 = vadd.f32 %v634, %v745
        %v939 = vadd.f32 %v635, %v745
        %v940 = vadd.f32 %v636, %v745
        %v941 = vadd.f32 %v637, %v745
        %v942 = vadd.f32 %v638, %v745
        %v943 = vadd.f32 %v639, %v745
        %v944 = vadd.f32 %v640, %v745
        %v945 = vadd.f32 %v641, %v745
        %v946 = vadd.f32 %v642, %v745
        %v947 = vadd.f32 %v643, %v745
        %v948 = vadd.f32 %v644, %v745
        %v949 = vadd.f32 %v645, %v750
        %v950 = vadd.f32 %v646, %v750
        %v951 = vadd.f32 %v647, %v750
        %v952 = vadd.f32 %v648, %v750
        %v953 = vadd.f32 %v649, %v750
        %v954 = vadd.f32 %v650, %v750
        %v955 = vadd.f32 %v651, %v750
        %v956 = vadd.f32 %v652, %v750
        %v957 = vadd.f32 %v653, %v750
        %v958 = vadd.f32 %v654, %v750
        %v959 = vadd.f32 %v655, %v750
        %v960 = vadd.f32 %v656, %v750
        %v961 = vadd.f32 %v657, %v750
        %v962 = vadd.f32 %v658, %v750
        %v963 = vadd.f32 %v659, %v750
        %v964 = vadd.f32 %v660, %v750
        %v965 = vadd.f32 %v661, %v750
        %v966 = vadd.f32 %v662, %v750
        %v967 = vadd.f32 %v663, %v750
        %v968 = vadd.f32 %v664, %v750
        %v969 = vadd.f32 %v665, %v750
        %v970 = vadd.f32 %v666, %v750
        %v971 = vadd.f32 %v667, %v750
        %v972 = vadd.f32 %v668, %v750
        %v973 = vadd.f32 %v669, %v750
        %v974 = vadd.f32 %v670, %v750
        %v975 = vadd.f32 %v671, %v750
        %v976 = vadd.f32 %v672, %v750
        %v977 = vadd.f32 %v673, %v750
        %v978 = vadd.f32 %v674, %v750
        %v979 = vadd.f32 %v675, %v750
        %v980 = vadd.f32 %v676, %v750
        %v981 = vadd.f32 %v677, %v755
        %v982 = vadd.f32 %v678, %v755
        %v983 = vadd.f32 %v679, %v755
        %v984 = vadd.f32 %v680, %v755
        %v985 = vadd.f32 %v681, %v755
        %v986 = vadd.f32 %v682, %v755
        %v987 = vadd.f32 %v683, %v755
        %v988 = vadd.f32 %v684, %v755
        %v989 = vadd.f32 %v685, %v755
        %v990 = vadd.f32 %v686, %v755
        %v991 = vadd.f32 %v687, %v755
        %v992 = vadd.f32 %v688, %v755
        %v993 = vadd.f32 %v689, %v755
        %v994 = vadd.f32 %v690, %v755
        %v995 = vadd.f32 %v691, %v755
        %v996 = vadd.f32 %v692, %v755
        %v997 = vadd.f32 %v693, %v755
        %v998 = vadd.f32 %v694, %v755
        %v999 = vadd.f32 %v695, %v755
        %v1000 = vadd.f32 %v696, %v755
        %v1001 = vadd.f32 %v697, %v755
        %v1002 = vadd.f32 %v698, %v755
        %v1003 = vadd.f32 %v699, %v755
        %v1004 = vadd.f32 %v700, %v755
        %v1005 = vadd.f32 %v701, %v755
        %v1006 = vadd.f32 %v702, %v755
        %v1007 = vadd.f32 %v703, %v755
        %v1008 = vadd.f32 %v704, %v755
        %v1009 = vadd.f32 %v705, %v755
        %v1010 = vadd.f32 %v706, %v755
        %v1011 = vadd.f32 %v707, %v755
        %v1012 = vadd.f32 %v708, %v755
        %v1013 = vtanh.pop %v757
        %v1014 = vtanh.pop %v758
        %v1015 = vtanh.pop %v759
        %v1016 = vtanh.pop %v760
        %v1017 = vtanh.pop %v761
        %v1018 = vtanh.pop %v762
        %v1019 = vtanh.pop %v763
        %v1020 = vtanh.pop %v764
        %v1021 = vtanh.pop %v765
        %v1022 = vtanh.pop %v766
        %v1023 = vtanh.pop %v767
        %v1024 = vtanh.pop %v768
        %v1025 = vtanh.pop %v769
        %v1026 = vtanh.pop %v770
        %v1027 = vtanh.pop %v771
        %v1028 = vtanh.pop %v772
        %v1029 = vtanh.pop %v773
        %v1030 = vtanh.pop %v774
        %v1031 = vtanh.pop %v775
        %v1032 = vtanh.pop %v776
        %v1033 = vtanh.pop %v777
        %v1034 = vtanh.pop %v778
        %v1035 = vtanh.pop %v779
        %v1036 = vtanh.pop %v780
        %v1037 = vtanh.pop %v781
        %v1038 = vtanh.pop %v782
        %v1039 = vtanh.pop %v783
        %v1040 = vtanh.pop %v784
        %v1041 = vtanh.pop %v785
        %v1042 = vtanh.pop %v786
        %v1043 = vtanh.pop %v787
        %v1044 = vtanh.pop %v788
        %v1045 = vtanh.pop %v789
        %v1046 = vtanh.pop %v790
        %v1047 = vtanh.pop %v791
        %v1048 = vtanh.pop %v792
        %v1049 = vtanh.pop %v793
        %v1050 = vtanh.pop %v794
        %v1051 = vtanh.pop %v795
        %v1052 = vtanh.pop %v796
        %v1053 = vtanh.pop %v797
        %v1054 = vtanh.pop %v798
        %v1055 = vtanh.pop %v799
        %v1056 = vtanh.pop %v800
        %v1057 = vtanh.pop %v801
        %v1058 = vtanh.pop %v802
        %v1059 = vtanh.pop %v803
        %v1060 = vtanh.pop %v804
        %v1061 = vtanh.pop %v805
        %v1062 = vtanh.pop %v806
        %v1063 = vtanh.pop %v807
        %v1064 = vtanh.pop %v808
        %v1065 = vtanh.pop %v809
        %v1066 = vtanh.pop %v810
        %v1067 = vtanh.pop %v811
        %v1068 = vtanh.pop %v812
        %v1069 = vtanh.pop %v813
        %v1070 = vtanh.pop %v814
        %v1071 = vtanh.pop %v815
        %v1072 = vtanh.pop %v816
        %v1073 = vtanh.pop %v817
        %v1074 = vtanh.pop %v818
        %v1075 = vtanh.pop %v819
        %v1076 = vtanh.pop %v820
        %v1077 = vtanh.pop %v821
        %v1078 = vtanh.pop %v822
        %v1079 = vtanh.pop %v823
        %v1080 = vtanh.pop %v824
        %v1081 = vtanh.pop %v825
        %v1082 = vtanh.pop %v826
        %v1083 = vtanh.pop %v827
        %v1084 = vtanh.pop %v828
        %v1085 = vtanh.pop %v829
        %v1086 = vtanh.pop %v830
        %v1087 = vtanh.pop %v831
        %v1088 = vtanh.pop %v832
        %v1089 = vtanh.pop %v833
        %v1090 = vtanh.pop %v834
        %v1091 = vtanh.pop %v835
        %v1092 = vtanh.pop %v836
        %v1093 = vtanh.pop %v837
        %v1094 = vtanh.pop %v838
        %v1095 = vtanh.pop %v839
        %v1096 = vtanh.pop %v840
        %v1097 = vtanh.pop %v841
        %v1098 = vtanh.pop %v842
        %v1099 = vtanh.pop %v843
        %v1100 = vtanh.pop %v844
        %v1101 = vtanh.pop %v845
        %v1102 = vtanh.pop %v846
        %v1103 = vtanh.pop %v847
        %v1104 = vtanh.pop %v848
        %v1105 = vtanh.pop %v849
        %v1106 = vtanh.pop %v850
        %v1107 = vtanh.pop %v851
        %v1108 = vtanh.pop %v852
        %v1109 = vtanh.pop %v853
        %v1110 = vtanh.pop %v854
        %v1111 = vtanh.pop %v855
        %v1112 = vtanh.pop %v856
        %v1113 = vtanh.pop %v857
        %v1114 = vtanh.pop %v858
        %v1115 = vtanh.pop %v859
        %v1116 = vtanh.pop %v860
        %v1117 = vtanh.pop %v861
        %v1118 = vtanh.pop %v862
        %v1119 = vtanh.pop %v863
        %v1120 = vtanh.pop %v864
        %v1121 = vtanh.pop %v865
        %v1122 = vtanh.pop %v866
        %v1123 = vtanh.pop %v867
        %v1124 = vtanh.pop %v868
        %v1125 = vtanh.pop %v869
        %v1126 = vtanh.pop %v870
        %v1127 = vtanh.pop %v871
        %v1128 = vtanh.pop %v872
        %v1129 = vtanh.pop %v873
        %v1130 = vtanh.pop %v874
        %v1131 = vtanh.pop %v875
        %v1132 = vtanh.pop %v876
        %v1133 = vtanh.pop %v877
        %v1134 = vtanh.pop %v878
        %v1135 = vtanh.pop %v879
        %v1136 = vtanh.pop %v880
        %v1137 = vtanh.pop %v881
        %v1138 = vtanh.pop %v882
        %v1139 = vtanh.pop %v883
        %v1140 = vtanh.pop %v884
        %v1141 = vtanh.pop %v885
        %v1142 = vtanh.pop %v886
        %v1143 = vtanh.pop %v887
        %v1144 = vtanh.pop %v888
        %v1145 = vtanh.pop %v889
        %v1146 = vtanh.pop %v890
        %v1147 = vtanh.pop %v891
        %v1148 = vtanh.pop %v892
        %v1149 = vtanh.pop %v893
        %v1150 = vtanh.pop %v894
        %v1151 = vtanh.pop %v895
        %v1152 = vtanh.pop %v896
        %v1153 = vtanh.pop %v897
        %v1154 = vtanh.pop %v898
        %v1155 = vtanh.pop %v899
        %v1156 = vtanh.pop %v900
        %v1157 = vtanh.pop %v901
        %v1158 = vtanh.pop %v902
        %v1159 = vtanh.pop %v903
        %v1160 = vtanh.pop %v904
        %v1161 = vtanh.pop %v905
        %v1162 = vtanh.pop %v906
        %v1163 = vtanh.pop %v907
        %v1164 = vtanh.pop %v908
        %v1165 = vtanh.pop %v909
        %v1166 = vtanh.pop %v910
        %v1167 = vtanh.pop %v911
        %v1168 = vtanh.pop %v912
        %v1169 = vtanh.pop %v913
        %v1170 = vtanh.pop %v914
        %v1171 = vtanh.pop %v915
        %v1172 = vtanh.pop %v916
        %v1173 = vtanh.pop %v917
        %v1174 = vtanh.pop %v918
        %v1175 = vtanh.pop %v919
        %v1176 = vtanh.pop %v920
        %v1177 = vtanh.pop %v921
        %v1178 = vtanh.pop %v922
        %v1179 = vtanh.pop %v923
        %v1180 = vtanh.pop %v924
        %v1181 = vtanh.pop %v925
        %v1182 = vtanh.pop %v926
        %v1183 = vtanh.pop %v927
        %v1184 = vtanh.pop %v928
        %v1185 = vtanh.pop %v929
        %v1186 = vtanh.pop %v930
        %v1187 = vtanh.pop %v931
        %v1188 = vtanh.pop %v932
        %v1189 = vtanh.pop %v933
        %v1190 = vtanh.pop %v934
        %v1191 = vtanh.pop %v935
        %v1192 = vtanh.pop %v936
        %v1193 = vtanh.pop %v937
        %v1194 = vtanh.pop %v938
        %v1195 = vtanh.pop %v939
        %v1196 = vtanh.pop %v940
        %v1197 = vtanh.pop %v941
        %v1198 = vtanh.pop %v942
        %v1199 = vtanh.pop %v943
        %v1200 = vtanh.pop %v944
        %v1201 = vtanh.pop %v945
        %v1202 = vtanh.pop %v946
        %v1203 = vtanh.pop %v947
        %v1204 = vtanh.pop %v948
        %v1205 = vtanh.pop %v949
        %v1206 = vtanh.pop %v950
        %v1207 = vtanh.pop %v951
        %v1208 = vtanh.pop %v952
        %v1209 = vtanh.pop %v953
        %v1210 = vtanh.pop %v954
        %v1211 = vtanh.pop %v955
        %v1212 = vtanh.pop %v956
        %v1213 = vtanh.pop %v957
        %v1214 = vtanh.pop %v958
        %v1215 = vtanh.pop %v959
        %v1216 = vtanh.pop %v960
        %v1217 = vtanh.pop %v961
        %v1218 = vtanh.pop %v962
        %v1219 = vtanh.pop %v963
        %v1220 = vtanh.pop %v964
        %v1221 = vtanh.pop %v965
        %v1222 = vtanh.pop %v966
        %v1223 = vtanh.pop %v967
        %v1224 = vtanh.pop %v968
        %v1225 = vtanh.pop %v969
        %v1226 = vtanh.pop %v970
        %v1227 = vtanh.pop %v971
        %v1228 = vtanh.pop %v972
        %v1229 = vtanh.pop %v973
        %v1230 = vtanh.pop %v974
        %v1231 = vtanh.pop %v975
        %v1232 = vtanh.pop %v976
        %v1233 = vtanh.pop %v977
        %v1234 = vtanh.pop %v978
        %v1235 = vtanh.pop %v979
        %v1236 = vtanh.pop %v980
        %v1237 = vtanh.pop %v981
        %v1238 = vtanh.pop %v982
        %v1239 = vtanh.pop %v983
        %v1240 = vtanh.pop %v984
        %v1241 = vtanh.pop %v985
        %v1242 = vtanh.pop %v986
        %v1243 = vtanh.pop %v987
        %v1244 = vtanh.pop %v988
        %v1245 = vtanh.pop %v989
        %v1246 = vtanh.pop %v990
        %v1247 = vtanh.pop %v991
        %v1248 = vtanh.pop %v992
        %v1249 = vtanh.pop %v993
        %v1250 = vtanh.pop %v994
        %v1251 = vtanh.pop %v995
        %v1252 = vtanh.pop %v996
        %v1253 = vtanh.pop %v997
        %v1254 = vtanh.pop %v998
        %v1255 = vtanh.pop %v999
        %v1256 = vtanh.pop %v1000
        %v1257 = vtanh.pop %v1001
        %v1258 = vtanh.pop %v1002
        %v1259 = vtanh.pop %v1003
        %v1260 = vtanh.pop %v1004
        %v1261 = vtanh.pop %v1005
        %v1262 = vtanh.pop %v1006
        %v1263 = vtanh.pop %v1007
        %v1264 = vtanh.pop %v1008
        %v1265 = vtanh.pop %v1009
        %v1266 = vtanh.pop %v1010
        %v1267 = vtanh.pop %v1011
        %v1268 = vtanh.pop %v1012
        %v1269 = vld [vmem:[%s3] sm:$0xff]
        %v1270 = vld [vmem:[%s3 + $0x8] sm:$0xff]
        %v1271 = vld [vmem:[%s3 + $0x10] sm:$0xff]
        %v1272 = vld [vmem:[%s3 + $0x18] sm:$0xff]
        %v1273 = vld [vmem:[%s4] sm:$0xff]
        %v1274 = vld [vmem:[%s4 + $0x8] sm:$0xff]
        %v1275 = vld [vmem:[%s4 + $0x10] sm:$0xff]
        %v1276 = vld [vmem:[%s4 + $0x18] sm:$0xff]
        %1278 = vset.pattern.permute.xlu0 0
        %1279 = vperm.xlu0 %1278, %v1273
        %v1280 = vpop.permute.xlu0 %1279
        %1283 = vset.pattern.permute.xlu0 0
        %1284 = vperm.xlu0 %1283, %v1274
        %v1285 = vpop.permute.xlu0 %1284
        %1288 = vset.pattern.permute.xlu0 0
        %1289 = vperm.xlu0 %1288, %v1275
        %v1290 = vpop.permute.xlu0 %1289
        %1293 = vset.pattern.permute.xlu0 0
        %1294 = vperm.xlu0 %1293, %v1276
        %v1295 = vpop.permute.xlu0 %1294
        %vm1297 = vcmask 523264
        %v1299 = vsel %vm1297, %v1269, 0
        %v1302 = vsel %vm1297, %v1270, 0
        %v1305 = vsel %vm1297, %v1271, 0
        %v1308 = vsel %vm1297, %v1272, 0
        %1310 = vmatpush.msra.mxu0 0.0
        %1311 = vmatpush.msra.mxu0 0.0
        %1312 = vmatpush.msra.mxu0 0.0
        %1313 = vmatpush.msra.mxu0 0.0
        %1314 = vmatpush.msra.mxu0 0.0
        %1315 = vmatpush.msra.mxu0 0.0
        %1316 = vmatpush.msra.mxu0 0.0
        %1317 = vmatpush.msra.mxu0 0.0
        %1318 = vmatpush.msra.mxu0 %v1237
        %1319 = vmatpush.msra.mxu0 %v1205
        %1320 = vmatpush.msra.mxu0 %v1173
        %1321 = vmatpush.msra.mxu0 %v1141
        %1322 = vmatpush.msra.mxu0 %v1109
        %1323 = vmatpush.msra.mxu0 %v1077
        %1324 = vmatpush.msra.mxu0 %v1045
        %1325 = vmatpush.msra.mxu0 %v1013
        %1326 = vmatmul.f32.gmra.mxu0 %v1299
        %v1327 = vpop.f32.mrf.mxu0
        %v1328 = vadd.f32 %v1280, %v1327
        %1329 = vmatmul.f32.gmra.mxu0 %v1302
        %v1330 = vpop.f32.mrf.mxu0
        %v1331 = vadd.f32 %v1285, %v1330
        %1332 = vmatmul.f32.gmra.mxu0 %v1305
        %v1333 = vpop.f32.mrf.mxu0
        %v1334 = vadd.f32 %v1290, %v1333
        %1335 = vmatmul.f32.gmra.mxu0 %v1308
        %v1336 = vpop.f32.mrf.mxu0
        %v1337 = vadd.f32 %v1295, %v1336
        %1338 = vdwg.mxu0
        %1339 = vmatpush.msra.mxu0 0.0
        %1340 = vmatpush.msra.mxu0 0.0
        %1341 = vmatpush.msra.mxu0 0.0
        %1342 = vmatpush.msra.mxu0 0.0
        %1343 = vmatpush.msra.mxu0 0.0
        %1344 = vmatpush.msra.mxu0 0.0
        %1345 = vmatpush.msra.mxu0 0.0
        %1346 = vmatpush.msra.mxu0 0.0
        %1347 = vmatpush.msra.mxu0 %v1238
        %1348 = vmatpush.msra.mxu0 %v1206
        %1349 = vmatpush.msra.mxu0 %v1174
        %1350 = vmatpush.msra.mxu0 %v1142
        %1351 = vmatpush.msra.mxu0 %v1110
        %1352 = vmatpush.msra.mxu0 %v1078
        %1353 = vmatpush.msra.mxu0 %v1046
        %1354 = vmatpush.msra.mxu0 %v1014
        %1355 = vmatmul.f32.gmra.mxu0 %v1299
        %v1356 = vpop.f32.mrf.mxu0
        %v1357 = vadd.f32 %v1280, %v1356
        %1358 = vmatmul.f32.gmra.mxu0 %v1302
        %v1359 = vpop.f32.mrf.mxu0
        %v1360 = vadd.f32 %v1285, %v1359
        %1361 = vmatmul.f32.gmra.mxu0 %v1305
        %v1362 = vpop.f32.mrf.mxu0
        %v1363 = vadd.f32 %v1290, %v1362
        %1364 = vmatmul.f32.gmra.mxu0 %v1308
        %v1365 = vpop.f32.mrf.mxu0
        %v1366 = vadd.f32 %v1295, %v1365
        %1367 = vdwg.mxu0
        %1368 = vmatpush.msra.mxu0 0.0
        %1369 = vmatpush.msra.mxu0 0.0
        %1370 = vmatpush.msra.mxu0 0.0
        %1371 = vmatpush.msra.mxu0 0.0
        %1372 = vmatpush.msra.mxu0 0.0
        %1373 = vmatpush.msra.mxu0 0.0
        %1374 = vmatpush.msra.mxu0 0.0
        %1375 = vmatpush.msra.mxu0 0.0
        %1376 = vmatpush.msra.mxu0 %v1239
        %1377 = vmatpush.msra.mxu0 %v1207
        %1378 = vmatpush.msra.mxu0 %v1175
        %1379 = vmatpush.msra.mxu0 %v1143
        %1380 = vmatpush.msra.mxu0 %v1111
        %1381 = vmatpush.msra.mxu0 %v1079
        %1382 = vmatpush.msra.mxu0 %v1047
        %1383 = vmatpush.msra.mxu0 %v1015
        %1384 = vmatmul.f32.gmra.mxu0 %v1299
        %v1385 = vpop.f32.mrf.mxu0
        %v1386 = vadd.f32 %v1280, %v1385
        %1387 = vmatmul.f32.gmra.mxu0 %v1302
        %v1388 = vpop.f32.mrf.mxu0
        %v1389 = vadd.f32 %v1285, %v1388
        %1390 = vmatmul.f32.gmra.mxu0 %v1305
        %v1391 = vpop.f32.mrf.mxu0
        %v1392 = vadd.f32 %v1290, %v1391
        %1393 = vmatmul.f32.gmra.mxu0 %v1308
        %v1394 = vpop.f32.mrf.mxu0
        %v1395 = vadd.f32 %v1295, %v1394
        %1396 = vdwg.mxu0
        %1397 = vmatpush.msra.mxu0 0.0
        %1398 = vmatpush.msra.mxu0 0.0
        %1399 = vmatpush.msra.mxu0 0.0
        %1400 = vmatpush.msra.mxu0 0.0
        %1401 = vmatpush.msra.mxu0 0.0
        %1402 = vmatpush.msra.mxu0 0.0
        %1403 = vmatpush.msra.mxu0 0.0
        %1404 = vmatpush.msra.mxu0 0.0
        %1405 = vmatpush.msra.mxu0 %v1240
        %1406 = vmatpush.msra.mxu0 %v1208
        %1407 = vmatpush.msra.mxu0 %v1176
        %1408 = vmatpush.msra.mxu0 %v1144
        %1409 = vmatpush.msra.mxu0 %v1112
        %1410 = vmatpush.msra.mxu0 %v1080
        %1411 = vmatpush.msra.mxu0 %v1048
        %1412 = vmatpush.msra.mxu0 %v1016
        %1413 = vmatmul.f32.gmra.mxu0 %v1299
        %v1414 = vpop.f32.mrf.mxu0
        %v1415 = vadd.f32 %v1280, %v1414
        %1416 = vmatmul.f32.gmra.mxu0 %v1302
        %v1417 = vpop.f32.mrf.mxu0
        %v1418 = vadd.f32 %v1285, %v1417
        %1419 = vmatmul.f32.gmra.mxu0 %v1305
        %v1420 = vpop.f32.mrf.mxu0
        %v1421 = vadd.f32 %v1290, %v1420
        %1422 = vmatmul.f32.gmra.mxu0 %v1308
        %v1423 = vpop.f32.mrf.mxu0
        %v1424 = vadd.f32 %v1295, %v1423
        %1425 = vdwg.mxu0
        %1426 = vmatpush.msra.mxu0 0.0
        %1427 = vmatpush.msra.mxu0 0.0
        %1428 = vmatpush.msra.mxu0 0.0
        %1429 = vmatpush.msra.mxu0 0.0
        %1430 = vmatpush.msra.mxu0 0.0
        %1431 = vmatpush.msra.mxu0 0.0
        %1432 = vmatpush.msra.mxu0 0.0
        %1433 = vmatpush.msra.mxu0 0.0
        %1434 = vmatpush.msra.mxu0 %v1241
        %1435 = vmatpush.msra.mxu0 %v1209
        %1436 = vmatpush.msra.mxu0 %v1177
        %1437 = vmatpush.msra.mxu0 %v1145
        %1438 = vmatpush.msra.mxu0 %v1113
        %1439 = vmatpush.msra.mxu0 %v1081
        %1440 = vmatpush.msra.mxu0 %v1049
        %1441 = vmatpush.msra.mxu0 %v1017
        %1442 = vmatmul.f32.gmra.mxu0 %v1299
        %v1443 = vpop.f32.mrf.mxu0
        %v1444 = vadd.f32 %v1280, %v1443
        %1445 = vmatmul.f32.gmra.mxu0 %v1302
        %v1446 = vpop.f32.mrf.mxu0
        %v1447 = vadd.f32 %v1285, %v1446
        %1448 = vmatmul.f32.gmra.mxu0 %v1305
        %v1449 = vpop.f32.mrf.mxu0
        %v1450 = vadd.f32 %v1290, %v1449
        %1451 = vmatmul.f32.gmra.mxu0 %v1308
        %v1452 = vpop.f32.mrf.mxu0
        %v1453 = vadd.f32 %v1295, %v1452
        %1454 = vdwg.mxu0
        %1455 = vmatpush.msra.mxu0 0.0
        %1456 = vmatpush.msra.mxu0 0.0
        %1457 = vmatpush.msra.mxu0 0.0
        %1458 = vmatpush.msra.mxu0 0.0
        %1459 = vmatpush.msra.mxu0 0.0
        %1460 = vmatpush.msra.mxu0 0.0
        %1461 = vmatpush.msra.mxu0 0.0
        %1462 = vmatpush.msra.mxu0 0.0
        %1463 = vmatpush.msra.mxu0 %v1242
        %1464 = vmatpush.msra.mxu0 %v1210
        %1465 = vmatpush.msra.mxu0 %v1178
        %1466 = vmatpush.msra.mxu0 %v1146
        %1467 = vmatpush.msra.mxu0 %v1114
        %1468 = vmatpush.msra.mxu0 %v1082
        %1469 = vmatpush.msra.mxu0 %v1050
        %1470 = vmatpush.msra.mxu0 %v1018
        %1471 = vmatmul.f32.gmra.mxu0 %v1299
        %v1472 = vpop.f32.mrf.mxu0
        %v1473 = vadd.f32 %v1280, %v1472
        %1474 = vmatmul.f32.gmra.mxu0 %v1302
        %v1475 = vpop.f32.mrf.mxu0
        %v1476 = vadd.f32 %v1285, %v1475
        %1477 = vmatmul.f32.gmra.mxu0 %v1305
        %v1478 = vpop.f32.mrf.mxu0
        %v1479 = vadd.f32 %v1290, %v1478
        %1480 = vmatmul.f32.gmra.mxu0 %v1308
        %v1481 = vpop.f32.mrf.mxu0
        %v1482 = vadd.f32 %v1295, %v1481
        %1483 = vdwg.mxu0
        %1484 = vmatpush.msra.mxu0 0.0
        %1485 = vmatpush.msra.mxu0 0.0
        %1486 = vmatpush.msra.mxu0 0.0
        %1487 = vmatpush.msra.mxu0 0.0
        %1488 = vmatpush.msra.mxu0 0.0
        %1489 = vmatpush.msra.mxu0 0.0
        %1490 = vmatpush.msra.mxu0 0.0
        %1491 = vmatpush.msra.mxu0 0.0
        %1492 = vmatpush.msra.mxu0 %v1243
        %1493 = vmatpush.msra.mxu0 %v1211
        %1494 = vmatpush.msra.mxu0 %v1179
        %1495 = vmatpush.msra.mxu0 %v1147
        %1496 = vmatpush.msra.mxu0 %v1115
        %1497 = vmatpush.msra.mxu0 %v1083
        %1498 = vmatpush.msra.mxu0 %v1051
        %1499 = vmatpush.msra.mxu0 %v1019
        %1500 = vmatmul.f32.gmra.mxu0 %v1299
        %v1501 = vpop.f32.mrf.mxu0
        %v1502 = vadd.f32 %v1280, %v1501
        %1503 = vmatmul.f32.gmra.mxu0 %v1302
        %v1504 = vpop.f32.mrf.mxu0
        %v1505 = vadd.f32 %v1285, %v1504
        %1506 = vmatmul.f32.gmra.mxu0 %v1305
        %v1507 = vpop.f32.mrf.mxu0
        %v1508 = vadd.f32 %v1290, %v1507
        %1509 = vmatmul.f32.gmra.mxu0 %v1308
        %v1510 = vpop.f32.mrf.mxu0
        %v1511 = vadd.f32 %v1295, %v1510
        %1512 = vdwg.mxu0
        %1513 = vmatpush.msra.mxu0 0.0
        %1514 = vmatpush.msra.mxu0 0.0
        %1515 = vmatpush.msra.mxu0 0.0
        %1516 = vmatpush.msra.mxu0 0.0
        %1517 = vmatpush.msra.mxu0 0.0
        %1518 = vmatpush.msra.mxu0 0.0
        %1519 = vmatpush.msra.mxu0 0.0
        %1520 = vmatpush.msra.mxu0 0.0
        %1521 = vmatpush.msra.mxu0 %v1244
        %1522 = vmatpush.msra.mxu0 %v1212
        %1523 = vmatpush.msra.mxu0 %v1180
        %1524 = vmatpush.msra.mxu0 %v1148
        %1525 = vmatpush.msra.mxu0 %v1116
        %1526 = vmatpush.msra.mxu0 %v1084
        %1527 = vmatpush.msra.mxu0 %v1052
        %1528 = vmatpush.msra.mxu0 %v1020
        %1529 = vmatmul.f32.gmra.mxu0 %v1299
        %v1530 = vpop.f32.mrf.mxu0
        %v1531 = vadd.f32 %v1280, %v1530
        %1532 = vmatmul.f32.gmra.mxu0 %v1302
        %v1533 = vpop.f32.mrf.mxu0
        %v1534 = vadd.f32 %v1285, %v1533
        %1535 = vmatmul.f32.gmra.mxu0 %v1305
        %v1536 = vpop.f32.mrf.mxu0
        %v1537 = vadd.f32 %v1290, %v1536
        %1538 = vmatmul.f32.gmra.mxu0 %v1308
        %v1539 = vpop.f32.mrf.mxu0
        %v1540 = vadd.f32 %v1295, %v1539
        %1541 = vdwg.mxu0
        %1542 = vmatpush.msra.mxu0 0.0
        %1543 = vmatpush.msra.mxu0 0.0
        %1544 = vmatpush.msra.mxu0 0.0
        %1545 = vmatpush.msra.mxu0 0.0
        %1546 = vmatpush.msra.mxu0 0.0
        %1547 = vmatpush.msra.mxu0 0.0
        %1548 = vmatpush.msra.mxu0 0.0
        %1549 = vmatpush.msra.mxu0 0.0
        %1550 = vmatpush.msra.mxu0 %v1245
        %1551 = vmatpush.msra.mxu0 %v1213
        %1552 = vmatpush.msra.mxu0 %v1181
        %1553 = vmatpush.msra.mxu0 %v1149
        %1554 = vmatpush.msra.mxu0 %v1117
        %1555 = vmatpush.msra.mxu0 %v1085
        %1556 = vmatpush.msra.mxu0 %v1053
        %1557 = vmatpush.msra.mxu0 %v1021
        %1558 = vmatmul.f32.gmra.mxu0 %v1299
        %v1559 = vpop.f32.mrf.mxu0
        %v1560 = vadd.f32 %v1280, %v1559
        %1561 = vmatmul.f32.gmra.mxu0 %v1302
        %v1562 = vpop.f32.mrf.mxu0
        %v1563 = vadd.f32 %v1285, %v1562
        %1564 = vmatmul.f32.gmra.mxu0 %v1305
        %v1565 = vpop.f32.mrf.mxu0
        %v1566 = vadd.f32 %v1290, %v1565
        %1567 = vmatmul.f32.gmra.mxu0 %v1308
        %v1568 = vpop.f32.mrf.mxu0
        %v1569 = vadd.f32 %v1295, %v1568
        %1570 = vdwg.mxu0
        %1571 = vmatpush.msra.mxu0 0.0
        %1572 = vmatpush.msra.mxu0 0.0
        %1573 = vmatpush.msra.mxu0 0.0
        %1574 = vmatpush.msra.mxu0 0.0
        %1575 = vmatpush.msra.mxu0 0.0
        %1576 = vmatpush.msra.mxu0 0.0
        %1577 = vmatpush.msra.mxu0 0.0
        %1578 = vmatpush.msra.mxu0 0.0
        %1579 = vmatpush.msra.mxu0 %v1246
        %1580 = vmatpush.msra.mxu0 %v1214
        %1581 = vmatpush.msra.mxu0 %v1182
        %1582 = vmatpush.msra.mxu0 %v1150
        %1583 = vmatpush.msra.mxu0 %v1118
        %1584 = vmatpush.msra.mxu0 %v1086
        %1585 = vmatpush.msra.mxu0 %v1054
        %1586 = vmatpush.msra.mxu0 %v1022
        %1587 = vmatmul.f32.gmra.mxu0 %v1299
        %v1588 = vpop.f32.mrf.mxu0
        %v1589 = vadd.f32 %v1280, %v1588
        %1590 = vmatmul.f32.gmra.mxu0 %v1302
        %v1591 = vpop.f32.mrf.mxu0
        %v1592 = vadd.f32 %v1285, %v1591
        %1593 = vmatmul.f32.gmra.mxu0 %v1305
        %v1594 = vpop.f32.mrf.mxu0
        %v1595 = vadd.f32 %v1290, %v1594
        %1596 = vmatmul.f32.gmra.mxu0 %v1308
        %v1597 = vpop.f32.mrf.mxu0
        %v1598 = vadd.f32 %v1295, %v1597
        %1599 = vdwg.mxu0
        %1600 = vmatpush.msra.mxu0 0.0
        %1601 = vmatpush.msra.mxu0 0.0
        %1602 = vmatpush.msra.mxu0 0.0
        %1603 = vmatpush.msra.mxu0 0.0
        %1604 = vmatpush.msra.mxu0 0.0
        %1605 = vmatpush.msra.mxu0 0.0
        %1606 = vmatpush.msra.mxu0 0.0
        %1607 = vmatpush.msra.mxu0 0.0
        %1608 = vmatpush.msra.mxu0 %v1247
        %1609 = vmatpush.msra.mxu0 %v1215
        %1610 = vmatpush.msra.mxu0 %v1183
        %1611 = vmatpush.msra.mxu0 %v1151
        %1612 = vmatpush.msra.mxu0 %v1119
        %1613 = vmatpush.msra.mxu0 %v1087
        %1614 = vmatpush.msra.mxu0 %v1055
        %1615 = vmatpush.msra.mxu0 %v1023
        %1616 = vmatmul.f32.gmra.mxu0 %v1299
        %v1617 = vpop.f32.mrf.mxu0
        %v1618 = vadd.f32 %v1280, %v1617
        %1619 = vmatmul.f32.gmra.mxu0 %v1302
        %v1620 = vpop.f32.mrf.mxu0
        %v1621 = vadd.f32 %v1285, %v1620
        %1622 = vmatmul.f32.gmra.mxu0 %v1305
        %v1623 = vpop.f32.mrf.mxu0
        %v1624 = vadd.f32 %v1290, %v1623
        %1625 = vmatmul.f32.gmra.mxu0 %v1308
        %v1626 = vpop.f32.mrf.mxu0
        %v1627 = vadd.f32 %v1295, %v1626
        %1628 = vdwg.mxu0
        %1629 = vmatpush.msra.mxu0 0.0
        %1630 = vmatpush.msra.mxu0 0.0
        %1631 = vmatpush.msra.mxu0 0.0
        %1632 = vmatpush.msra.mxu0 0.0
        %1633 = vmatpush.msra.mxu0 0.0
        %1634 = vmatpush.msra.mxu0 0.0
        %1635 = vmatpush.msra.mxu0 0.0
        %1636 = vmatpush.msra.mxu0 0.0
        %1637 = vmatpush.msra.mxu0 %v1248
        %1638 = vmatpush.msra.mxu0 %v1216
        %1639 = vmatpush.msra.mxu0 %v1184
        %1640 = vmatpush.msra.mxu0 %v1152
        %1641 = vmatpush.msra.mxu0 %v1120
        %1642 = vmatpush.msra.mxu0 %v1088
        %1643 = vmatpush.msra.mxu0 %v1056
        %1644 = vmatpush.msra.mxu0 %v1024
        %1645 = vmatmul.f32.gmra.mxu0 %v1299
        %v1646 = vpop.f32.mrf.mxu0
        %v1647 = vadd.f32 %v1280, %v1646
        %1648 = vmatmul.f32.gmra.mxu0 %v1302
        %v1649 = vpop.f32.mrf.mxu0
        %v1650 = vadd.f32 %v1285, %v1649
        %1651 = vmatmul.f32.gmra.mxu0 %v1305
        %v1652 = vpop.f32.mrf.mxu0
        %v1653 = vadd.f32 %v1290, %v1652
        %1654 = vmatmul.f32.gmra.mxu0 %v1308
        %v1655 = vpop.f32.mrf.mxu0
        %v1656 = vadd.f32 %v1295, %v1655
        %1657 = vdwg.mxu0
        %1658 = vmatpush.msra.mxu0 0.0
        %1659 = vmatpush.msra.mxu0 0.0
        %1660 = vmatpush.msra.mxu0 0.0
        %1661 = vmatpush.msra.mxu0 0.0
        %1662 = vmatpush.msra.mxu0 0.0
        %1663 = vmatpush.msra.mxu0 0.0
        %1664 = vmatpush.msra.mxu0 0.0
        %1665 = vmatpush.msra.mxu0 0.0
        %1666 = vmatpush.msra.mxu0 %v1249
        %1667 = vmatpush.msra.mxu0 %v1217
        %1668 = vmatpush.msra.mxu0 %v1185
        %1669 = vmatpush.msra.mxu0 %v1153
        %1670 = vmatpush.msra.mxu0 %v1121
        %1671 = vmatpush.msra.mxu0 %v1089
        %1672 = vmatpush.msra.mxu0 %v1057
        %1673 = vmatpush.msra.mxu0 %v1025
        %1674 = vmatmul.f32.gmra.mxu0 %v1299
        %v1675 = vpop.f32.mrf.mxu0
        %v1676 = vadd.f32 %v1280, %v1675
        %1677 = vmatmul.f32.gmra.mxu0 %v1302
        %v1678 = vpop.f32.mrf.mxu0
        %v1679 = vadd.f32 %v1285, %v1678
        %1680 = vmatmul.f32.gmra.mxu0 %v1305
        %v1681 = vpop.f32.mrf.mxu0
        %v1682 = vadd.f32 %v1290, %v1681
        %1683 = vmatmul.f32.gmra.mxu0 %v1308
        %v1684 = vpop.f32.mrf.mxu0
        %v1685 = vadd.f32 %v1295, %v1684
        %1686 = vdwg.mxu0
        %1687 = vmatpush.msra.mxu0 0.0
        %1688 = vmatpush.msra.mxu0 0.0
        %1689 = vmatpush.msra.mxu0 0.0
        %1690 = vmatpush.msra.mxu0 0.0
        %1691 = vmatpush.msra.mxu0 0.0
        %1692 = vmatpush.msra.mxu0 0.0
        %1693 = vmatpush.msra.mxu0 0.0
        %1694 = vmatpush.msra.mxu0 0.0
        %1695 = vmatpush.msra.mxu0 %v1250
        %1696 = vmatpush.msra.mxu0 %v1218
        %1697 = vmatpush.msra.mxu0 %v1186
        %1698 = vmatpush.msra.mxu0 %v1154
        %1699 = vmatpush.msra.mxu0 %v1122
        %1700 = vmatpush.msra.mxu0 %v1090
        %1701 = vmatpush.msra.mxu0 %v1058
        %1702 = vmatpush.msra.mxu0 %v1026
        %1703 = vmatmul.f32.gmra.mxu0 %v1299
        %v1704 = vpop.f32.mrf.mxu0
        %v1705 = vadd.f32 %v1280, %v1704
        %1706 = vmatmul.f32.gmra.mxu0 %v1302
        %v1707 = vpop.f32.mrf.mxu0
        %v1708 = vadd.f32 %v1285, %v1707
        %1709 = vmatmul.f32.gmra.mxu0 %v1305
        %v1710 = vpop.f32.mrf.mxu0
        %v1711 = vadd.f32 %v1290, %v1710
        %1712 = vmatmul.f32.gmra.mxu0 %v1308
        %v1713 = vpop.f32.mrf.mxu0
        %v1714 = vadd.f32 %v1295, %v1713
        %1715 = vdwg.mxu0
        %1716 = vmatpush.msra.mxu0 0.0
        %1717 = vmatpush.msra.mxu0 0.0
        %1718 = vmatpush.msra.mxu0 0.0
        %1719 = vmatpush.msra.mxu0 0.0
        %1720 = vmatpush.msra.mxu0 0.0
        %1721 = vmatpush.msra.mxu0 0.0
        %1722 = vmatpush.msra.mxu0 0.0
        %1723 = vmatpush.msra.mxu0 0.0
        %1724 = vmatpush.msra.mxu0 %v1251
        %1725 = vmatpush.msra.mxu0 %v1219
        %1726 = vmatpush.msra.mxu0 %v1187
        %1727 = vmatpush.msra.mxu0 %v1155
        %1728 = vmatpush.msra.mxu0 %v1123
        %1729 = vmatpush.msra.mxu0 %v1091
        %1730 = vmatpush.msra.mxu0 %v1059
        %1731 = vmatpush.msra.mxu0 %v1027
        %1732 = vmatmul.f32.gmra.mxu0 %v1299
        %v1733 = vpop.f32.mrf.mxu0
        %v1734 = vadd.f32 %v1280, %v1733
        %1735 = vmatmul.f32.gmra.mxu0 %v1302
        %v1736 = vpop.f32.mrf.mxu0
        %v1737 = vadd.f32 %v1285, %v1736
        %1738 = vmatmul.f32.gmra.mxu0 %v1305
        %v1739 = vpop.f32.mrf.mxu0
        %v1740 = vadd.f32 %v1290, %v1739
        %1741 = vmatmul.f32.gmra.mxu0 %v1308
        %v1742 = vpop.f32.mrf.mxu0
        %v1743 = vadd.f32 %v1295, %v1742
        %1744 = vdwg.mxu0
        %1745 = vmatpush.msra.mxu0 0.0
        %1746 = vmatpush.msra.mxu0 0.0
        %1747 = vmatpush.msra.mxu0 0.0
        %1748 = vmatpush.msra.mxu0 0.0
        %1749 = vmatpush.msra.mxu0 0.0
        %1750 = vmatpush.msra.mxu0 0.0
        %1751 = vmatpush.msra.mxu0 0.0
        %1752 = vmatpush.msra.mxu0 0.0
        %1753 = vmatpush.msra.mxu0 %v1252
        %1754 = vmatpush.msra.mxu0 %v1220
        %1755 = vmatpush.msra.mxu0 %v1188
        %1756 = vmatpush.msra.mxu0 %v1156
        %1757 = vmatpush.msra.mxu0 %v1124
        %1758 = vmatpush.msra.mxu0 %v1092
        %1759 = vmatpush.msra.mxu0 %v1060
        %1760 = vmatpush.msra.mxu0 %v1028
        %1761 = vmatmul.f32.gmra.mxu0 %v1299
        %v1762 = vpop.f32.mrf.mxu0
        %v1763 = vadd.f32 %v1280, %v1762
        %1764 = vmatmul.f32.gmra.mxu0 %v1302
        %v1765 = vpop.f32.mrf.mxu0
        %v1766 = vadd.f32 %v1285, %v1765
        %1767 = vmatmul.f32.gmra.mxu0 %v1305
        %v1768 = vpop.f32.mrf.mxu0
        %v1769 = vadd.f32 %v1290, %v1768
        %1770 = vmatmul.f32.gmra.mxu0 %v1308
        %v1771 = vpop.f32.mrf.mxu0
        %v1772 = vadd.f32 %v1295, %v1771
        %1773 = vdwg.mxu0
        %1774 = vmatpush.msra.mxu0 0.0
        %1775 = vmatpush.msra.mxu0 0.0
        %1776 = vmatpush.msra.mxu0 0.0
        %1777 = vmatpush.msra.mxu0 0.0
        %1778 = vmatpush.msra.mxu0 0.0
        %1779 = vmatpush.msra.mxu0 0.0
        %1780 = vmatpush.msra.mxu0 0.0
        %1781 = vmatpush.msra.mxu0 0.0
        %1782 = vmatpush.msra.mxu0 %v1253
        %1783 = vmatpush.msra.mxu0 %v1221
        %1784 = vmatpush.msra.mxu0 %v1189
        %1785 = vmatpush.msra.mxu0 %v1157
        %1786 = vmatpush.msra.mxu0 %v1125
        %1787 = vmatpush.msra.mxu0 %v1093
        %1788 = vmatpush.msra.mxu0 %v1061
        %1789 = vmatpush.msra.mxu0 %v1029
        %1790 = vmatmul.f32.gmra.mxu0 %v1299
        %v1791 = vpop.f32.mrf.mxu0
        %v1792 = vadd.f32 %v1280, %v1791
        %1793 = vmatmul.f32.gmra.mxu0 %v1302
        %v1794 = vpop.f32.mrf.mxu0
        %v1795 = vadd.f32 %v1285, %v1794
        %1796 = vmatmul.f32.gmra.mxu0 %v1305
        %v1797 = vpop.f32.mrf.mxu0
        %v1798 = vadd.f32 %v1290, %v1797
        %1799 = vmatmul.f32.gmra.mxu0 %v1308
        %v1800 = vpop.f32.mrf.mxu0
        %v1801 = vadd.f32 %v1295, %v1800
        %1802 = vdwg.mxu0
        %1803 = vmatpush.msra.mxu0 0.0
        %1804 = vmatpush.msra.mxu0 0.0
        %1805 = vmatpush.msra.mxu0 0.0
        %1806 = vmatpush.msra.mxu0 0.0
        %1807 = vmatpush.msra.mxu0 0.0
        %1808 = vmatpush.msra.mxu0 0.0
        %1809 = vmatpush.msra.mxu0 0.0
        %1810 = vmatpush.msra.mxu0 0.0
        %1811 = vmatpush.msra.mxu0 %v1254
        %1812 = vmatpush.msra.mxu0 %v1222
        %1813 = vmatpush.msra.mxu0 %v1190
        %1814 = vmatpush.msra.mxu0 %v1158
        %1815 = vmatpush.msra.mxu0 %v1126
        %1816 = vmatpush.msra.mxu0 %v1094
        %1817 = vmatpush.msra.mxu0 %v1062
        %1818 = vmatpush.msra.mxu0 %v1030
        %1819 = vmatmul.f32.gmra.mxu0 %v1299
        %v1820 = vpop.f32.mrf.mxu0
        %v1821 = vadd.f32 %v1280, %v1820
        %1822 = vmatmul.f32.gmra.mxu0 %v1302
        %v1823 = vpop.f32.mrf.mxu0
        %v1824 = vadd.f32 %v1285, %v1823
        %1825 = vmatmul.f32.gmra.mxu0 %v1305
        %v1826 = vpop.f32.mrf.mxu0
        %v1827 = vadd.f32 %v1290, %v1826
        %1828 = vmatmul.f32.gmra.mxu0 %v1308
        %v1829 = vpop.f32.mrf.mxu0
        %v1830 = vadd.f32 %v1295, %v1829
        %1831 = vdwg.mxu0
        %1832 = vmatpush.msra.mxu0 0.0
        %1833 = vmatpush.msra.mxu0 0.0
        %1834 = vmatpush.msra.mxu0 0.0
        %1835 = vmatpush.msra.mxu0 0.0
        %1836 = vmatpush.msra.mxu0 0.0
        %1837 = vmatpush.msra.mxu0 0.0
        %1838 = vmatpush.msra.mxu0 0.0
        %1839 = vmatpush.msra.mxu0 0.0
        %1840 = vmatpush.msra.mxu0 %v1255
        %1841 = vmatpush.msra.mxu0 %v1223
        %1842 = vmatpush.msra.mxu0 %v1191
        %1843 = vmatpush.msra.mxu0 %v1159
        %1844 = vmatpush.msra.mxu0 %v1127
        %1845 = vmatpush.msra.mxu0 %v1095
        %1846 = vmatpush.msra.mxu0 %v1063
        %1847 = vmatpush.msra.mxu0 %v1031
        %1848 = vmatmul.f32.gmra.mxu0 %v1299
        %v1849 = vpop.f32.mrf.mxu0
        %v1850 = vadd.f32 %v1280, %v1849
        %1851 = vmatmul.f32.gmra.mxu0 %v1302
        %v1852 = vpop.f32.mrf.mxu0
        %v1853 = vadd.f32 %v1285, %v1852
        %1854 = vmatmul.f32.gmra.mxu0 %v1305
        %v1855 = vpop.f32.mrf.mxu0
        %v1856 = vadd.f32 %v1290, %v1855
        %1857 = vmatmul.f32.gmra.mxu0 %v1308
        %v1858 = vpop.f32.mrf.mxu0
        %v1859 = vadd.f32 %v1295, %v1858
        %1860 = vdwg.mxu0
        %1861 = vmatpush.msra.mxu0 0.0
        %1862 = vmatpush.msra.mxu0 0.0
        %1863 = vmatpush.msra.mxu0 0.0
        %1864 = vmatpush.msra.mxu0 0.0
        %1865 = vmatpush.msra.mxu0 0.0
        %1866 = vmatpush.msra.mxu0 0.0
        %1867 = vmatpush.msra.mxu0 0.0
        %1868 = vmatpush.msra.mxu0 0.0
        %1869 = vmatpush.msra.mxu0 %v1256
        %1870 = vmatpush.msra.mxu0 %v1224
        %1871 = vmatpush.msra.mxu0 %v1192
        %1872 = vmatpush.msra.mxu0 %v1160
        %1873 = vmatpush.msra.mxu0 %v1128
        %1874 = vmatpush.msra.mxu0 %v1096
        %1875 = vmatpush.msra.mxu0 %v1064
        %1876 = vmatpush.msra.mxu0 %v1032
        %1877 = vmatmul.f32.gmra.mxu0 %v1299
        %v1878 = vpop.f32.mrf.mxu0
        %v1879 = vadd.f32 %v1280, %v1878
        %1880 = vmatmul.f32.gmra.mxu0 %v1302
        %v1881 = vpop.f32.mrf.mxu0
        %v1882 = vadd.f32 %v1285, %v1881
        %1883 = vmatmul.f32.gmra.mxu0 %v1305
        %v1884 = vpop.f32.mrf.mxu0
        %v1885 = vadd.f32 %v1290, %v1884
        %1886 = vmatmul.f32.gmra.mxu0 %v1308
        %v1887 = vpop.f32.mrf.mxu0
        %v1888 = vadd.f32 %v1295, %v1887
        %1889 = vdwg.mxu0
        %1890 = vmatpush.msra.mxu0 0.0
        %1891 = vmatpush.msra.mxu0 0.0
        %1892 = vmatpush.msra.mxu0 0.0
        %1893 = vmatpush.msra.mxu0 0.0
        %1894 = vmatpush.msra.mxu0 0.0
        %1895 = vmatpush.msra.mxu0 0.0
        %1896 = vmatpush.msra.mxu0 0.0
        %1897 = vmatpush.msra.mxu0 0.0
        %1898 = vmatpush.msra.mxu0 %v1257
        %1899 = vmatpush.msra.mxu0 %v1225
        %1900 = vmatpush.msra.mxu0 %v1193
        %1901 = vmatpush.msra.mxu0 %v1161
        %1902 = vmatpush.msra.mxu0 %v1129
        %1903 = vmatpush.msra.mxu0 %v1097
        %1904 = vmatpush.msra.mxu0 %v1065
        %1905 = vmatpush.msra.mxu0 %v1033
        %1906 = vmatmul.f32.gmra.mxu0 %v1299
        %v1907 = vpop.f32.mrf.mxu0
        %v1908 = vadd.f32 %v1280, %v1907
        %1909 = vmatmul.f32.gmra.mxu0 %v1302
        %v1910 = vpop.f32.mrf.mxu0
        %v1911 = vadd.f32 %v1285, %v1910
        %1912 = vmatmul.f32.gmra.mxu0 %v1305
        %v1913 = vpop.f32.mrf.mxu0
        %v1914 = vadd.f32 %v1290, %v1913
        %1915 = vmatmul.f32.gmra.mxu0 %v1308
        %v1916 = vpop.f32.mrf.mxu0
        %v1917 = vadd.f32 %v1295, %v1916
        %1918 = vdwg.mxu0
        %1919 = vmatpush.msra.mxu0 0.0
        %1920 = vmatpush.msra.mxu0 0.0
        %1921 = vmatpush.msra.mxu0 0.0
        %1922 = vmatpush.msra.mxu0 0.0
        %1923 = vmatpush.msra.mxu0 0.0
        %1924 = vmatpush.msra.mxu0 0.0
        %1925 = vmatpush.msra.mxu0 0.0
        %1926 = vmatpush.msra.mxu0 0.0
        %1927 = vmatpush.msra.mxu0 %v1258
        %1928 = vmatpush.msra.mxu0 %v1226
        %1929 = vmatpush.msra.mxu0 %v1194
        %1930 = vmatpush.msra.mxu0 %v1162
        %1931 = vmatpush.msra.mxu0 %v1130
        %1932 = vmatpush.msra.mxu0 %v1098
        %1933 = vmatpush.msra.mxu0 %v1066
        %1934 = vmatpush.msra.mxu0 %v1034
        %1935 = vmatmul.f32.gmra.mxu0 %v1299
        %v1936 = vpop.f32.mrf.mxu0
        %v1937 = vadd.f32 %v1280, %v1936
        %1938 = vmatmul.f32.gmra.mxu0 %v1302
        %v1939 = vpop.f32.mrf.mxu0
        %v1940 = vadd.f32 %v1285, %v1939
        %1941 = vmatmul.f32.gmra.mxu0 %v1305
        %v1942 = vpop.f32.mrf.mxu0
        %v1943 = vadd.f32 %v1290, %v1942
        %1944 = vmatmul.f32.gmra.mxu0 %v1308
        %v1945 = vpop.f32.mrf.mxu0
        %v1946 = vadd.f32 %v1295, %v1945
        %1947 = vdwg.mxu0
        %1948 = vmatpush.msra.mxu0 0.0
        %1949 = vmatpush.msra.mxu0 0.0
        %1950 = vmatpush.msra.mxu0 0.0
        %1951 = vmatpush.msra.mxu0 0.0
        %1952 = vmatpush.msra.mxu0 0.0
        %1953 = vmatpush.msra.mxu0 0.0
        %1954 = vmatpush.msra.mxu0 0.0
        %1955 = vmatpush.msra.mxu0 0.0
        %1956 = vmatpush.msra.mxu0 %v1259
        %1957 = vmatpush.msra.mxu0 %v1227
        %1958 = vmatpush.msra.mxu0 %v1195
        %1959 = vmatpush.msra.mxu0 %v1163
        %1960 = vmatpush.msra.mxu0 %v1131
        %1961 = vmatpush.msra.mxu0 %v1099
        %1962 = vmatpush.msra.mxu0 %v1067
        %1963 = vmatpush.msra.mxu0 %v1035
        %1964 = vmatmul.f32.gmra.mxu0 %v1299
        %v1965 = vpop.f32.mrf.mxu0
        %v1966 = vadd.f32 %v1280, %v1965
        %1967 = vmatmul.f32.gmra.mxu0 %v1302
        %v1968 = vpop.f32.mrf.mxu0
        %v1969 = vadd.f32 %v1285, %v1968
        %1970 = vmatmul.f32.gmra.mxu0 %v1305
        %v1971 = vpop.f32.mrf.mxu0
        %v1972 = vadd.f32 %v1290, %v1971
        %1973 = vmatmul.f32.gmra.mxu0 %v1308
        %v1974 = vpop.f32.mrf.mxu0
        %v1975 = vadd.f32 %v1295, %v1974
        %1976 = vdwg.mxu0
        %1977 = vmatpush.msra.mxu0 0.0
        %1978 = vmatpush.msra.mxu0 0.0
        %1979 = vmatpush.msra.mxu0 0.0
        %1980 = vmatpush.msra.mxu0 0.0
        %1981 = vmatpush.msra.mxu0 0.0
        %1982 = vmatpush.msra.mxu0 0.0
        %1983 = vmatpush.msra.mxu0 0.0
        %1984 = vmatpush.msra.mxu0 0.0
        %1985 = vmatpush.msra.mxu0 %v1260
        %1986 = vmatpush.msra.mxu0 %v1228
        %1987 = vmatpush.msra.mxu0 %v1196
        %1988 = vmatpush.msra.mxu0 %v1164
        %1989 = vmatpush.msra.mxu0 %v1132
        %1990 = vmatpush.msra.mxu0 %v1100
        %1991 = vmatpush.msra.mxu0 %v1068
        %1992 = vmatpush.msra.mxu0 %v1036
        %1993 = vmatmul.f32.gmra.mxu0 %v1299
        %v1994 = vpop.f32.mrf.mxu0
        %v1995 = vadd.f32 %v1280, %v1994
        %1996 = vmatmul.f32.gmra.mxu0 %v1302
        %v1997 = vpop.f32.mrf.mxu0
        %v1998 = vadd.f32 %v1285, %v1997
        %1999 = vmatmul.f32.gmra.mxu0 %v1305
        %v2000 = vpop.f32.mrf.mxu0
        %v2001 = vadd.f32 %v1290, %v2000
        %2002 = vmatmul.f32.gmra.mxu0 %v1308
        %v2003 = vpop.f32.mrf.mxu0
        %v2004 = vadd.f32 %v1295, %v2003
        %2005 = vdwg.mxu0
        %2006 = vmatpush.msra.mxu0 0.0
        %2007 = vmatpush.msra.mxu0 0.0
        %2008 = vmatpush.msra.mxu0 0.0
        %2009 = vmatpush.msra.mxu0 0.0
        %2010 = vmatpush.msra.mxu0 0.0
        %2011 = vmatpush.msra.mxu0 0.0
        %2012 = vmatpush.msra.mxu0 0.0
        %2013 = vmatpush.msra.mxu0 0.0
        %2014 = vmatpush.msra.mxu0 %v1261
        %2015 = vmatpush.msra.mxu0 %v1229
        %2016 = vmatpush.msra.mxu0 %v1197
        %2017 = vmatpush.msra.mxu0 %v1165
        %2018 = vmatpush.msra.mxu0 %v1133
        %2019 = vmatpush.msra.mxu0 %v1101
        %2020 = vmatpush.msra.mxu0 %v1069
        %2021 = vmatpush.msra.mxu0 %v1037
        %2022 = vmatmul.f32.gmra.mxu0 %v1299
        %v2023 = vpop.f32.mrf.mxu0
        %v2024 = vadd.f32 %v1280, %v2023
        %2025 = vmatmul.f32.gmra.mxu0 %v1302
        %v2026 = vpop.f32.mrf.mxu0
        %v2027 = vadd.f32 %v1285, %v2026
        %2028 = vmatmul.f32.gmra.mxu0 %v1305
        %v2029 = vpop.f32.mrf.mxu0
        %v2030 = vadd.f32 %v1290, %v2029
        %2031 = vmatmul.f32.gmra.mxu0 %v1308
        %v2032 = vpop.f32.mrf.mxu0
        %v2033 = vadd.f32 %v1295, %v2032
        %2034 = vdwg.mxu0
        %2035 = vmatpush.msra.mxu0 0.0
        %2036 = vmatpush.msra.mxu0 0.0
        %2037 = vmatpush.msra.mxu0 0.0
        %2038 = vmatpush.msra.mxu0 0.0
        %2039 = vmatpush.msra.mxu0 0.0
        %2040 = vmatpush.msra.mxu0 0.0
        %2041 = vmatpush.msra.mxu0 0.0
        %2042 = vmatpush.msra.mxu0 0.0
        %2043 = vmatpush.msra.mxu0 %v1262
        %2044 = vmatpush.msra.mxu0 %v1230
        %2045 = vmatpush.msra.mxu0 %v1198
        %2046 = vmatpush.msra.mxu0 %v1166
        %2047 = vmatpush.msra.mxu0 %v1134
        %2048 = vmatpush.msra.mxu0 %v1102
        %2049 = vmatpush.msra.mxu0 %v1070
        %2050 = vmatpush.msra.mxu0 %v1038
        %2051 = vmatmul.f32.gmra.mxu0 %v1299
        %v2052 = vpop.f32.mrf.mxu0
        %v2053 = vadd.f32 %v1280, %v2052
        %2054 = vmatmul.f32.gmra.mxu0 %v1302
        %v2055 = vpop.f32.mrf.mxu0
        %v2056 = vadd.f32 %v1285, %v2055
        %2057 = vmatmul.f32.gmra.mxu0 %v1305
        %v2058 = vpop.f32.mrf.mxu0
        %v2059 = vadd.f32 %v1290, %v2058
        %2060 = vmatmul.f32.gmra.mxu0 %v1308
        %v2061 = vpop.f32.mrf.mxu0
        %v2062 = vadd.f32 %v1295, %v2061
        %2063 = vdwg.mxu0
        %2064 = vmatpush.msra.mxu0 0.0
        %2065 = vmatpush.msra.mxu0 0.0
        %2066 = vmatpush.msra.mxu0 0.0
        %2067 = vmatpush.msra.mxu0 0.0
        %2068 = vmatpush.msra.mxu0 0.0
        %2069 = vmatpush.msra.mxu0 0.0
        %2070 = vmatpush.msra.mxu0 0.0
        %2071 = vmatpush.msra.mxu0 0.0
        %2072 = vmatpush.msra.mxu0 %v1263
        %2073 = vmatpush.msra.mxu0 %v1231
        %2074 = vmatpush.msra.mxu0 %v1199
        %2075 = vmatpush.msra.mxu0 %v1167
        %2076 = vmatpush.msra.mxu0 %v1135
        %2077 = vmatpush.msra.mxu0 %v1103
        %2078 = vmatpush.msra.mxu0 %v1071
        %2079 = vmatpush.msra.mxu0 %v1039
        %2080 = vmatmul.f32.gmra.mxu0 %v1299
        %v2081 = vpop.f32.mrf.mxu0
        %v2082 = vadd.f32 %v1280, %v2081
        %2083 = vmatmul.f32.gmra.mxu0 %v1302
        %v2084 = vpop.f32.mrf.mxu0
        %v2085 = vadd.f32 %v1285, %v2084
        %2086 = vmatmul.f32.gmra.mxu0 %v1305
        %v2087 = vpop.f32.mrf.mxu0
        %v2088 = vadd.f32 %v1290, %v2087
        %2089 = vmatmul.f32.gmra.mxu0 %v1308
        %v2090 = vpop.f32.mrf.mxu0
        %v2091 = vadd.f32 %v1295, %v2090
        %2092 = vdwg.mxu0
        %2093 = vmatpush.msra.mxu0 0.0
        %2094 = vmatpush.msra.mxu0 0.0
        %2095 = vmatpush.msra.mxu0 0.0
        %2096 = vmatpush.msra.mxu0 0.0
        %2097 = vmatpush.msra.mxu0 0.0
        %2098 = vmatpush.msra.mxu0 0.0
        %2099 = vmatpush.msra.mxu0 0.0
        %2100 = vmatpush.msra.mxu0 0.0
        %2101 = vmatpush.msra.mxu0 %v1264
        %2102 = vmatpush.msra.mxu0 %v1232
        %2103 = vmatpush.msra.mxu0 %v1200
        %2104 = vmatpush.msra.mxu0 %v1168
        %2105 = vmatpush.msra.mxu0 %v1136
        %2106 = vmatpush.msra.mxu0 %v1104
        %2107 = vmatpush.msra.mxu0 %v1072
        %2108 = vmatpush.msra.mxu0 %v1040
        %2109 = vmatmul.f32.gmra.mxu0 %v1299
        %v2110 = vpop.f32.mrf.mxu0
        %v2111 = vadd.f32 %v1280, %v2110
        %2112 = vmatmul.f32.gmra.mxu0 %v1302
        %v2113 = vpop.f32.mrf.mxu0
        %v2114 = vadd.f32 %v1285, %v2113
        %2115 = vmatmul.f32.gmra.mxu0 %v1305
        %v2116 = vpop.f32.mrf.mxu0
        %v2117 = vadd.f32 %v1290, %v2116
        %2118 = vmatmul.f32.gmra.mxu0 %v1308
        %v2119 = vpop.f32.mrf.mxu0
        %v2120 = vadd.f32 %v1295, %v2119
        %2121 = vdwg.mxu0
        %2122 = vmatpush.msra.mxu0 0.0
        %2123 = vmatpush.msra.mxu0 0.0
        %2124 = vmatpush.msra.mxu0 0.0
        %2125 = vmatpush.msra.mxu0 0.0
        %2126 = vmatpush.msra.mxu0 0.0
        %2127 = vmatpush.msra.mxu0 0.0
        %2128 = vmatpush.msra.mxu0 0.0
        %2129 = vmatpush.msra.mxu0 0.0
        %2130 = vmatpush.msra.mxu0 %v1265
        %2131 = vmatpush.msra.mxu0 %v1233
        %2132 = vmatpush.msra.mxu0 %v1201
        %2133 = vmatpush.msra.mxu0 %v1169
        %2134 = vmatpush.msra.mxu0 %v1137
        %2135 = vmatpush.msra.mxu0 %v1105
        %2136 = vmatpush.msra.mxu0 %v1073
        %2137 = vmatpush.msra.mxu0 %v1041
        %2138 = vmatmul.f32.gmra.mxu0 %v1299
        %v2139 = vpop.f32.mrf.mxu0
        %v2140 = vadd.f32 %v1280, %v2139
        %2141 = vmatmul.f32.gmra.mxu0 %v1302
        %v2142 = vpop.f32.mrf.mxu0
        %v2143 = vadd.f32 %v1285, %v2142
        %2144 = vmatmul.f32.gmra.mxu0 %v1305
        %v2145 = vpop.f32.mrf.mxu0
        %v2146 = vadd.f32 %v1290, %v2145
        %2147 = vmatmul.f32.gmra.mxu0 %v1308
        %v2148 = vpop.f32.mrf.mxu0
        %v2149 = vadd.f32 %v1295, %v2148
        %2150 = vdwg.mxu0
        %2151 = vmatpush.msra.mxu0 0.0
        %2152 = vmatpush.msra.mxu0 0.0
        %2153 = vmatpush.msra.mxu0 0.0
        %2154 = vmatpush.msra.mxu0 0.0
        %2155 = vmatpush.msra.mxu0 0.0
        %2156 = vmatpush.msra.mxu0 0.0
        %2157 = vmatpush.msra.mxu0 0.0
        %2158 = vmatpush.msra.mxu0 0.0
        %2159 = vmatpush.msra.mxu0 %v1266
        %2160 = vmatpush.msra.mxu0 %v1234
        %2161 = vmatpush.msra.mxu0 %v1202
        %2162 = vmatpush.msra.mxu0 %v1170
        %2163 = vmatpush.msra.mxu0 %v1138
        %2164 = vmatpush.msra.mxu0 %v1106
        %2165 = vmatpush.msra.mxu0 %v1074
        %2166 = vmatpush.msra.mxu0 %v1042
        %2167 = vmatmul.f32.gmra.mxu0 %v1299
        %v2168 = vpop.f32.mrf.mxu0
        %v2169 = vadd.f32 %v1280, %v2168
        %2170 = vmatmul.f32.gmra.mxu0 %v1302
        %v2171 = vpop.f32.mrf.mxu0
        %v2172 = vadd.f32 %v1285, %v2171
        %2173 = vmatmul.f32.gmra.mxu0 %v1305
        %v2174 = vpop.f32.mrf.mxu0
        %v2175 = vadd.f32 %v1290, %v2174
        %2176 = vmatmul.f32.gmra.mxu0 %v1308
        %v2177 = vpop.f32.mrf.mxu0
        %v2178 = vadd.f32 %v1295, %v2177
        %2179 = vdwg.mxu0
        %2180 = vmatpush.msra.mxu0 0.0
        %2181 = vmatpush.msra.mxu0 0.0
        %2182 = vmatpush.msra.mxu0 0.0
        %2183 = vmatpush.msra.mxu0 0.0
        %2184 = vmatpush.msra.mxu0 0.0
        %2185 = vmatpush.msra.mxu0 0.0
        %2186 = vmatpush.msra.mxu0 0.0
        %2187 = vmatpush.msra.mxu0 0.0
        %2188 = vmatpush.msra.mxu0 %v1267
        %2189 = vmatpush.msra.mxu0 %v1235
        %2190 = vmatpush.msra.mxu0 %v1203
        %2191 = vmatpush.msra.mxu0 %v1171
        %2192 = vmatpush.msra.mxu0 %v1139
        %2193 = vmatpush.msra.mxu0 %v1107
        %2194 = vmatpush.msra.mxu0 %v1075
        %2195 = vmatpush.msra.mxu0 %v1043
        %2196 = vmatmul.f32.gmra.mxu0 %v1299
        %v2197 = vpop.f32.mrf.mxu0
        %v2198 = vadd.f32 %v1280, %v2197
        %2199 = vmatmul.f32.gmra.mxu0 %v1302
        %v2200 = vpop.f32.mrf.mxu0
        %v2201 = vadd.f32 %v1285, %v2200
        %2202 = vmatmul.f32.gmra.mxu0 %v1305
        %v2203 = vpop.f32.mrf.mxu0
        %v2204 = vadd.f32 %v1290, %v2203
        %2205 = vmatmul.f32.gmra.mxu0 %v1308
        %v2206 = vpop.f32.mrf.mxu0
        %v2207 = vadd.f32 %v1295, %v2206
        %2208 = vdwg.mxu0
        %2209 = vmatpush.msra.mxu0 0.0
        %2210 = vmatpush.msra.mxu0 0.0
        %2211 = vmatpush.msra.mxu0 0.0
        %2212 = vmatpush.msra.mxu0 0.0
        %2213 = vmatpush.msra.mxu0 0.0
        %2214 = vmatpush.msra.mxu0 0.0
        %2215 = vmatpush.msra.mxu0 0.0
        %2216 = vmatpush.msra.mxu0 0.0
        %2217 = vmatpush.msra.mxu0 %v1268
        %2218 = vmatpush.msra.mxu0 %v1236
        %2219 = vmatpush.msra.mxu0 %v1204
        %2220 = vmatpush.msra.mxu0 %v1172
        %2221 = vmatpush.msra.mxu0 %v1140
        %2222 = vmatpush.msra.mxu0 %v1108
        %2223 = vmatpush.msra.mxu0 %v1076
        %2224 = vmatpush.msra.mxu0 %v1044
        %2225 = vmatmul.f32.gmra.mxu0 %v1299
        %v2226 = vpop.f32.mrf.mxu0
        %v2227 = vadd.f32 %v1280, %v2226
        %2228 = vmatmul.f32.gmra.mxu0 %v1302
        %v2229 = vpop.f32.mrf.mxu0
        %v2230 = vadd.f32 %v1285, %v2229
        %2231 = vmatmul.f32.gmra.mxu0 %v1305
        %v2232 = vpop.f32.mrf.mxu0
        %v2233 = vadd.f32 %v1290, %v2232
        %2234 = vmatmul.f32.gmra.mxu0 %v1308
        %v2235 = vpop.f32.mrf.mxu0
        %v2236 = vadd.f32 %v1295, %v2235
        %2237 = vdwg.mxu0
        %v2238 = vtanh.pop %v1328
        %v2239 = vtanh.pop %v1357
        %v2240 = vtanh.pop %v1386
        %v2241 = vtanh.pop %v1415
        %v2242 = vtanh.pop %v1444
        %v2243 = vtanh.pop %v1473
        %v2244 = vtanh.pop %v1502
        %v2245 = vtanh.pop %v1531
        %v2246 = vtanh.pop %v1560
        %v2247 = vtanh.pop %v1589
        %v2248 = vtanh.pop %v1618
        %v2249 = vtanh.pop %v1647
        %v2250 = vtanh.pop %v1676
        %v2251 = vtanh.pop %v1705
        %v2252 = vtanh.pop %v1734
        %v2253 = vtanh.pop %v1763
        %v2254 = vtanh.pop %v1792
        %v2255 = vtanh.pop %v1821
        %v2256 = vtanh.pop %v1850
        %v2257 = vtanh.pop %v1879
        %v2258 = vtanh.pop %v1908
        %v2259 = vtanh.pop %v1937
        %v2260 = vtanh.pop %v1966
        %v2261 = vtanh.pop %v1995
        %v2262 = vtanh.pop %v2024
        %v2263 = vtanh.pop %v2053
        %v2264 = vtanh.pop %v2082
        %v2265 = vtanh.pop %v2111
        %v2266 = vtanh.pop %v2140
        %v2267 = vtanh.pop %v2169
        %v2268 = vtanh.pop %v2198
        %v2269 = vtanh.pop %v2227
        %v2270 = vtanh.pop %v1331
        %v2271 = vtanh.pop %v1360
        %v2272 = vtanh.pop %v1389
        %v2273 = vtanh.pop %v1418
        %v2274 = vtanh.pop %v1447
        %v2275 = vtanh.pop %v1476
        %v2276 = vtanh.pop %v1505
        %v2277 = vtanh.pop %v1534
        %v2278 = vtanh.pop %v1563
        %v2279 = vtanh.pop %v1592
        %v2280 = vtanh.pop %v1621
        %v2281 = vtanh.pop %v1650
        %v2282 = vtanh.pop %v1679
        %v2283 = vtanh.pop %v1708
        %v2284 = vtanh.pop %v1737
        %v2285 = vtanh.pop %v1766
        %v2286 = vtanh.pop %v1795
        %v2287 = vtanh.pop %v1824
        %v2288 = vtanh.pop %v1853
        %v2289 = vtanh.pop %v1882
        %v2290 = vtanh.pop %v1911
        %v2291 = vtanh.pop %v1940
        %v2292 = vtanh.pop %v1969
        %v2293 = vtanh.pop %v1998
        %v2294 = vtanh.pop %v2027
        %v2295 = vtanh.pop %v2056
        %v2296 = vtanh.pop %v2085
        %v2297 = vtanh.pop %v2114
        %v2298 = vtanh.pop %v2143
        %v2299 = vtanh.pop %v2172
        %v2300 = vtanh.pop %v2201
        %v2301 = vtanh.pop %v2230
        %v2302 = vtanh.pop %v1334
        %v2303 = vtanh.pop %v1363
        %v2304 = vtanh.pop %v1392
        %v2305 = vtanh.pop %v1421
        %v2306 = vtanh.pop %v1450
        %v2307 = vtanh.pop %v1479
        %v2308 = vtanh.pop %v1508
        %v2309 = vtanh.pop %v1537
        %v2310 = vtanh.pop %v1566
        %v2311 = vtanh.pop %v1595
        %v2312 = vtanh.pop %v1624
        %v2313 = vtanh.pop %v1653
        %v2314 = vtanh.pop %v1682
        %v2315 = vtanh.pop %v1711
        %v2316 = vtanh.pop %v1740
        %v2317 = vtanh.pop %v1769
        %v2318 = vtanh.pop %v1798
        %v2319 = vtanh.pop %v1827
        %v2320 = vtanh.pop %v1856
        %v2321 = vtanh.pop %v1885
        %v2322 = vtanh.pop %v1914
        %v2323 = vtanh.pop %v1943
        %v2324 = vtanh.pop %v1972
        %v2325 = vtanh.pop %v2001
        %v2326 = vtanh.pop %v2030
        %v2327 = vtanh.pop %v2059
        %v2328 = vtanh.pop %v2088
        %v2329 = vtanh.pop %v2117
        %v2330 = vtanh.pop %v2146
        %v2331 = vtanh.pop %v2175
        %v2332 = vtanh.pop %v2204
        %v2333 = vtanh.pop %v2233
        %v2334 = vtanh.pop %v1337
        %v2335 = vtanh.pop %v1366
        %v2336 = vtanh.pop %v1395
        %v2337 = vtanh.pop %v1424
        %v2338 = vtanh.pop %v1453
        %v2339 = vtanh.pop %v1482
        %v2340 = vtanh.pop %v1511
        %v2341 = vtanh.pop %v1540
        %v2342 = vtanh.pop %v1569
        %v2343 = vtanh.pop %v1598
        %v2344 = vtanh.pop %v1627
        %v2345 = vtanh.pop %v1656
        %v2346 = vtanh.pop %v1685
        %v2347 = vtanh.pop %v1714
        %v2348 = vtanh.pop %v1743
        %v2349 = vtanh.pop %v1772
        %v2350 = vtanh.pop %v1801
        %v2351 = vtanh.pop %v1830
        %v2352 = vtanh.pop %v1859
        %v2353 = vtanh.pop %v1888
        %v2354 = vtanh.pop %v1917
        %v2355 = vtanh.pop %v1946
        %v2356 = vtanh.pop %v1975
        %v2357 = vtanh.pop %v2004
        %v2358 = vtanh.pop %v2033
        %v2359 = vtanh.pop %v2062
        %v2360 = vtanh.pop %v2091
        %v2361 = vtanh.pop %v2120
        %v2362 = vtanh.pop %v2149
        %v2363 = vtanh.pop %v2178
        %v2364 = vtanh.pop %v2207
        %v2365 = vtanh.pop %v2236
        %v2366 = vld [vmem:[%s5] sm:$0xff]
        %v2367 = vld [vmem:[%s5 + $0x8] sm:$0xff]
        %v2368 = vld [vmem:[%s6] sm:$0xff]
        %v2369 = vld [vmem:[%s6 + $0x8] sm:$0xff]
        %2371 = vset.pattern.permute.xlu0 0
        %2372 = vperm.xlu0 %2371, %v2368
        %v2373 = vpop.permute.xlu0 %2372
        %2376 = vset.pattern.permute.xlu0 0
        %2377 = vperm.xlu0 %2376, %v2369
        %v2378 = vpop.permute.xlu0 %2377
        %vm2380 = vcmask 261120
        %v2382 = vsel %vm2380, %v2366, 0
        %v2385 = vsel %vm2380, %v2367, 0
        %2387 = vmatpush.msra.mxu0 0.0
        %2388 = vmatpush.msra.mxu0 0.0
        %2389 = vmatpush.msra.mxu0 0.0
        %2390 = vmatpush.msra.mxu0 0.0
        %2391 = vmatpush.msra.mxu0 0.0
        %2392 = vmatpush.msra.mxu0 0.0
        %2393 = vmatpush.msra.mxu0 0.0
        %2394 = vmatpush.msra.mxu0 0.0
        %2395 = vmatpush.msra.mxu0 0.0
        %2396 = vmatpush.msra.mxu0 0.0
        %2397 = vmatpush.msra.mxu0 0.0
        %2398 = vmatpush.msra.mxu0 0.0
        %2399 = vmatpush.msra.mxu0 %v2334
        %2400 = vmatpush.msra.mxu0 %v2302
        %2401 = vmatpush.msra.mxu0 %v2270
        %2402 = vmatpush.msra.mxu0 %v2238
        %2403 = vmatmul.f32.gmra.mxu0 %v2382
        %v2404 = vpop.f32.mrf.mxu0
        %v2405 = vadd.f32 %v2373, %v2404
        %2406 = vmatmul.f32.gmra.mxu0 %v2385
        %v2407 = vpop.f32.mrf.mxu0
        %v2408 = vadd.f32 %v2378, %v2407
        %2409 = vdwg.mxu0
        %2410 = vmatpush.msra.mxu0 0.0
        %2411 = vmatpush.msra.mxu0 0.0
        %2412 = vmatpush.msra.mxu0 0.0
        %2413 = vmatpush.msra.mxu0 0.0
        %2414 = vmatpush.msra.mxu0 0.0
        %2415 = vmatpush.msra.mxu0 0.0
        %2416 = vmatpush.msra.mxu0 0.0
        %2417 = vmatpush.msra.mxu0 0.0
        %2418 = vmatpush.msra.mxu0 0.0
        %2419 = vmatpush.msra.mxu0 0.0
        %2420 = vmatpush.msra.mxu0 0.0
        %2421 = vmatpush.msra.mxu0 0.0
        %2422 = vmatpush.msra.mxu0 %v2335
        %2423 = vmatpush.msra.mxu0 %v2303
        %2424 = vmatpush.msra.mxu0 %v2271
        %2425 = vmatpush.msra.mxu0 %v2239
        %2426 = vmatmul.f32.gmra.mxu0 %v2382
        %v2427 = vpop.f32.mrf.mxu0
        %v2428 = vadd.f32 %v2373, %v2427
        %2429 = vmatmul.f32.gmra.mxu0 %v2385
        %v2430 = vpop.f32.mrf.mxu0
        %v2431 = vadd.f32 %v2378, %v2430
        %2432 = vdwg.mxu0
        %2433 = vmatpush.msra.mxu0 0.0
        %2434 = vmatpush.msra.mxu0 0.0
        %2435 = vmatpush.msra.mxu0 0.0
        %2436 = vmatpush.msra.mxu0 0.0
        %2437 = vmatpush.msra.mxu0 0.0
        %2438 = vmatpush.msra.mxu0 0.0
        %2439 = vmatpush.msra.mxu0 0.0
        %2440 = vmatpush.msra.mxu0 0.0
        %2441 = vmatpush.msra.mxu0 0.0
        %2442 = vmatpush.msra.mxu0 0.0
        %2443 = vmatpush.msra.mxu0 0.0
        %2444 = vmatpush.msra.mxu0 0.0
        %2445 = vmatpush.msra.mxu0 %v2336
        %2446 = vmatpush.msra.mxu0 %v2304
        %2447 = vmatpush.msra.mxu0 %v2272
        %2448 = vmatpush.msra.mxu0 %v2240
        %2449 = vmatmul.f32.gmra.mxu0 %v2382
        %v2450 = vpop.f32.mrf.mxu0
        %v2451 = vadd.f32 %v2373, %v2450
        %2452 = vmatmul.f32.gmra.mxu0 %v2385
        %v2453 = vpop.f32.mrf.mxu0
        %v2454 = vadd.f32 %v2378, %v2453
        %2455 = vdwg.mxu0
        %2456 = vmatpush.msra.mxu0 0.0
        %2457 = vmatpush.msra.mxu0 0.0
        %2458 = vmatpush.msra.mxu0 0.0
        %2459 = vmatpush.msra.mxu0 0.0
        %2460 = vmatpush.msra.mxu0 0.0
        %2461 = vmatpush.msra.mxu0 0.0
        %2462 = vmatpush.msra.mxu0 0.0
        %2463 = vmatpush.msra.mxu0 0.0
        %2464 = vmatpush.msra.mxu0 0.0
        %2465 = vmatpush.msra.mxu0 0.0
        %2466 = vmatpush.msra.mxu0 0.0
        %2467 = vmatpush.msra.mxu0 0.0
        %2468 = vmatpush.msra.mxu0 %v2337
        %2469 = vmatpush.msra.mxu0 %v2305
        %2470 = vmatpush.msra.mxu0 %v2273
        %2471 = vmatpush.msra.mxu0 %v2241
        %2472 = vmatmul.f32.gmra.mxu0 %v2382
        %v2473 = vpop.f32.mrf.mxu0
        %v2474 = vadd.f32 %v2373, %v2473
        %2475 = vmatmul.f32.gmra.mxu0 %v2385
        %v2476 = vpop.f32.mrf.mxu0
        %v2477 = vadd.f32 %v2378, %v2476
        %2478 = vdwg.mxu0
        %2479 = vmatpush.msra.mxu0 0.0
        %2480 = vmatpush.msra.mxu0 0.0
        %2481 = vmatpush.msra.mxu0 0.0
        %2482 = vmatpush.msra.mxu0 0.0
        %2483 = vmatpush.msra.mxu0 0.0
        %2484 = vmatpush.msra.mxu0 0.0
        %2485 = vmatpush.msra.mxu0 0.0
        %2486 = vmatpush.msra.mxu0 0.0
        %2487 = vmatpush.msra.mxu0 0.0
        %2488 = vmatpush.msra.mxu0 0.0
        %2489 = vmatpush.msra.mxu0 0.0
        %2490 = vmatpush.msra.mxu0 0.0
        %2491 = vmatpush.msra.mxu0 %v2338
        %2492 = vmatpush.msra.mxu0 %v2306
        %2493 = vmatpush.msra.mxu0 %v2274
        %2494 = vmatpush.msra.mxu0 %v2242
        %2495 = vmatmul.f32.gmra.mxu0 %v2382
        %v2496 = vpop.f32.mrf.mxu0
        %v2497 = vadd.f32 %v2373, %v2496
        %2498 = vmatmul.f32.gmra.mxu0 %v2385
        %v2499 = vpop.f32.mrf.mxu0
        %v2500 = vadd.f32 %v2378, %v2499
        %2501 = vdwg.mxu0
        %2502 = vmatpush.msra.mxu0 0.0
        %2503 = vmatpush.msra.mxu0 0.0
        %2504 = vmatpush.msra.mxu0 0.0
        %2505 = vmatpush.msra.mxu0 0.0
        %2506 = vmatpush.msra.mxu0 0.0
        %2507 = vmatpush.msra.mxu0 0.0
        %2508 = vmatpush.msra.mxu0 0.0
        %2509 = vmatpush.msra.mxu0 0.0
        %2510 = vmatpush.msra.mxu0 0.0
        %2511 = vmatpush.msra.mxu0 0.0
        %2512 = vmatpush.msra.mxu0 0.0
        %2513 = vmatpush.msra.mxu0 0.0
        %2514 = vmatpush.msra.mxu0 %v2339
        %2515 = vmatpush.msra.mxu0 %v2307
        %2516 = vmatpush.msra.mxu0 %v2275
        %2517 = vmatpush.msra.mxu0 %v2243
        %2518 = vmatmul.f32.gmra.mxu0 %v2382
        %v2519 = vpop.f32.mrf.mxu0
        %v2520 = vadd.f32 %v2373, %v2519
        %2521 = vmatmul.f32.gmra.mxu0 %v2385
        %v2522 = vpop.f32.mrf.mxu0
        %v2523 = vadd.f32 %v2378, %v2522
        %2524 = vdwg.mxu0
        %2525 = vmatpush.msra.mxu0 0.0
        %2526 = vmatpush.msra.mxu0 0.0
        %2527 = vmatpush.msra.mxu0 0.0
        %2528 = vmatpush.msra.mxu0 0.0
        %2529 = vmatpush.msra.mxu0 0.0
        %2530 = vmatpush.msra.mxu0 0.0
        %2531 = vmatpush.msra.mxu0 0.0
        %2532 = vmatpush.msra.mxu0 0.0
        %2533 = vmatpush.msra.mxu0 0.0
        %2534 = vmatpush.msra.mxu0 0.0
        %2535 = vmatpush.msra.mxu0 0.0
        %2536 = vmatpush.msra.mxu0 0.0
        %2537 = vmatpush.msra.mxu0 %v2340
        %2538 = vmatpush.msra.mxu0 %v2308
        %2539 = vmatpush.msra.mxu0 %v2276
        %2540 = vmatpush.msra.mxu0 %v2244
        %2541 = vmatmul.f32.gmra.mxu0 %v2382
        %v2542 = vpop.f32.mrf.mxu0
        %v2543 = vadd.f32 %v2373, %v2542
        %2544 = vmatmul.f32.gmra.mxu0 %v2385
        %v2545 = vpop.f32.mrf.mxu0
        %v2546 = vadd.f32 %v2378, %v2545
        %2547 = vdwg.mxu0
        %2548 = vmatpush.msra.mxu0 0.0
        %2549 = vmatpush.msra.mxu0 0.0
        %2550 = vmatpush.msra.mxu0 0.0
        %2551 = vmatpush.msra.mxu0 0.0
        %2552 = vmatpush.msra.mxu0 0.0
        %2553 = vmatpush.msra.mxu0 0.0
        %2554 = vmatpush.msra.mxu0 0.0
        %2555 = vmatpush.msra.mxu0 0.0
        %2556 = vmatpush.msra.mxu0 0.0
        %2557 = vmatpush.msra.mxu0 0.0
        %2558 = vmatpush.msra.mxu0 0.0
        %2559 = vmatpush.msra.mxu0 0.0
        %2560 = vmatpush.msra.mxu0 %v2341
        %2561 = vmatpush.msra.mxu0 %v2309
        %2562 = vmatpush.msra.mxu0 %v2277
        %2563 = vmatpush.msra.mxu0 %v2245
        %2564 = vmatmul.f32.gmra.mxu0 %v2382
        %v2565 = vpop.f32.mrf.mxu0
        %v2566 = vadd.f32 %v2373, %v2565
        %2567 = vmatmul.f32.gmra.mxu0 %v2385
        %v2568 = vpop.f32.mrf.mxu0
        %v2569 = vadd.f32 %v2378, %v2568
        %2570 = vdwg.mxu0
        %2571 = vmatpush.msra.mxu0 0.0
        %2572 = vmatpush.msra.mxu0 0.0
        %2573 = vmatpush.msra.mxu0 0.0
        %2574 = vmatpush.msra.mxu0 0.0
        %2575 = vmatpush.msra.mxu0 0.0
        %2576 = vmatpush.msra.mxu0 0.0
        %2577 = vmatpush.msra.mxu0 0.0
        %2578 = vmatpush.msra.mxu0 0.0
        %2579 = vmatpush.msra.mxu0 0.0
        %2580 = vmatpush.msra.mxu0 0.0
        %2581 = vmatpush.msra.mxu0 0.0
        %2582 = vmatpush.msra.mxu0 0.0
        %2583 = vmatpush.msra.mxu0 %v2342
        %2584 = vmatpush.msra.mxu0 %v2310
        %2585 = vmatpush.msra.mxu0 %v2278
        %2586 = vmatpush.msra.mxu0 %v2246
        %2587 = vmatmul.f32.gmra.mxu0 %v2382
        %v2588 = vpop.f32.mrf.mxu0
        %v2589 = vadd.f32 %v2373, %v2588
        %2590 = vmatmul.f32.gmra.mxu0 %v2385
        %v2591 = vpop.f32.mrf.mxu0
        %v2592 = vadd.f32 %v2378, %v2591
        %2593 = vdwg.mxu0
        %2594 = vmatpush.msra.mxu0 0.0
        %2595 = vmatpush.msra.mxu0 0.0
        %2596 = vmatpush.msra.mxu0 0.0
        %2597 = vmatpush.msra.mxu0 0.0
        %2598 = vmatpush.msra.mxu0 0.0
        %2599 = vmatpush.msra.mxu0 0.0
        %2600 = vmatpush.msra.mxu0 0.0
        %2601 = vmatpush.msra.mxu0 0.0
        %2602 = vmatpush.msra.mxu0 0.0
        %2603 = vmatpush.msra.mxu0 0.0
        %2604 = vmatpush.msra.mxu0 0.0
        %2605 = vmatpush.msra.mxu0 0.0
        %2606 = vmatpush.msra.mxu0 %v2343
        %2607 = vmatpush.msra.mxu0 %v2311
        %2608 = vmatpush.msra.mxu0 %v2279
        %2609 = vmatpush.msra.mxu0 %v2247
        %2610 = vmatmul.f32.gmra.mxu0 %v2382
        %v2611 = vpop.f32.mrf.mxu0
        %v2612 = vadd.f32 %v2373, %v2611
        %2613 = vmatmul.f32.gmra.mxu0 %v2385
        %v2614 = vpop.f32.mrf.mxu0
        %v2615 = vadd.f32 %v2378, %v2614
        %2616 = vdwg.mxu0
        %2617 = vmatpush.msra.mxu0 0.0
        %2618 = vmatpush.msra.mxu0 0.0
        %2619 = vmatpush.msra.mxu0 0.0
        %2620 = vmatpush.msra.mxu0 0.0
        %2621 = vmatpush.msra.mxu0 0.0
        %2622 = vmatpush.msra.mxu0 0.0
        %2623 = vmatpush.msra.mxu0 0.0
        %2624 = vmatpush.msra.mxu0 0.0
        %2625 = vmatpush.msra.mxu0 0.0
        %2626 = vmatpush.msra.mxu0 0.0
        %2627 = vmatpush.msra.mxu0 0.0
        %2628 = vmatpush.msra.mxu0 0.0
        %2629 = vmatpush.msra.mxu0 %v2344
        %2630 = vmatpush.msra.mxu0 %v2312
        %2631 = vmatpush.msra.mxu0 %v2280
        %2632 = vmatpush.msra.mxu0 %v2248
        %2633 = vmatmul.f32.gmra.mxu0 %v2382
        %v2634 = vpop.f32.mrf.mxu0
        %v2635 = vadd.f32 %v2373, %v2634
        %2636 = vmatmul.f32.gmra.mxu0 %v2385
        %v2637 = vpop.f32.mrf.mxu0
        %v2638 = vadd.f32 %v2378, %v2637
        %2639 = vdwg.mxu0
        %2640 = vmatpush.msra.mxu0 0.0
        %2641 = vmatpush.msra.mxu0 0.0
        %2642 = vmatpush.msra.mxu0 0.0
        %2643 = vmatpush.msra.mxu0 0.0
        %2644 = vmatpush.msra.mxu0 0.0
        %2645 = vmatpush.msra.mxu0 0.0
        %2646 = vmatpush.msra.mxu0 0.0
        %2647 = vmatpush.msra.mxu0 0.0
        %2648 = vmatpush.msra.mxu0 0.0
        %2649 = vmatpush.msra.mxu0 0.0
        %2650 = vmatpush.msra.mxu0 0.0
        %2651 = vmatpush.msra.mxu0 0.0
        %2652 = vmatpush.msra.mxu0 %v2345
        %2653 = vmatpush.msra.mxu0 %v2313
        %2654 = vmatpush.msra.mxu0 %v2281
        %2655 = vmatpush.msra.mxu0 %v2249
        %2656 = vmatmul.f32.gmra.mxu0 %v2382
        %v2657 = vpop.f32.mrf.mxu0
        %v2658 = vadd.f32 %v2373, %v2657
        %2659 = vmatmul.f32.gmra.mxu0 %v2385
        %v2660 = vpop.f32.mrf.mxu0
        %v2661 = vadd.f32 %v2378, %v2660
        %2662 = vdwg.mxu0
        %2663 = vmatpush.msra.mxu0 0.0
        %2664 = vmatpush.msra.mxu0 0.0
        %2665 = vmatpush.msra.mxu0 0.0
        %2666 = vmatpush.msra.mxu0 0.0
        %2667 = vmatpush.msra.mxu0 0.0
        %2668 = vmatpush.msra.mxu0 0.0
        %2669 = vmatpush.msra.mxu0 0.0
        %2670 = vmatpush.msra.mxu0 0.0
        %2671 = vmatpush.msra.mxu0 0.0
        %2672 = vmatpush.msra.mxu0 0.0
        %2673 = vmatpush.msra.mxu0 0.0
        %2674 = vmatpush.msra.mxu0 0.0
        %2675 = vmatpush.msra.mxu0 %v2346
        %2676 = vmatpush.msra.mxu0 %v2314
        %2677 = vmatpush.msra.mxu0 %v2282
        %2678 = vmatpush.msra.mxu0 %v2250
        %2679 = vmatmul.f32.gmra.mxu0 %v2382
        %v2680 = vpop.f32.mrf.mxu0
        %v2681 = vadd.f32 %v2373, %v2680
        %2682 = vmatmul.f32.gmra.mxu0 %v2385
        %v2683 = vpop.f32.mrf.mxu0
        %v2684 = vadd.f32 %v2378, %v2683
        %2685 = vdwg.mxu0
        %2686 = vmatpush.msra.mxu0 0.0
        %2687 = vmatpush.msra.mxu0 0.0
        %2688 = vmatpush.msra.mxu0 0.0
        %2689 = vmatpush.msra.mxu0 0.0
        %2690 = vmatpush.msra.mxu0 0.0
        %2691 = vmatpush.msra.mxu0 0.0
        %2692 = vmatpush.msra.mxu0 0.0
        %2693 = vmatpush.msra.mxu0 0.0
        %2694 = vmatpush.msra.mxu0 0.0
        %2695 = vmatpush.msra.mxu0 0.0
        %2696 = vmatpush.msra.mxu0 0.0
        %2697 = vmatpush.msra.mxu0 0.0
        %2698 = vmatpush.msra.mxu0 %v2347
        %2699 = vmatpush.msra.mxu0 %v2315
        %2700 = vmatpush.msra.mxu0 %v2283
        %2701 = vmatpush.msra.mxu0 %v2251
        %2702 = vmatmul.f32.gmra.mxu0 %v2382
        %v2703 = vpop.f32.mrf.mxu0
        %v2704 = vadd.f32 %v2373, %v2703
        %2705 = vmatmul.f32.gmra.mxu0 %v2385
        %v2706 = vpop.f32.mrf.mxu0
        %v2707 = vadd.f32 %v2378, %v2706
        %2708 = vdwg.mxu0
        %2709 = vmatpush.msra.mxu0 0.0
        %2710 = vmatpush.msra.mxu0 0.0
        %2711 = vmatpush.msra.mxu0 0.0
        %2712 = vmatpush.msra.mxu0 0.0
        %2713 = vmatpush.msra.mxu0 0.0
        %2714 = vmatpush.msra.mxu0 0.0
        %2715 = vmatpush.msra.mxu0 0.0
        %2716 = vmatpush.msra.mxu0 0.0
        %2717 = vmatpush.msra.mxu0 0.0
        %2718 = vmatpush.msra.mxu0 0.0
        %2719 = vmatpush.msra.mxu0 0.0
        %2720 = vmatpush.msra.mxu0 0.0
        %2721 = vmatpush.msra.mxu0 %v2348
        %2722 = vmatpush.msra.mxu0 %v2316
        %2723 = vmatpush.msra.mxu0 %v2284
        %2724 = vmatpush.msra.mxu0 %v2252
        %2725 = vmatmul.f32.gmra.mxu0 %v2382
        %v2726 = vpop.f32.mrf.mxu0
        %v2727 = vadd.f32 %v2373, %v2726
        %2728 = vmatmul.f32.gmra.mxu0 %v2385
        %v2729 = vpop.f32.mrf.mxu0
        %v2730 = vadd.f32 %v2378, %v2729
        %2731 = vdwg.mxu0
        %2732 = vmatpush.msra.mxu0 0.0
        %2733 = vmatpush.msra.mxu0 0.0
        %2734 = vmatpush.msra.mxu0 0.0
        %2735 = vmatpush.msra.mxu0 0.0
        %2736 = vmatpush.msra.mxu0 0.0
        %2737 = vmatpush.msra.mxu0 0.0
        %2738 = vmatpush.msra.mxu0 0.0
        %2739 = vmatpush.msra.mxu0 0.0
        %2740 = vmatpush.msra.mxu0 0.0
        %2741 = vmatpush.msra.mxu0 0.0
        %2742 = vmatpush.msra.mxu0 0.0
        %2743 = vmatpush.msra.mxu0 0.0
        %2744 = vmatpush.msra.mxu0 %v2349
        %2745 = vmatpush.msra.mxu0 %v2317
        %2746 = vmatpush.msra.mxu0 %v2285
        %2747 = vmatpush.msra.mxu0 %v2253
        %2748 = vmatmul.f32.gmra.mxu0 %v2382
        %v2749 = vpop.f32.mrf.mxu0
        %v2750 = vadd.f32 %v2373, %v2749
        %2751 = vmatmul.f32.gmra.mxu0 %v2385
        %v2752 = vpop.f32.mrf.mxu0
        %v2753 = vadd.f32 %v2378, %v2752
        %2754 = vdwg.mxu0
        %2755 = vmatpush.msra.mxu0 0.0
        %2756 = vmatpush.msra.mxu0 0.0
        %2757 = vmatpush.msra.mxu0 0.0
        %2758 = vmatpush.msra.mxu0 0.0
        %2759 = vmatpush.msra.mxu0 0.0
        %2760 = vmatpush.msra.mxu0 0.0
        %2761 = vmatpush.msra.mxu0 0.0
        %2762 = vmatpush.msra.mxu0 0.0
        %2763 = vmatpush.msra.mxu0 0.0
        %2764 = vmatpush.msra.mxu0 0.0
        %2765 = vmatpush.msra.mxu0 0.0
        %2766 = vmatpush.msra.mxu0 0.0
        %2767 = vmatpush.msra.mxu0 %v2350
        %2768 = vmatpush.msra.mxu0 %v2318
        %2769 = vmatpush.msra.mxu0 %v2286
        %2770 = vmatpush.msra.mxu0 %v2254
        %2771 = vmatmul.f32.gmra.mxu0 %v2382
        %v2772 = vpop.f32.mrf.mxu0
        %v2773 = vadd.f32 %v2373, %v2772
        %2774 = vmatmul.f32.gmra.mxu0 %v2385
        %v2775 = vpop.f32.mrf.mxu0
        %v2776 = vadd.f32 %v2378, %v2775
        %2777 = vdwg.mxu0
        %2778 = vmatpush.msra.mxu0 0.0
        %2779 = vmatpush.msra.mxu0 0.0
        %2780 = vmatpush.msra.mxu0 0.0
        %2781 = vmatpush.msra.mxu0 0.0
        %2782 = vmatpush.msra.mxu0 0.0
        %2783 = vmatpush.msra.mxu0 0.0
        %2784 = vmatpush.msra.mxu0 0.0
        %2785 = vmatpush.msra.mxu0 0.0
        %2786 = vmatpush.msra.mxu0 0.0
        %2787 = vmatpush.msra.mxu0 0.0
        %2788 = vmatpush.msra.mxu0 0.0
        %2789 = vmatpush.msra.mxu0 0.0
        %2790 = vmatpush.msra.mxu0 %v2351
        %2791 = vmatpush.msra.mxu0 %v2319
        %2792 = vmatpush.msra.mxu0 %v2287
        %2793 = vmatpush.msra.mxu0 %v2255
        %2794 = vmatmul.f32.gmra.mxu0 %v2382
        %v2795 = vpop.f32.mrf.mxu0
        %v2796 = vadd.f32 %v2373, %v2795
        %2797 = vmatmul.f32.gmra.mxu0 %v2385
        %v2798 = vpop.f32.mrf.mxu0
        %v2799 = vadd.f32 %v2378, %v2798
        %2800 = vdwg.mxu0
        %2801 = vmatpush.msra.mxu0 0.0
        %2802 = vmatpush.msra.mxu0 0.0
        %2803 = vmatpush.msra.mxu0 0.0
        %2804 = vmatpush.msra.mxu0 0.0
        %2805 = vmatpush.msra.mxu0 0.0
        %2806 = vmatpush.msra.mxu0 0.0
        %2807 = vmatpush.msra.mxu0 0.0
        %2808 = vmatpush.msra.mxu0 0.0
        %2809 = vmatpush.msra.mxu0 0.0
        %2810 = vmatpush.msra.mxu0 0.0
        %2811 = vmatpush.msra.mxu0 0.0
        %2812 = vmatpush.msra.mxu0 0.0
        %2813 = vmatpush.msra.mxu0 %v2352
        %2814 = vmatpush.msra.mxu0 %v2320
        %2815 = vmatpush.msra.mxu0 %v2288
        %2816 = vmatpush.msra.mxu0 %v2256
        %2817 = vmatmul.f32.gmra.mxu0 %v2382
        %v2818 = vpop.f32.mrf.mxu0
        %v2819 = vadd.f32 %v2373, %v2818
        %2820 = vmatmul.f32.gmra.mxu0 %v2385
        %v2821 = vpop.f32.mrf.mxu0
        %v2822 = vadd.f32 %v2378, %v2821
        %2823 = vdwg.mxu0
        %2824 = vmatpush.msra.mxu0 0.0
        %2825 = vmatpush.msra.mxu0 0.0
        %2826 = vmatpush.msra.mxu0 0.0
        %2827 = vmatpush.msra.mxu0 0.0
        %2828 = vmatpush.msra.mxu0 0.0
        %2829 = vmatpush.msra.mxu0 0.0
        %2830 = vmatpush.msra.mxu0 0.0
        %2831 = vmatpush.msra.mxu0 0.0
        %2832 = vmatpush.msra.mxu0 0.0
        %2833 = vmatpush.msra.mxu0 0.0
        %2834 = vmatpush.msra.mxu0 0.0
        %2835 = vmatpush.msra.mxu0 0.0
        %2836 = vmatpush.msra.mxu0 %v2353
        %2837 = vmatpush.msra.mxu0 %v2321
        %2838 = vmatpush.msra.mxu0 %v2289
        %2839 = vmatpush.msra.mxu0 %v2257
        %2840 = vmatmul.f32.gmra.mxu0 %v2382
        %v2841 = vpop.f32.mrf.mxu0
        %v2842 = vadd.f32 %v2373, %v2841
        %2843 = vmatmul.f32.gmra.mxu0 %v2385
        %v2844 = vpop.f32.mrf.mxu0
        %v2845 = vadd.f32 %v2378, %v2844
        %2846 = vdwg.mxu0
        %2847 = vmatpush.msra.mxu0 0.0
        %2848 = vmatpush.msra.mxu0 0.0
        %2849 = vmatpush.msra.mxu0 0.0
        %2850 = vmatpush.msra.mxu0 0.0
        %2851 = vmatpush.msra.mxu0 0.0
        %2852 = vmatpush.msra.mxu0 0.0
        %2853 = vmatpush.msra.mxu0 0.0
        %2854 = vmatpush.msra.mxu0 0.0
        %2855 = vmatpush.msra.mxu0 0.0
        %2856 = vmatpush.msra.mxu0 0.0
        %2857 = vmatpush.msra.mxu0 0.0
        %2858 = vmatpush.msra.mxu0 0.0
        %2859 = vmatpush.msra.mxu0 %v2354
        %2860 = vmatpush.msra.mxu0 %v2322
        %2861 = vmatpush.msra.mxu0 %v2290
        %2862 = vmatpush.msra.mxu0 %v2258
        %2863 = vmatmul.f32.gmra.mxu0 %v2382
        %v2864 = vpop.f32.mrf.mxu0
        %v2865 = vadd.f32 %v2373, %v2864
        %2866 = vmatmul.f32.gmra.mxu0 %v2385
        %v2867 = vpop.f32.mrf.mxu0
        %v2868 = vadd.f32 %v2378, %v2867
        %2869 = vdwg.mxu0
        %2870 = vmatpush.msra.mxu0 0.0
        %2871 = vmatpush.msra.mxu0 0.0
        %2872 = vmatpush.msra.mxu0 0.0
        %2873 = vmatpush.msra.mxu0 0.0
        %2874 = vmatpush.msra.mxu0 0.0
        %2875 = vmatpush.msra.mxu0 0.0
        %2876 = vmatpush.msra.mxu0 0.0
        %2877 = vmatpush.msra.mxu0 0.0
        %2878 = vmatpush.msra.mxu0 0.0
        %2879 = vmatpush.msra.mxu0 0.0
        %2880 = vmatpush.msra.mxu0 0.0
        %2881 = vmatpush.msra.mxu0 0.0
        %2882 = vmatpush.msra.mxu0 %v2355
        %2883 = vmatpush.msra.mxu0 %v2323
        %2884 = vmatpush.msra.mxu0 %v2291
        %2885 = vmatpush.msra.mxu0 %v2259
        %2886 = vmatmul.f32.gmra.mxu0 %v2382
        %v2887 = vpop.f32.mrf.mxu0
        %v2888 = vadd.f32 %v2373, %v2887
        %2889 = vmatmul.f32.gmra.mxu0 %v2385
        %v2890 = vpop.f32.mrf.mxu0
        %v2891 = vadd.f32 %v2378, %v2890
        %2892 = vdwg.mxu0
        %2893 = vmatpush.msra.mxu0 0.0
        %2894 = vmatpush.msra.mxu0 0.0
        %2895 = vmatpush.msra.mxu0 0.0
        %2896 = vmatpush.msra.mxu0 0.0
        %2897 = vmatpush.msra.mxu0 0.0
        %2898 = vmatpush.msra.mxu0 0.0
        %2899 = vmatpush.msra.mxu0 0.0
        %2900 = vmatpush.msra.mxu0 0.0
        %2901 = vmatpush.msra.mxu0 0.0
        %2902 = vmatpush.msra.mxu0 0.0
        %2903 = vmatpush.msra.mxu0 0.0
        %2904 = vmatpush.msra.mxu0 0.0
        %2905 = vmatpush.msra.mxu0 %v2356
        %2906 = vmatpush.msra.mxu0 %v2324
        %2907 = vmatpush.msra.mxu0 %v2292
        %2908 = vmatpush.msra.mxu0 %v2260
        %2909 = vmatmul.f32.gmra.mxu0 %v2382
        %v2910 = vpop.f32.mrf.mxu0
        %v2911 = vadd.f32 %v2373, %v2910
        %2912 = vmatmul.f32.gmra.mxu0 %v2385
        %v2913 = vpop.f32.mrf.mxu0
        %v2914 = vadd.f32 %v2378, %v2913
        %2915 = vdwg.mxu0
        %2916 = vmatpush.msra.mxu0 0.0
        %2917 = vmatpush.msra.mxu0 0.0
        %2918 = vmatpush.msra.mxu0 0.0
        %2919 = vmatpush.msra.mxu0 0.0
        %2920 = vmatpush.msra.mxu0 0.0
        %2921 = vmatpush.msra.mxu0 0.0
        %2922 = vmatpush.msra.mxu0 0.0
        %2923 = vmatpush.msra.mxu0 0.0
        %2924 = vmatpush.msra.mxu0 0.0
        %2925 = vmatpush.msra.mxu0 0.0
        %2926 = vmatpush.msra.mxu0 0.0
        %2927 = vmatpush.msra.mxu0 0.0
        %2928 = vmatpush.msra.mxu0 %v2357
        %2929 = vmatpush.msra.mxu0 %v2325
        %2930 = vmatpush.msra.mxu0 %v2293
        %2931 = vmatpush.msra.mxu0 %v2261
        %2932 = vmatmul.f32.gmra.mxu0 %v2382
        %v2933 = vpop.f32.mrf.mxu0
        %v2934 = vadd.f32 %v2373, %v2933
        %2935 = vmatmul.f32.gmra.mxu0 %v2385
        %v2936 = vpop.f32.mrf.mxu0
        %v2937 = vadd.f32 %v2378, %v2936
        %2938 = vdwg.mxu0
        %2939 = vmatpush.msra.mxu0 0.0
        %2940 = vmatpush.msra.mxu0 0.0
        %2941 = vmatpush.msra.mxu0 0.0
        %2942 = vmatpush.msra.mxu0 0.0
        %2943 = vmatpush.msra.mxu0 0.0
        %2944 = vmatpush.msra.mxu0 0.0
        %2945 = vmatpush.msra.mxu0 0.0
        %2946 = vmatpush.msra.mxu0 0.0
        %2947 = vmatpush.msra.mxu0 0.0
        %2948 = vmatpush.msra.mxu0 0.0
        %2949 = vmatpush.msra.mxu0 0.0
        %2950 = vmatpush.msra.mxu0 0.0
        %2951 = vmatpush.msra.mxu0 %v2358
        %2952 = vmatpush.msra.mxu0 %v2326
        %2953 = vmatpush.msra.mxu0 %v2294
        %2954 = vmatpush.msra.mxu0 %v2262
        %2955 = vmatmul.f32.gmra.mxu0 %v2382
        %v2956 = vpop.f32.mrf.mxu0
        %v2957 = vadd.f32 %v2373, %v2956
        %2958 = vmatmul.f32.gmra.mxu0 %v2385
        %v2959 = vpop.f32.mrf.mxu0
        %v2960 = vadd.f32 %v2378, %v2959
        %2961 = vdwg.mxu0
        %2962 = vmatpush.msra.mxu0 0.0
        %2963 = vmatpush.msra.mxu0 0.0
        %2964 = vmatpush.msra.mxu0 0.0
        %2965 = vmatpush.msra.mxu0 0.0
        %2966 = vmatpush.msra.mxu0 0.0
        %2967 = vmatpush.msra.mxu0 0.0
        %2968 = vmatpush.msra.mxu0 0.0
        %2969 = vmatpush.msra.mxu0 0.0
        %2970 = vmatpush.msra.mxu0 0.0
        %2971 = vmatpush.msra.mxu0 0.0
        %2972 = vmatpush.msra.mxu0 0.0
        %2973 = vmatpush.msra.mxu0 0.0
        %2974 = vmatpush.msra.mxu0 %v2359
        %2975 = vmatpush.msra.mxu0 %v2327
        %2976 = vmatpush.msra.mxu0 %v2295
        %2977 = vmatpush.msra.mxu0 %v2263
        %2978 = vmatmul.f32.gmra.mxu0 %v2382
        %v2979 = vpop.f32.mrf.mxu0
        %v2980 = vadd.f32 %v2373, %v2979
        %2981 = vmatmul.f32.gmra.mxu0 %v2385
        %v2982 = vpop.f32.mrf.mxu0
        %v2983 = vadd.f32 %v2378, %v2982
        %2984 = vdwg.mxu0
        %2985 = vmatpush.msra.mxu0 0.0
        %2986 = vmatpush.msra.mxu0 0.0
        %2987 = vmatpush.msra.mxu0 0.0
        %2988 = vmatpush.msra.mxu0 0.0
        %2989 = vmatpush.msra.mxu0 0.0
        %2990 = vmatpush.msra.mxu0 0.0
        %2991 = vmatpush.msra.mxu0 0.0
        %2992 = vmatpush.msra.mxu0 0.0
        %2993 = vmatpush.msra.mxu0 0.0
        %2994 = vmatpush.msra.mxu0 0.0
        %2995 = vmatpush.msra.mxu0 0.0
        %2996 = vmatpush.msra.mxu0 0.0
        %2997 = vmatpush.msra.mxu0 %v2360
        %2998 = vmatpush.msra.mxu0 %v2328
        %2999 = vmatpush.msra.mxu0 %v2296
        %3000 = vmatpush.msra.mxu0 %v2264
        %3001 = vmatmul.f32.gmra.mxu0 %v2382
        %v3002 = vpop.f32.mrf.mxu0
        %v3003 = vadd.f32 %v2373, %v3002
        %3004 = vmatmul.f32.gmra.mxu0 %v2385
        %v3005 = vpop.f32.mrf.mxu0
        %v3006 = vadd.f32 %v2378, %v3005
        %3007 = vdwg.mxu0
        %3008 = vmatpush.msra.mxu0 0.0
        %3009 = vmatpush.msra.mxu0 0.0
        %3010 = vmatpush.msra.mxu0 0.0
        %3011 = vmatpush.msra.mxu0 0.0
        %3012 = vmatpush.msra.mxu0 0.0
        %3013 = vmatpush.msra.mxu0 0.0
        %3014 = vmatpush.msra.mxu0 0.0
        %3015 = vmatpush.msra.mxu0 0.0
        %3016 = vmatpush.msra.mxu0 0.0
        %3017 = vmatpush.msra.mxu0 0.0
        %3018 = vmatpush.msra.mxu0 0.0
        %3019 = vmatpush.msra.mxu0 0.0
        %3020 = vmatpush.msra.mxu0 %v2361
        %3021 = vmatpush.msra.mxu0 %v2329
        %3022 = vmatpush.msra.mxu0 %v2297
        %3023 = vmatpush.msra.mxu0 %v2265
        %3024 = vmatmul.f32.gmra.mxu0 %v2382
        %v3025 = vpop.f32.mrf.mxu0
        %v3026 = vadd.f32 %v2373, %v3025
        %3027 = vmatmul.f32.gmra.mxu0 %v2385
        %v3028 = vpop.f32.mrf.mxu0
        %v3029 = vadd.f32 %v2378, %v3028
        %3030 = vdwg.mxu0
        %3031 = vmatpush.msra.mxu0 0.0
        %3032 = vmatpush.msra.mxu0 0.0
        %3033 = vmatpush.msra.mxu0 0.0
        %3034 = vmatpush.msra.mxu0 0.0
        %3035 = vmatpush.msra.mxu0 0.0
        %3036 = vmatpush.msra.mxu0 0.0
        %3037 = vmatpush.msra.mxu0 0.0
        %3038 = vmatpush.msra.mxu0 0.0
        %3039 = vmatpush.msra.mxu0 0.0
        %3040 = vmatpush.msra.mxu0 0.0
        %3041 = vmatpush.msra.mxu0 0.0
        %3042 = vmatpush.msra.mxu0 0.0
        %3043 = vmatpush.msra.mxu0 %v2362
        %3044 = vmatpush.msra.mxu0 %v2330
        %3045 = vmatpush.msra.mxu0 %v2298
        %3046 = vmatpush.msra.mxu0 %v2266
        %3047 = vmatmul.f32.gmra.mxu0 %v2382
        %v3048 = vpop.f32.mrf.mxu0
        %v3049 = vadd.f32 %v2373, %v3048
        %3050 = vmatmul.f32.gmra.mxu0 %v2385
        %v3051 = vpop.f32.mrf.mxu0
        %v3052 = vadd.f32 %v2378, %v3051
        %3053 = vdwg.mxu0
        %3054 = vmatpush.msra.mxu0 0.0
        %3055 = vmatpush.msra.mxu0 0.0
        %3056 = vmatpush.msra.mxu0 0.0
        %3057 = vmatpush.msra.mxu0 0.0
        %3058 = vmatpush.msra.mxu0 0.0
        %3059 = vmatpush.msra.mxu0 0.0
        %3060 = vmatpush.msra.mxu0 0.0
        %3061 = vmatpush.msra.mxu0 0.0
        %3062 = vmatpush.msra.mxu0 0.0
        %3063 = vmatpush.msra.mxu0 0.0
        %3064 = vmatpush.msra.mxu0 0.0
        %3065 = vmatpush.msra.mxu0 0.0
        %3066 = vmatpush.msra.mxu0 %v2363
        %3067 = vmatpush.msra.mxu0 %v2331
        %3068 = vmatpush.msra.mxu0 %v2299
        %3069 = vmatpush.msra.mxu0 %v2267
        %3070 = vmatmul.f32.gmra.mxu0 %v2382
        %v3071 = vpop.f32.mrf.mxu0
        %v3072 = vadd.f32 %v2373, %v3071
        %3073 = vmatmul.f32.gmra.mxu0 %v2385
        %v3074 = vpop.f32.mrf.mxu0
        %v3075 = vadd.f32 %v2378, %v3074
        %3076 = vdwg.mxu0
        %3077 = vmatpush.msra.mxu0 0.0
        %3078 = vmatpush.msra.mxu0 0.0
        %3079 = vmatpush.msra.mxu0 0.0
        %3080 = vmatpush.msra.mxu0 0.0
        %3081 = vmatpush.msra.mxu0 0.0
        %3082 = vmatpush.msra.mxu0 0.0
        %3083 = vmatpush.msra.mxu0 0.0
        %3084 = vmatpush.msra.mxu0 0.0
        %3085 = vmatpush.msra.mxu0 0.0
        %3086 = vmatpush.msra.mxu0 0.0
        %3087 = vmatpush.msra.mxu0 0.0
        %3088 = vmatpush.msra.mxu0 0.0
        %3089 = vmatpush.msra.mxu0 %v2364
        %3090 = vmatpush.msra.mxu0 %v2332
        %3091 = vmatpush.msra.mxu0 %v2300
        %3092 = vmatpush.msra.mxu0 %v2268
        %3093 = vmatmul.f32.gmra.mxu0 %v2382
        %v3094 = vpop.f32.mrf.mxu0
        %v3095 = vadd.f32 %v2373, %v3094
        %3096 = vmatmul.f32.gmra.mxu0 %v2385
        %v3097 = vpop.f32.mrf.mxu0
        %v3098 = vadd.f32 %v2378, %v3097
        %3099 = vdwg.mxu0
        %3100 = vmatpush.msra.mxu0 0.0
        %3101 = vmatpush.msra.mxu0 0.0
        %3102 = vmatpush.msra.mxu0 0.0
        %3103 = vmatpush.msra.mxu0 0.0
        %3104 = vmatpush.msra.mxu0 0.0
        %3105 = vmatpush.msra.mxu0 0.0
        %3106 = vmatpush.msra.mxu0 0.0
        %3107 = vmatpush.msra.mxu0 0.0
        %3108 = vmatpush.msra.mxu0 0.0
        %3109 = vmatpush.msra.mxu0 0.0
        %3110 = vmatpush.msra.mxu0 0.0
        %3111 = vmatpush.msra.mxu0 0.0
        %3112 = vmatpush.msra.mxu0 %v2365
        %3113 = vmatpush.msra.mxu0 %v2333
        %3114 = vmatpush.msra.mxu0 %v2301
        %3115 = vmatpush.msra.mxu0 %v2269
        %3116 = vmatmul.f32.gmra.mxu0 %v2382
        %v3117 = vpop.f32.mrf.mxu0
        %v3118 = vadd.f32 %v2373, %v3117
        %3119 = vmatmul.f32.gmra.mxu0 %v2385
        %v3120 = vpop.f32.mrf.mxu0
        %v3121 = vadd.f32 %v2378, %v3120
        %3122 = vdwg.mxu0
        %v3123 = vtanh.pop %v2405
        %v3124 = vtanh.pop %v2428
        %v3125 = vtanh.pop %v2451
        %v3126 = vtanh.pop %v2474
        %v3127 = vtanh.pop %v2497
        %v3128 = vtanh.pop %v2520
        %v3129 = vtanh.pop %v2543
        %v3130 = vtanh.pop %v2566
        %v3131 = vtanh.pop %v2589
        %v3132 = vtanh.pop %v2612
        %v3133 = vtanh.pop %v2635
        %v3134 = vtanh.pop %v2658
        %v3135 = vtanh.pop %v2681
        %v3136 = vtanh.pop %v2704
        %v3137 = vtanh.pop %v2727
        %v3138 = vtanh.pop %v2750
        %v3139 = vtanh.pop %v2773
        %v3140 = vtanh.pop %v2796
        %v3141 = vtanh.pop %v2819
        %v3142 = vtanh.pop %v2842
        %v3143 = vtanh.pop %v2865
        %v3144 = vtanh.pop %v2888
        %v3145 = vtanh.pop %v2911
        %v3146 = vtanh.pop %v2934
        %v3147 = vtanh.pop %v2957
        %v3148 = vtanh.pop %v2980
        %v3149 = vtanh.pop %v3003
        %v3150 = vtanh.pop %v3026
        %v3151 = vtanh.pop %v3049
        %v3152 = vtanh.pop %v3072
        %v3153 = vtanh.pop %v3095
        %v3154 = vtanh.pop %v3118
        %v3155 = vtanh.pop %v2408
        %v3156 = vtanh.pop %v2431
        %v3157 = vtanh.pop %v2454
        %v3158 = vtanh.pop %v2477
        %v3159 = vtanh.pop %v2500
        %v3160 = vtanh.pop %v2523
        %v3161 = vtanh.pop %v2546
        %v3162 = vtanh.pop %v2569
        %v3163 = vtanh.pop %v2592
        %v3164 = vtanh.pop %v2615
        %v3165 = vtanh.pop %v2638
        %v3166 = vtanh.pop %v2661
        %v3167 = vtanh.pop %v2684
        %v3168 = vtanh.pop %v2707
        %v3169 = vtanh.pop %v2730
        %v3170 = vtanh.pop %v2753
        %v3171 = vtanh.pop %v2776
        %v3172 = vtanh.pop %v2799
        %v3173 = vtanh.pop %v2822
        %v3174 = vtanh.pop %v2845
        %v3175 = vtanh.pop %v2868
        %v3176 = vtanh.pop %v2891
        %v3177 = vtanh.pop %v2914
        %v3178 = vtanh.pop %v2937
        %v3179 = vtanh.pop %v2960
        %v3180 = vtanh.pop %v2983
        %v3181 = vtanh.pop %v3006
        %v3182 = vtanh.pop %v3029
        %v3183 = vtanh.pop %v3052
        %v3184 = vtanh.pop %v3075
        %v3185 = vtanh.pop %v3098
        %v3186 = vtanh.pop %v3121
        %v3187 = vld [vmem:[%s7] sm:$0xff]
        %v3188 = vld [vmem:[%s7 + $0x8] sm:$0xff]
        %3190 = vset.pattern.permute.xlu0 0
        %3191 = vperm.xlu0 %3190, %v3187
        %v3192 = vpop.permute.xlu0 %3191
        %3195 = vset.pattern.permute.xlu0 0
        %3196 = vperm.xlu0 %3195, %v3188
        %v3197 = vpop.permute.xlu0 %3196
        %v3199 = vmul.f32 %v3123, %v3192
        %v3200 = vmul.f32 %v3124, %v3192
        %v3201 = vmul.f32 %v3125, %v3192
        %v3202 = vmul.f32 %v3126, %v3192
        %v3203 = vmul.f32 %v3127, %v3192
        %v3204 = vmul.f32 %v3128, %v3192
        %v3205 = vmul.f32 %v3129, %v3192
        %v3206 = vmul.f32 %v3130, %v3192
        %v3207 = vmul.f32 %v3131, %v3192
        %v3208 = vmul.f32 %v3132, %v3192
        %v3209 = vmul.f32 %v3133, %v3192
        %v3210 = vmul.f32 %v3134, %v3192
        %v3211 = vmul.f32 %v3135, %v3192
        %v3212 = vmul.f32 %v3136, %v3192
        %v3213 = vmul.f32 %v3137, %v3192
        %v3214 = vmul.f32 %v3138, %v3192
        %v3215 = vmul.f32 %v3139, %v3192
        %v3216 = vmul.f32 %v3140, %v3192
        %v3217 = vmul.f32 %v3141, %v3192
        %v3218 = vmul.f32 %v3142, %v3192
        %v3219 = vmul.f32 %v3143, %v3192
        %v3220 = vmul.f32 %v3144, %v3192
        %v3221 = vmul.f32 %v3145, %v3192
        %v3222 = vmul.f32 %v3146, %v3192
        %v3223 = vmul.f32 %v3147, %v3192
        %v3224 = vmul.f32 %v3148, %v3192
        %v3225 = vmul.f32 %v3149, %v3192
        %v3226 = vmul.f32 %v3150, %v3192
        %v3227 = vmul.f32 %v3151, %v3192
        %v3228 = vmul.f32 %v3152, %v3192
        %v3229 = vmul.f32 %v3153, %v3192
        %v3230 = vmul.f32 %v3154, %v3192
        %v3231 = vmul.f32 %v3155, %v3197
        %v3232 = vmul.f32 %v3156, %v3197
        %v3233 = vmul.f32 %v3157, %v3197
        %v3234 = vmul.f32 %v3158, %v3197
        %v3235 = vmul.f32 %v3159, %v3197
        %v3236 = vmul.f32 %v3160, %v3197
        %v3237 = vmul.f32 %v3161, %v3197
        %v3238 = vmul.f32 %v3162, %v3197
        %v3239 = vmul.f32 %v3163, %v3197
        %v3240 = vmul.f32 %v3164, %v3197
        %v3241 = vmul.f32 %v3165, %v3197
        %v3242 = vmul.f32 %v3166, %v3197
        %v3243 = vmul.f32 %v3167, %v3197
        %v3244 = vmul.f32 %v3168, %v3197
        %v3245 = vmul.f32 %v3169, %v3197
        %v3246 = vmul.f32 %v3170, %v3197
        %v3247 = vmul.f32 %v3171, %v3197
        %v3248 = vmul.f32 %v3172, %v3197
        %v3249 = vmul.f32 %v3173, %v3197
        %v3250 = vmul.f32 %v3174, %v3197
        %v3251 = vmul.f32 %v3175, %v3197
        %v3252 = vmul.f32 %v3176, %v3197
        %v3253 = vmul.f32 %v3177, %v3197
        %v3254 = vmul.f32 %v3178, %v3197
        %v3255 = vmul.f32 %v3179, %v3197
        %v3256 = vmul.f32 %v3180, %v3197
        %v3257 = vmul.f32 %v3181, %v3197
        %v3258 = vmul.f32 %v3182, %v3197
        %v3259 = vmul.f32 %v3183, %v3197
        %v3260 = vmul.f32 %v3184, %v3197
        %v3261 = vmul.f32 %v3185, %v3197
        %v3262 = vmul.f32 %v3186, %v3197
        %v3263 = vadd.f32 %v3199, %v3231
        %v3264 = vrot.slane %v3263, 4
        %v3265 = vadd.f32 %v3263, %v3264
        %v3266 = vrot.slane %v3265, 2
        %v3267 = vadd.f32 %v3265, %v3266
        %v3268 = vrot.slane %v3267, 1
        %v3269 = vadd.f32 %v3267, %v3268
        %v3270 = vadd.f32 %v3200, %v3232
        %v3271 = vrot.slane %v3270, 4
        %v3272 = vadd.f32 %v3270, %v3271
        %v3273 = vrot.slane %v3272, 2
        %v3274 = vadd.f32 %v3272, %v3273
        %v3275 = vrot.slane %v3274, 1
        %v3276 = vadd.f32 %v3274, %v3275
        %v3277 = vadd.f32 %v3201, %v3233
        %v3278 = vrot.slane %v3277, 4
        %v3279 = vadd.f32 %v3277, %v3278
        %v3280 = vrot.slane %v3279, 2
        %v3281 = vadd.f32 %v3279, %v3280
        %v3282 = vrot.slane %v3281, 1
        %v3283 = vadd.f32 %v3281, %v3282
        %v3284 = vadd.f32 %v3202, %v3234
        %v3285 = vrot.slane %v3284, 4
        %v3286 = vadd.f32 %v3284, %v3285
        %v3287 = vrot.slane %v3286, 2
        %v3288 = vadd.f32 %v3286, %v3287
        %v3289 = vrot.slane %v3288, 1
        %v3290 = vadd.f32 %v3288, %v3289
        %v3291 = vadd.f32 %v3203, %v3235
        %v3292 = vrot.slane %v3291, 4
        %v3293 = vadd.f32 %v3291, %v3292
        %v3294 = vrot.slane %v3293, 2
        %v3295 = vadd.f32 %v3293, %v3294
        %v3296 = vrot.slane %v3295, 1
        %v3297 = vadd.f32 %v3295, %v3296
        %v3298 = vadd.f32 %v3204, %v3236
        %v3299 = vrot.slane %v3298, 4
        %v3300 = vadd.f32 %v3298, %v3299
        %v3301 = vrot.slane %v3300, 2
        %v3302 = vadd.f32 %v3300, %v3301
        %v3303 = vrot.slane %v3302, 1
        %v3304 = vadd.f32 %v3302, %v3303
        %v3305 = vadd.f32 %v3205, %v3237
        %v3306 = vrot.slane %v3305, 4
        %v3307 = vadd.f32 %v3305, %v3306
        %v3308 = vrot.slane %v3307, 2
        %v3309 = vadd.f32 %v3307, %v3308
        %v3310 = vrot.slane %v3309, 1
        %v3311 = vadd.f32 %v3309, %v3310
        %v3312 = vadd.f32 %v3206, %v3238
        %v3313 = vrot.slane %v3312, 4
        %v3314 = vadd.f32 %v3312, %v3313
        %v3315 = vrot.slane %v3314, 2
        %v3316 = vadd.f32 %v3314, %v3315
        %v3317 = vrot.slane %v3316, 1
        %v3318 = vadd.f32 %v3316, %v3317
        %v3319 = vadd.f32 %v3207, %v3239
        %v3320 = vrot.slane %v3319, 4
        %v3321 = vadd.f32 %v3319, %v3320
        %v3322 = vrot.slane %v3321, 2
        %v3323 = vadd.f32 %v3321, %v3322
        %v3324 = vrot.slane %v3323, 1
        %v3325 = vadd.f32 %v3323, %v3324
        %v3326 = vadd.f32 %v3208, %v3240
        %v3327 = vrot.slane %v3326, 4
        %v3328 = vadd.f32 %v3326, %v3327
        %v3329 = vrot.slane %v3328, 2
        %v3330 = vadd.f32 %v3328, %v3329
        %v3331 = vrot.slane %v3330, 1
        %v3332 = vadd.f32 %v3330, %v3331
        %v3333 = vadd.f32 %v3209, %v3241
        %v3334 = vrot.slane %v3333, 4
        %v3335 = vadd.f32 %v3333, %v3334
        %v3336 = vrot.slane %v3335, 2
        %v3337 = vadd.f32 %v3335, %v3336
        %v3338 = vrot.slane %v3337, 1
        %v3339 = vadd.f32 %v3337, %v3338
        %v3340 = vadd.f32 %v3210, %v3242
        %v3341 = vrot.slane %v3340, 4
        %v3342 = vadd.f32 %v3340, %v3341
        %v3343 = vrot.slane %v3342, 2
        %v3344 = vadd.f32 %v3342, %v3343
        %v3345 = vrot.slane %v3344, 1
        %v3346 = vadd.f32 %v3344, %v3345
        %v3347 = vadd.f32 %v3211, %v3243
        %v3348 = vrot.slane %v3347, 4
        %v3349 = vadd.f32 %v3347, %v3348
        %v3350 = vrot.slane %v3349, 2
        %v3351 = vadd.f32 %v3349, %v3350
        %v3352 = vrot.slane %v3351, 1
        %v3353 = vadd.f32 %v3351, %v3352
        %v3354 = vadd.f32 %v3212, %v3244
        %v3355 = vrot.slane %v3354, 4
        %v3356 = vadd.f32 %v3354, %v3355
        %v3357 = vrot.slane %v3356, 2
        %v3358 = vadd.f32 %v3356, %v3357
        %v3359 = vrot.slane %v3358, 1
        %v3360 = vadd.f32 %v3358, %v3359
        %v3361 = vadd.f32 %v3213, %v3245
        %v3362 = vrot.slane %v3361, 4
        %v3363 = vadd.f32 %v3361, %v3362
        %v3364 = vrot.slane %v3363, 2
        %v3365 = vadd.f32 %v3363, %v3364
        %v3366 = vrot.slane %v3365, 1
        %v3367 = vadd.f32 %v3365, %v3366
        %v3368 = vadd.f32 %v3214, %v3246
        %v3369 = vrot.slane %v3368, 4
        %v3370 = vadd.f32 %v3368, %v3369
        %v3371 = vrot.slane %v3370, 2
        %v3372 = vadd.f32 %v3370, %v3371
        %v3373 = vrot.slane %v3372, 1
        %v3374 = vadd.f32 %v3372, %v3373
        %v3375 = vadd.f32 %v3215, %v3247
        %v3376 = vrot.slane %v3375, 4
        %v3377 = vadd.f32 %v3375, %v3376
        %v3378 = vrot.slane %v3377, 2
        %v3379 = vadd.f32 %v3377, %v3378
        %v3380 = vrot.slane %v3379, 1
        %v3381 = vadd.f32 %v3379, %v3380
        %v3382 = vadd.f32 %v3216, %v3248
        %v3383 = vrot.slane %v3382, 4
        %v3384 = vadd.f32 %v3382, %v3383
        %v3385 = vrot.slane %v3384, 2
        %v3386 = vadd.f32 %v3384, %v3385
        %v3387 = vrot.slane %v3386, 1
        %v3388 = vadd.f32 %v3386, %v3387
        %v3389 = vadd.f32 %v3217, %v3249
        %v3390 = vrot.slane %v3389, 4
        %v3391 = vadd.f32 %v3389, %v3390
        %v3392 = vrot.slane %v3391, 2
        %v3393 = vadd.f32 %v3391, %v3392
        %v3394 = vrot.slane %v3393, 1
        %v3395 = vadd.f32 %v3393, %v3394
        %v3396 = vadd.f32 %v3218, %v3250
        %v3397 = vrot.slane %v3396, 4
        %v3398 = vadd.f32 %v3396, %v3397
        %v3399 = vrot.slane %v3398, 2
        %v3400 = vadd.f32 %v3398, %v3399
        %v3401 = vrot.slane %v3400, 1
        %v3402 = vadd.f32 %v3400, %v3401
        %v3403 = vadd.f32 %v3219, %v3251
        %v3404 = vrot.slane %v3403, 4
        %v3405 = vadd.f32 %v3403, %v3404
        %v3406 = vrot.slane %v3405, 2
        %v3407 = vadd.f32 %v3405, %v3406
        %v3408 = vrot.slane %v3407, 1
        %v3409 = vadd.f32 %v3407, %v3408
        %v3410 = vadd.f32 %v3220, %v3252
        %v3411 = vrot.slane %v3410, 4
        %v3412 = vadd.f32 %v3410, %v3411
        %v3413 = vrot.slane %v3412, 2
        %v3414 = vadd.f32 %v3412, %v3413
        %v3415 = vrot.slane %v3414, 1
        %v3416 = vadd.f32 %v3414, %v3415
        %v3417 = vadd.f32 %v3221, %v3253
        %v3418 = vrot.slane %v3417, 4
        %v3419 = vadd.f32 %v3417, %v3418
        %v3420 = vrot.slane %v3419, 2
        %v3421 = vadd.f32 %v3419, %v3420
        %v3422 = vrot.slane %v3421, 1
        %v3423 = vadd.f32 %v3421, %v3422
        %v3424 = vadd.f32 %v3222, %v3254
        %v3425 = vrot.slane %v3424, 4
        %v3426 = vadd.f32 %v3424, %v3425
        %v3427 = vrot.slane %v3426, 2
        %v3428 = vadd.f32 %v3426, %v3427
        %v3429 = vrot.slane %v3428, 1
        %v3430 = vadd.f32 %v3428, %v3429
        %v3431 = vadd.f32 %v3223, %v3255
        %v3432 = vrot.slane %v3431, 4
        %v3433 = vadd.f32 %v3431, %v3432
        %v3434 = vrot.slane %v3433, 2
        %v3435 = vadd.f32 %v3433, %v3434
        %v3436 = vrot.slane %v3435, 1
        %v3437 = vadd.f32 %v3435, %v3436
        %v3438 = vadd.f32 %v3224, %v3256
        %v3439 = vrot.slane %v3438, 4
        %v3440 = vadd.f32 %v3438, %v3439
        %v3441 = vrot.slane %v3440, 2
        %v3442 = vadd.f32 %v3440, %v3441
        %v3443 = vrot.slane %v3442, 1
        %v3444 = vadd.f32 %v3442, %v3443
        %v3445 = vadd.f32 %v3225, %v3257
        %v3446 = vrot.slane %v3445, 4
        %v3447 = vadd.f32 %v3445, %v3446
        %v3448 = vrot.slane %v3447, 2
        %v3449 = vadd.f32 %v3447, %v3448
        %v3450 = vrot.slane %v3449, 1
        %v3451 = vadd.f32 %v3449, %v3450
        %v3452 = vadd.f32 %v3226, %v3258
        %v3453 = vrot.slane %v3452, 4
        %v3454 = vadd.f32 %v3452, %v3453
        %v3455 = vrot.slane %v3454, 2
        %v3456 = vadd.f32 %v3454, %v3455
        %v3457 = vrot.slane %v3456, 1
        %v3458 = vadd.f32 %v3456, %v3457
        %v3459 = vadd.f32 %v3227, %v3259
        %v3460 = vrot.slane %v3459, 4
        %v3461 = vadd.f32 %v3459, %v3460
        %v3462 = vrot.slane %v3461, 2
        %v3463 = vadd.f32 %v3461, %v3462
        %v3464 = vrot.slane %v3463, 1
        %v3465 = vadd.f32 %v3463, %v3464
        %v3466 = vadd.f32 %v3228, %v3260
        %v3467 = vrot.slane %v3466, 4
        %v3468 = vadd.f32 %v3466, %v3467
        %v3469 = vrot.slane %v3468, 2
        %v3470 = vadd.f32 %v3468, %v3469
        %v3471 = vrot.slane %v3470, 1
        %v3472 = vadd.f32 %v3470, %v3471
        %v3473 = vadd.f32 %v3229, %v3261
        %v3474 = vrot.slane %v3473, 4
        %v3475 = vadd.f32 %v3473, %v3474
        %v3476 = vrot.slane %v3475, 2
        %v3477 = vadd.f32 %v3475, %v3476
        %v3478 = vrot.slane %v3477, 1
        %v3479 = vadd.f32 %v3477, %v3478
        %v3480 = vadd.f32 %v3230, %v3262
        %v3481 = vrot.slane %v3480, 4
        %v3482 = vadd.f32 %v3480, %v3481
        %v3483 = vrot.slane %v3482, 2
        %v3484 = vadd.f32 %v3482, %v3483
        %v3485 = vrot.slane %v3484, 1
        %v3486 = vadd.f32 %v3484, %v3485
        %v3487 = vld [vmem:[#allocation2] sm:$0x1]
        %3489 = vset.pattern.permute.xlu0 0
        %3490 = vperm.xlu0 %3489, %v3487
        %v3491 = vpop.permute.xlu0 %3490
        %v3493 = vperm.slane %v3491, 0
        %v3494 = vadd.f32 %v3269, %v3493
        %v3495 = vadd.f32 %v3276, %v3493
        %v3496 = vadd.f32 %v3283, %v3493
        %v3497 = vadd.f32 %v3290, %v3493
        %v3498 = vadd.f32 %v3297, %v3493
        %v3499 = vadd.f32 %v3304, %v3493
        %v3500 = vadd.f32 %v3311, %v3493
        %v3501 = vadd.f32 %v3318, %v3493
        %v3502 = vadd.f32 %v3325, %v3493
        %v3503 = vadd.f32 %v3332, %v3493
        %v3504 = vadd.f32 %v3339, %v3493
        %v3505 = vadd.f32 %v3346, %v3493
        %v3506 = vadd.f32 %v3353, %v3493
        %v3507 = vadd.f32 %v3360, %v3493
        %v3508 = vadd.f32 %v3367, %v3493
        %v3509 = vadd.f32 %v3374, %v3493
        %v3510 = vadd.f32 %v3381, %v3493
        %v3511 = vadd.f32 %v3388, %v3493
        %v3512 = vadd.f32 %v3395, %v3493
        %v3513 = vadd.f32 %v3402, %v3493
        %v3514 = vadd.f32 %v3409, %v3493
        %v3515 = vadd.f32 %v3416, %v3493
        %v3516 = vadd.f32 %v3423, %v3493
        %v3517 = vadd.f32 %v3430, %v3493
        %v3518 = vadd.f32 %v3437, %v3493
        %v3519 = vadd.f32 %v3444, %v3493
        %v3520 = vadd.f32 %v3451, %v3493
        %v3521 = vadd.f32 %v3458, %v3493
        %v3522 = vadd.f32 %v3465, %v3493
        %v3523 = vadd.f32 %v3472, %v3493
        %v3524 = vadd.f32 %v3479, %v3493
        %v3525 = vadd.f32 %v3486, %v3493
        %v3558 = vrot.slane %v3495, 7
        %v3559 = vrot.slane %v3496, 6
        %v3560 = vrot.slane %v3497, 5
        %v3561 = vrot.slane %v3498, 4
        %v3562 = vrot.slane %v3499, 3
        %v3563 = vrot.slane %v3500, 2
        %v3564 = vrot.slane %v3501, 1
        %v3565 = vrot.slane %v3503, 7
        %v3566 = vrot.slane %v3504, 6
        %v3567 = vrot.slane %v3505, 5
        %v3568 = vrot.slane %v3506, 4
        %v3569 = vrot.slane %v3507, 3
        %v3570 = vrot.slane %v3508, 2
        %v3571 = vrot.slane %v3509, 1
        %v3572 = vrot.slane %v3511, 7
        %v3573 = vrot.slane %v3512, 6
        %v3574 = vrot.slane %v3513, 5
        %v3575 = vrot.slane %v3514, 4
        %v3576 = vrot.slane %v3515, 3
        %v3577 = vrot.slane %v3516, 2
        %v3578 = vrot.slane %v3517, 1
        %v3579 = vrot.slane %v3519, 7
        %v3580 = vrot.slane %v3520, 6
        %v3581 = vrot.slane %v3521, 5
        %v3582 = vrot.slane %v3522, 4
        %v3583 = vrot.slane %v3523, 3
        %v3584 = vrot.slane %v3524, 2
        %v3585 = vrot.slane %v3525, 1
        %vm3586 = vcmask 1040384
        %v3587 = vsel %vm3586, %v3494, %v3558
        %vm3588 = vcmask 1042434
        %v3589 = vsel %vm3588, %v3559, %v3560
        %vm3590 = vcmask 1041408
        %v3591 = vsel %vm3590, %v3587, %v3589
        %vm3592 = vcmask 1044484
        %v3593 = vsel %vm3592, %v3561, %v3562
        %vm3594 = vcmask 1046534
        %v3595 = vsel %vm3594, %v3563, %v3564
        %vm3596 = vcmask 1045508
        %v3597 = vsel %vm3596, %v3593, %v3595
        %vm3598 = vcmask 1043456
        %v3599 = vsel %vm3598, %v3591, %v3597
        %v3600 = vsel %vm3586, %v3502, %v3565
        %v3601 = vsel %vm3588, %v3566, %v3567
        %v3602 = vsel %vm3590, %v3600, %v3601
        %v3603 = vsel %vm3592, %v3568, %v3569
        %v3604 = vsel %vm3594, %v3570, %v3571
        %v3605 = vsel %vm3596, %v3603, %v3604
        %v3606 = vsel %vm3598, %v3602, %v3605
        %v3607 = vsel %vm3586, %v3510, %v3572
        %v3608 = vsel %vm3588, %v3573, %v3574
        %v3609 = vsel %vm3590, %v3607, %v3608
        %v3610 = vsel %vm3592, %v3575, %v3576
        %v3611 = vsel %vm3594, %v3577, %v3578
        %v3612 = vsel %vm3596, %v3610, %v3611
        %v3613 = vsel %vm3598, %v3609, %v3612
        %v3614 = vsel %vm3586, %v3518, %v3579
        %v3615 = vsel %vm3588, %v3580, %v3581
        %v3616 = vsel %vm3590, %v3614, %v3615
        %v3617 = vsel %vm3592, %v3582, %v3583
        %v3618 = vsel %vm3594, %v3584, %v3585
        %v3619 = vsel %vm3596, %v3617, %v3618
        %v3620 = vsel %vm3598, %v3616, %v3619
        %3625 = vst [vmem:[%s326] sm:$0xff] %v3599
        %3626 = vst [vmem:[%s326 + $0x8] sm:$0xff] %v3606
        %3627 = vst [vmem:[%s326 + $0x10] sm:$0xff] %v3613
        %3628 = vst [vmem:[%s326 + $0x18] sm:$0xff] %v3620
        %s3629 = sand.u32 %s227, 1
        %s3630 = scalar_lea.sflag [#allocation4], %s3629
        %s3631 = sand.u32 %s227, 1
        %s3632 = smul.addr %s3631, 32
        %s3633 = scalar_lea.vmem [#allocation3], %s3632
        // Predicated region
        $region57: #{tpu_custom_call.1} parent=55 // pred_check
          %p3634 = pneg %p237
        $region58: #{tpu_custom_call.1} parent=55 // pred_check_branch
          %3636 = sbr.rel (%p3634) target = $region60
        $region59: #{tpu_custom_call.1} parent=55 // pred_region
          %s3637 = smul.u32 32, %s25
          %3639 = vsyncadd %s3630, 0
          %s3640 = scalar_lea.hbm %s9, %s3637
          %s3642 = sshll.u32 %s3633, 4
          %s3643 = int_to_ptr.vmem [resolvable:$true] %s3642
          %s3644 = sshll.u32 %s3640, 4
          %s3645 = int_to_ptr.hbm [resolvable:$true] %s3644
          %3647 = dma.vmem_to_hbm [thread:$0]  %s3643, 512, %s3645, %s3630
        $region60: #{tpu_custom_call.1} parent=55 // pred_fallthru
          _
      $region56: #{tpu_custom_call.1} parent=5 // pred_fallthru
        _
      %p3648 = scmp.le.s32.totalorder 2, %s20
      // Predicated region
      $region61: #{tpu_custom_call.1} parent=5 // pred_check
        %p3649 = pneg %p3648
      $region62: #{tpu_custom_call.1} parent=5 // pred_check_branch
        %3651 = sbr.rel (%p3649) target = $region64
      $region63: #{tpu_custom_call.1} parent=5 // pred_region
        %s3652 = ssub.s32 %s20, 2
        // Predicated region
        $region65: #{tpu_custom_call.1} parent=63 // pred_check
          %p3653 = pneg %p243
        $region66: #{tpu_custom_call.1} parent=63 // pred_check_branch
          %3655 = sbr.rel (%p3653) target = $region68
        $region67: #{tpu_custom_call.1} parent=63 // pred_region
          %s3656 = sand.u32 %s228, 1
          %s3657 = scalar_lea.sflag [#allocation4], %s3656
          %s3658 = sand.u32 %s228, 1
          %s3659 = smul.addr %s3658, 32
          %s3660 = scalar_lea.vmem [#allocation3], %s3659
          %3662 = dma.done %s3657, 512
        $region68: #{tpu_custom_call.1} parent=63 // pred_fallthru
          _
      $region64: #{tpu_custom_call.1} parent=5 // pred_fallthru
        _
    $region6: #{tpu_custom_call.1} parent=1 // loop_footer
      %s24 = sadd.s32 1, %s20
    $region7: #{tpu_custom_call.1} parent=1 // loop_footer_branch
      %19 = sbr.rel target = $region3
    $region8: #{tpu_custom_call.1} parent=1 // loop_exit
      _
    %3663 = vsyncpa [#allocation4], 1
    %s3664 = scalar_lea.sflag [#allocation4], 1
    %3665 = vsyncpa %s3664, 1

</llo_original>
